<compile_context>
chip_gen: v7x
topology: tpu7x:2x2x1
jax: 0.10.0
libtpu: 0.0.40
codegen_flags: <defaults>
</compile_context>

<pallas_src>
import functools

import jax
import jax.numpy as jnp
from jax.experimental import pallas as pl
from jax.experimental.pallas import tpu as pltpu


def _cross_modal_attn_kernel(
    xq_ref, xkv_ref,
    wq_ref, bq_ref, wkv_ref, bkv_ref, wo_ref, bo_ref, phase_ref, bias_ref,
    out_ref,
    *, num_heads, scale,
):
    f32 = jnp.float32
    bt, sq, d = xq_ref.shape
    _, skv, _ = xkv_ref.shape
    hd = d // num_heads
    n_q = bt * sq
    n_k = bt * skv

    # Flatten the batch block onto the token axis (outer-dim merge, layout-free).
    xq2d = xq_ref[...].reshape(n_q, d)       # (Bt*Sq, D)
    xkv2d = xkv_ref[...].reshape(n_k, d)     # (Bt*Skv, D)

    # --- projections, computed transposed: (out_features, tokens) ------------
    # NT contraction consumes the torch (out, in) weight layout directly; heads
    # land on the sublane axis (free 8-row group split), tokens on lanes
    # (>=128 lanes at the design point => lane-dense vmatmul/vst).
    nt = (((1,), (1,)), ((), ()))
    qT = jax.lax.dot_general(wq_ref[...], xq2d, nt,
                             preferred_element_type=f32) + bq_ref[...]       # (D, Nq)
    # K and V fused into a single (2D x D) matmul; split by sublane groups.
    kvT = jax.lax.dot_general(wkv_ref[...], xkv2d, nt,
                              preferred_element_type=f32) + bkv_ref[...]     # (2D, Nk)

    q3 = qT.reshape(num_heads, hd, n_q)                  # (H, hd, Nq)
    k3 = kvT[:d].reshape(num_heads, hd, n_k)             # (H, hd, Nk)
    v3 = kvT[d:].reshape(num_heads, hd, n_k)             # (H, hd, Nk)

    # --- scores + phase modulation + masked softmax (all heads batched) ------
    # One Q-side transpose kept (XLU slot, hidden under the projections); the
    # score/PV contractions use verified batched dot_general dimension numbers.
    qh = jnp.swapaxes(q3, 1, 2)                          # (H, Nq, hd)
    s = jnp.einsum('hqd,hdk->hqk', qh, k3, preferred_element_type=f32) * scale
    s = s + jnp.sin(s * phase_ref[...])                  # phase (H,1,1) broadcast
    s = s + bias_ref[...]                                # block-diag batch mask (0/-1e30)

    s = s - jnp.max(s, axis=-1, keepdims=True)
    p = jnp.exp(s)
    inv_l = pl.reciprocal(jnp.sum(p, axis=-1), approx=False)   # (H, Nq); exact (1e-4 tol)
    # TODO(synk): attention dropout omitted (torch.nn.Dropout is identity in eval mode).

    # PV directly in head-transposed form: (H, hd, Nq) so the per-head merge below
    # is a free sublane-group reshape (no output-side relayout / per-head loop).
    oT = jnp.einsum('hdk,hqk->hdq', v3, p, preferred_element_type=f32)       # (H, hd, Nq)
    oT = oT * inv_l[:, None, :]                          # fold 1/sum into small epilogue
    o2d = oT.reshape(d, n_q)                             # (D, Nq)

    # --- output projection: ONE K=D matmul, bias added once ------------------
    outT = jnp.dot(wo_ref[...], o2d, preferred_element_type=f32) + bo_ref[...]   # (D, Nq)
    out_ref[...] = outT.astype(out_ref.dtype)


def _pick_batch_tile(batch, sq, skv, num_heads, max_score_bytes=2 << 20):
    """Bt so that Bt*Sq >= 128 (lane-dense), capped by batch and the score-tile size."""
    bt = max(1, min(batch, (127 + sq) // sq))
    while bt > 1 and num_heads * (bt * sq) * (bt * skv) * 4 > max_score_bytes:
        bt -= 1
    return bt


def cross_modal_attention(q_features, kv_features, params, num_heads):
    B, Sq, D = q_features.shape
    _, Skv, _ = kv_features.shape
    head_dim = D // num_heads
    scale = float(head_dim) ** (-0.5)

    bt = _pick_batch_tile(B, Sq, Skv, num_heads)
    grid_b = (B + bt - 1) // bt
    Bp = grid_b * bt
    if Bp != B:  # zero-pad batch to a multiple of the batch tile
        q_features = jnp.pad(q_features, ((0, Bp - B), (0, 0), (0, 0)))
        kv_features = jnp.pad(kv_features, ((0, Bp - B), (0, 0), (0, 0)))
    n_q, n_k = bt * Sq, bt * Skv

    # Weights stay in torch (out, in) layout; K/V stacked for the fused projection.
    wq = params["wq"]
    bq = params["bq"].reshape(D, 1)
    wkv = jnp.concatenate([params["wk"], params["wv"]], axis=0)                  # (2D, D)
    bkv = jnp.concatenate([params["bk"], params["bv"]], axis=0).reshape(2 * D, 1)
    wo = params["wo"]
    bo = params["bo"].reshape(D, 1)
    phase = params["phase_shifts"].reshape(num_heads, 1, 1)

    # Additive block-diagonal mask: query token i (batch i//Sq) may only attend to
    # key token j (batch j//Skv) of the same batch element within the block.
    q_b = jnp.arange(n_q, dtype=jnp.int32) // Sq
    k_b = jnp.arange(n_k, dtype=jnp.int32) // Skv
    attn_bias = jnp.where(q_b[:, None] == k_b[None, :],
                          jnp.float32(0.0), jnp.float32(-1e30))                  # (Nq, Nk)

    kernel = functools.partial(_cross_modal_attn_kernel,
                               num_heads=num_heads, scale=scale)

    const = lambda shape: pl.BlockSpec(shape, lambda b: (0,) * len(shape))

    out = pl.pallas_call(
        kernel,
        # Output stored transposed: (block, D, Bt*Sq) -- lane axis is the batched
        # token axis (>=128 at design point => unmasked vst), sublane axis is D.
        out_shape=jax.ShapeDtypeStruct((grid_b, D, n_q), q_features.dtype),
        grid_spec=pltpu.PrefetchScalarGridSpec(
            num_scalar_prefetch=0,
            grid=(grid_b,),
            in_specs=[
                pl.BlockSpec((bt, Sq, D), lambda b: (b, 0, 0)),    # q_features block
                pl.BlockSpec((bt, Skv, D), lambda b: (b, 0, 0)),   # kv_features block
                const((D, D)), const((D, 1)),                      # Wq, bq
                const((2 * D, D)), const((2 * D, 1)),              # [Wk;Wv], [bk;bv]
                const((D, D)), const((D, 1)),                      # Wo, bo
                const((num_heads, 1, 1)),                          # phase shifts
                const((n_q, n_k)),                                 # batch mask bias
            ],
            out_specs=pl.BlockSpec((pl.Squeezed(), D, n_q), lambda b: (b, 0, 0)),
        ),
        compiler_params=pltpu.CompilerParams(
            # On v7x verify the batch-block axis actually splits across both
            # TensorCores; if not, shard it explicitly (core_map / CORE_PARALLEL).
            dimension_semantics=("parallel",),
            # Plenty at these sizes; on v7x (64 MiB physical) keep <= ~48 MiB and
            # K-tile the projections rather than growing resident weight blocks.
            vmem_limit_bytes=32 * 1024 * 1024,
        ),
    )(q_features, kv_features, wq, bq, wkv, bkv, wo, bo, phase, attn_bias)

    # Undo the transposed/blocked layout (tiny wrapper-side layout plumbing).
    out = jnp.transpose(out, (0, 2, 1)).reshape(Bp, Sq, D)[:B]
    # torch: .squeeze(1) -- only drops axis 1 if it has size 1.
    if out.shape[1] == 1:
        out = jnp.squeeze(out, axis=1)
    return out


def _reference(q_features, kv_features, params, num_heads):
    """Pure-JAX reference mirroring the PyTorch forward exactly (eval mode)."""
    B, Sq, D = q_features.shape
    hd = D // num_heads
    scale = float(hd) ** (-0.5)

    def lin(x, w, b):
        return x @ w.T + b

    q = lin(q_features, params["wq"], params["bq"]).reshape(B, -1, num_heads, hd).transpose(0, 2, 1, 3)
    k = lin(kv_features, params["wk"], params["bk"]).reshape(B, -1, num_heads, hd).transpose(0, 2, 1, 3)
    v = lin(kv_features, params["wv"], params["bv"]).reshape(B, -1, num_heads, hd).transpose(0, 2, 1, 3)

    attn = jnp.einsum("bhqd,bhkd->bhqk", q, k) * scale
    attn = attn + jnp.sin(attn * params["phase_shifts"][None])  # (H,1,1) broadcasts
    attn = jax.nn.softmax(attn, axis=-1)
    out = jnp.einsum("bhqk,bhkd->bhqd", attn, v)
    out = out.transpose(0, 2, 1, 3).reshape(B, -1, D)
    out = lin(out, params["wo"], params["bo"])
    if out.shape[1] == 1:
        out = jnp.squeeze(out, axis=1)
    return out


def init_params(key, dim, num_heads):
    ks = jax.random.split(key, 9)
    s = 1.0 / jnp.sqrt(dim)
    return {
        "wq": jax.random.uniform(ks[0], (dim, dim), jnp.float32, -s, s),
        "bq": jax.random.uniform(ks[1], (dim,), jnp.float32, -s, s),
        "wk": jax.random.uniform(ks[2], (dim, dim), jnp.float32, -s, s),
        "bk": jax.random.uniform(ks[3], (dim,), jnp.float32, -s, s),
        "wv": jax.random.uniform(ks[4], (dim, dim), jnp.float32, -s, s),
        "bv": jax.random.uniform(ks[5], (dim,), jnp.float32, -s, s),
        "wo": jax.random.uniform(ks[6], (dim, dim), jnp.float32, -s, s),
        "bo": jax.random.uniform(ks[7], (dim,), jnp.float32, -s, s),
        "phase_shifts": jax.random.normal(ks[8], (num_heads, 1, 1), jnp.float32) * 0.02,
    }


if __name__ == "__main__":
    B, Sq, Skv, D, H = 2, 8, 16, 64, 8

    root = jax.random.PRNGKey(0)
    kp, kq, kkv = jax.random.split(root, 3)
    params = init_params(kp, D, H)
    q_features = jax.random.normal(kq, (B, Sq, D), jnp.float32)
    kv_features = jax.random.normal(kkv, (B, Skv, D), jnp.float32)

    out = cross_modal_attention(q_features, kv_features, params, H)
    out = jax.block_until_ready(out)

    ref = _reference(q_features, kv_features, params, H)
    assert out.shape == ref.shape, (out.shape, ref.shape)
    assert jnp.allclose(out, ref, atol=1e-4, rtol=1e-4), float(jnp.max(jnp.abs(out - ref)))

    print("KERNEL_OK")
</pallas_src>

<mosaic_0001>
module attributes {stable_mosaic.version = 11 : i64} {
  func.func @_cross_modal_attn_kernel(%arg0: i32, %arg1: memref<2x8x64xf32, #tpu.memory_space<vmem>>, %arg2: memref<2x16x64xf32, #tpu.memory_space<vmem>>, %arg3: memref<64x64xf32, #tpu.memory_space<vmem>>, %arg4: memref<64x1xf32, #tpu.memory_space<vmem>>, %arg5: memref<128x64xf32, #tpu.memory_space<vmem>>, %arg6: memref<128x1xf32, #tpu.memory_space<vmem>>, %arg7: memref<64x64xf32, #tpu.memory_space<vmem>>, %arg8: memref<64x1xf32, #tpu.memory_space<vmem>>, %arg9: memref<8x1x1xf32, #tpu.memory_space<vmem>>, %arg10: memref<16x32xf32, #tpu.memory_space<vmem>>, %arg11: memref<1x64x16xf32, #tpu.memory_space<vmem>>) attributes {dimension_semantics = [#tpu.dimension_semantics<parallel>], iteration_bounds = array<i64: 1>, scalar_prefetch = 0 : i64, scratch_operands = 0 : i64, tpu.core_type = #tpu.core_type<tc>, window_params = [{transform_indices = @transform_0, window_bounds = array<i64: 2, 8, 64>}, {transform_indices = @transform_1, window_bounds = array<i64: 2, 16, 64>}, {pipeline_mode = #tpu.pipeline_mode<synchronous>, transform_indices = @transform_2, window_bounds = array<i64: 64, 64>}, {pipeline_mode = #tpu.pipeline_mode<synchronous>, transform_indices = @transform_3, window_bounds = array<i64: 64, 1>}, {pipeline_mode = #tpu.pipeline_mode<synchronous>, transform_indices = @transform_4, window_bounds = array<i64: 128, 64>}, {pipeline_mode = #tpu.pipeline_mode<synchronous>, transform_indices = @transform_5, window_bounds = array<i64: 128, 1>}, {pipeline_mode = #tpu.pipeline_mode<synchronous>, transform_indices = @transform_6, window_bounds = array<i64: 64, 64>}, {pipeline_mode = #tpu.pipeline_mode<synchronous>, transform_indices = @transform_7, window_bounds = array<i64: 64, 1>}, {pipeline_mode = #tpu.pipeline_mode<synchronous>, transform_indices = @transform_8, window_bounds = array<i64: 8, 1, 1>}, {pipeline_mode = #tpu.pipeline_mode<synchronous>, transform_indices = @transform_9, window_bounds = array<i64: 16, 32>}, {transform_indices = @transform_10, window_bounds = array<i64: 1, 64, 16>}]} {
    %c0 = arith.constant 0 : index
    %c0_0 = arith.constant 0 : index
    %c0_1 = arith.constant 0 : index
    %0 = vector.load %arg1[%c0, %c0_0, %c0_1] : memref<2x8x64xf32, #tpu.memory_space<vmem>>, vector<2x8x64xf32>
    %1 = vector.shape_cast %0 : vector<2x8x64xf32> to vector<16x64xf32>
    %c0_2 = arith.constant 0 : index
    %c0_3 = arith.constant 0 : index
    %c0_4 = arith.constant 0 : index
    %2 = vector.load %arg2[%c0_2, %c0_3, %c0_4] : memref<2x16x64xf32, #tpu.memory_space<vmem>>, vector<2x16x64xf32>
    %3 = vector.shape_cast %2 : vector<2x16x64xf32> to vector<32x64xf32>
    %c0_5 = arith.constant 0 : index
    %c0_6 = arith.constant 0 : index
    %4 = vector.load %arg3[%c0_5, %c0_6] : memref<64x64xf32, #tpu.memory_space<vmem>>, vector<64x64xf32>
    %cst = arith.constant dense<0.000000e+00> : vector<64x16xf32>
    %5 = tpu.matmul %4, %1, %cst {dimension_numbers = #tpu.dot_dimension_numbers<[1], [1], [0], [0], [0, 0, 1, 0], [], []>} : vector<64x64xf32>, vector<16x64xf32>, vector<64x16xf32> -> vector<64x16xf32>
    %c0_7 = arith.constant 0 : index
    %c0_8 = arith.constant 0 : index
    %6 = vector.load %arg4[%c0_7, %c0_8] : memref<64x1xf32, #tpu.memory_space<vmem>>, vector<64x1xf32>
    %7 = vector.broadcast %6 : vector<64x1xf32> to vector<64x16xf32>
    %8 = arith.addf %5, %7 : vector<64x16xf32>
    %c0_9 = arith.constant 0 : index
    %c0_10 = arith.constant 0 : index
    %9 = vector.load %arg5[%c0_9, %c0_10] : memref<128x64xf32, #tpu.memory_space<vmem>>, vector<128x64xf32>
    %cst_11 = arith.constant dense<0.000000e+00> : vector<128x32xf32>
    %10 = tpu.matmul %9, %3, %cst_11 {dimension_numbers = #tpu.dot_dimension_numbers<[1], [1], [0], [0], [0, 0, 1, 0], [], []>} : vector<128x64xf32>, vector<32x64xf32>, vector<128x32xf32> -> vector<128x32xf32>
    %c0_12 = arith.constant 0 : index
    %c0_13 = arith.constant 0 : index
    %11 = vector.load %arg6[%c0_12, %c0_13] : memref<128x1xf32, #tpu.memory_space<vmem>>, vector<128x1xf32>
    %12 = vector.broadcast %11 : vector<128x1xf32> to vector<128x32xf32>
    %13 = arith.addf %10, %12 : vector<128x32xf32>
    %14 = vector.shape_cast %8 : vector<64x16xf32> to vector<8x8x16xf32>
    %15 = vector.extract_strided_slice %13 {offsets = [0, 0], sizes = [64, 32], strides = [1, 1]} : vector<128x32xf32> to vector<64x32xf32>
    %16 = vector.shape_cast %15 : vector<64x32xf32> to vector<8x8x32xf32>
    %17 = vector.extract_strided_slice %13 {offsets = [64, 0], sizes = [64, 32], strides = [1, 1]} : vector<128x32xf32> to vector<64x32xf32>
    %18 = vector.shape_cast %17 : vector<64x32xf32> to vector<8x8x32xf32>
    %19 = tpu.transpose %14, [0, 2, 1] : vector<8x8x16xf32> -> vector<8x16x8xf32>
    "tpu.trace_start"() <{level = 10 : i32, message = "hqd,hdk->hqk"}> : () -> ()
    %cst_14 = arith.constant dense<0.000000e+00> : vector<8x16x32xf32>
    %20 = tpu.matmul %19, %16, %cst_14 {dimension_numbers = #tpu.dot_dimension_numbers<[2], [1], [1], [2], [0, 0, 0, 1, 1, 2], [0], [0]>} : vector<8x16x8xf32>, vector<8x8x32xf32>, vector<8x16x32xf32> -> vector<8x16x32xf32>
    "tpu.trace_stop"() : () -> ()
    %cst_15 = arith.constant 0.353553385 : f32
    %21 = vector.broadcast %cst_15 : f32 to vector<8x16x32xf32>
    %22 = arith.mulf %20, %21 : vector<8x16x32xf32>
    %c0_16 = arith.constant 0 : index
    %c0_17 = arith.constant 0 : index
    %c0_18 = arith.constant 0 : index
    %23 = vector.load %arg9[%c0_16, %c0_17, %c0_18] : memref<8x1x1xf32, #tpu.memory_space<vmem>>, vector<8x1x1xf32>
    %24 = vector.broadcast %23 : vector<8x1x1xf32> to vector<8x16x32xf32>
    %25 = arith.mulf %22, %24 : vector<8x16x32xf32>
    %26 = math.sin %25 : vector<8x16x32xf32>
    %27 = arith.addf %22, %26 : vector<8x16x32xf32>
    %c0_19 = arith.constant 0 : index
    %c0_20 = arith.constant 0 : index
    %28 = vector.load %arg10[%c0_19, %c0_20] : memref<16x32xf32, #tpu.memory_space<vmem>>, vector<16x32xf32>
    %29 = vector.shape_cast %28 : vector<16x32xf32> to vector<1x16x32xf32>
    %30 = vector.broadcast %29 : vector<1x16x32xf32> to vector<8x16x32xf32>
    %31 = arith.addf %27, %30 : vector<8x16x32xf32>
    %cst_21 = arith.constant dense<0xFF800000> : vector<8x16xf32>
    %32 = vector.multi_reduction <maximumf>, %31, %cst_21 [2] : vector<8x16x32xf32> to vector<8x16xf32>
    %33 = vector.shape_cast %32 : vector<8x16xf32> to vector<8x16x1xf32>
    %34 = vector.broadcast %33 : vector<8x16x1xf32> to vector<8x16x32xf32>
    %35 = arith.subf %31, %34 : vector<8x16x32xf32>
    %36 = math.exp %35 : vector<8x16x32xf32>
    %cst_22 = arith.constant dense<0.000000e+00> : vector<8x16xf32>
    %37 = vector.multi_reduction <add>, %36, %cst_22 [2] : vector<8x16x32xf32> to vector<8x16xf32>
    %38 = tpu.reciprocal %37 : vector<8x16xf32> -> vector<8x16xf32>
    "tpu.trace_start"() <{level = 10 : i32, message = "hdk,hqk->hdq"}> : () -> ()
    %cst_23 = arith.constant dense<0.000000e+00> : vector<8x8x16xf32>
    %39 = tpu.matmul %18, %36, %cst_23 {dimension_numbers = #tpu.dot_dimension_numbers<[2], [2], [1], [1], [0, 0, 0, 1, 1, 1], [0], [0]>} : vector<8x8x32xf32>, vector<8x16x32xf32>, vector<8x8x16xf32> -> vector<8x8x16xf32>
    "tpu.trace_stop"() : () -> ()
    %40 = vector.shape_cast %38 : vector<8x16xf32> to vector<8x1x16xf32>
    %41 = vector.broadcast %40 : vector<8x1x16xf32> to vector<8x8x16xf32>
    %42 = arith.mulf %39, %41 : vector<8x8x16xf32>
    %43 = vector.shape_cast %42 : vector<8x8x16xf32> to vector<64x16xf32>
    %c0_24 = arith.constant 0 : index
    %c0_25 = arith.constant 0 : index
    %44 = vector.load %arg7[%c0_24, %c0_25] : memref<64x64xf32, #tpu.memory_space<vmem>>, vector<64x64xf32>
    %cst_26 = arith.constant dense<0.000000e+00> : vector<64x16xf32>
    %45 = tpu.matmul %44, %43, %cst_26 {dimension_numbers = #tpu.dot_dimension_numbers<[1], [0], [0], [1], [0, 0, 1, 1], [], []>} : vector<64x64xf32>, vector<64x16xf32>, vector<64x16xf32> -> vector<64x16xf32>
    %c0_27 = arith.constant 0 : index
    %c0_28 = arith.constant 0 : index
    %46 = vector.load %arg8[%c0_27, %c0_28] : memref<64x1xf32, #tpu.memory_space<vmem>>, vector<64x1xf32>
    %47 = vector.broadcast %46 : vector<64x1xf32> to vector<64x16xf32>
    %48 = arith.addf %45, %47 : vector<64x16xf32>
    %c0_29 = arith.constant 0 : index
    %c0_30 = arith.constant 0 : index
    %c0_31 = arith.constant 0 : index
    %49 = vector.load %arg11[%c0_29, %c0_30, %c0_31] : memref<1x64x16xf32, #tpu.memory_space<vmem>>, vector<1x64x16xf32>
    %50 = vector.shape_cast %49 : vector<1x64x16xf32> to vector<64x16xf32>
    %51 = vector.shape_cast %48 : vector<64x16xf32> to vector<1x64x16xf32>
    tpu.vector_store %arg11[%c0_29, %c0_30, %c0_31], %51 {strides = array<i32>} : memref<1x64x16xf32, #tpu.memory_space<vmem>>, vector<1x64x16xf32>,
    return
  }
  func.func @transform_0(%arg0: i32) -> (i32, i32, i32) {
    %c0_i32 = arith.constant 0 : i32
    %c0_i32_0 = arith.constant 0 : i32
    %c0_i32_1 = arith.constant 0 : i32
    return %arg0, %c0_i32, %c0_i32_0 : i32, i32, i32
  }
  func.func @transform_1(%arg0: i32) -> (i32, i32, i32) {
    %c0_i32 = arith.constant 0 : i32
    %c0_i32_0 = arith.constant 0 : i32
    %c0_i32_1 = arith.constant 0 : i32
    return %arg0, %c0_i32, %c0_i32_0 : i32, i32, i32
  }
  func.func @transform_2(%arg0: i32) -> (i32, i32) {
    %c0_i32 = arith.constant 0 : i32
    %c0_i32_0 = arith.constant 0 : i32
    %c0_i32_1 = arith.constant 0 : i32
    return %c0_i32, %c0_i32_0 : i32, i32
  }
  func.func @transform_3(%arg0: i32) -> (i32, i32) {
    %c0_i32 = arith.constant 0 : i32
    %c0_i32_0 = arith.constant 0 : i32
    %c0_i32_1 = arith.constant 0 : i32
    return %c0_i32, %c0_i32_0 : i32, i32
  }
  func.func @transform_4(%arg0: i32) -> (i32, i32) {
    %c0_i32 = arith.constant 0 : i32
    %c0_i32_0 = arith.constant 0 : i32
    %c0_i32_1 = arith.constant 0 : i32
    return %c0_i32, %c0_i32_0 : i32, i32
  }
  func.func @transform_5(%arg0: i32) -> (i32, i32) {
    %c0_i32 = arith.constant 0 : i32
    %c0_i32_0 = arith.constant 0 : i32
    %c0_i32_1 = arith.constant 0 : i32
    return %c0_i32, %c0_i32_0 : i32, i32
  }
  func.func @transform_6(%arg0: i32) -> (i32, i32) {
    %c0_i32 = arith.constant 0 : i32
    %c0_i32_0 = arith.constant 0 : i32
    %c0_i32_1 = arith.constant 0 : i32
    return %c0_i32, %c0_i32_0 : i32, i32
  }
  func.func @transform_7(%arg0: i32) -> (i32, i32) {
    %c0_i32 = arith.constant 0 : i32
    %c0_i32_0 = arith.constant 0 : i32
    %c0_i32_1 = arith.constant 0 : i32
    return %c0_i32, %c0_i32_0 : i32, i32
  }
  func.func @transform_8(%arg0: i32) -> (i32, i32, i32) {
    %c0_i32 = arith.constant 0 : i32
    %c0_i32_0 = arith.constant 0 : i32
    %c0_i32_1 = arith.constant 0 : i32
    %c0_i32_2 = arith.constant 0 : i32
    return %c0_i32, %c0_i32_0, %c0_i32_1 : i32, i32, i32
  }
  func.func @transform_9(%arg0: i32) -> (i32, i32) {
    %c0_i32 = arith.constant 0 : i32
    %c0_i32_0 = arith.constant 0 : i32
    %c0_i32_1 = arith.constant 0 : i32
    return %c0_i32, %c0_i32_0 : i32, i32
  }
  func.func @transform_10(%arg0: i32) -> (i32, i32, i32) {
    %c0_i32 = arith.constant 0 : i32
    %c0_i32_0 = arith.constant 0 : i32
    %c0_i32_1 = arith.constant 0 : i32
    return %arg0, %c0_i32, %c0_i32_0 : i32, i32, i32
  }
}

</mosaic_0001>

<llo_original>
// kernel: tpu_custom_call.1
$region0: #{tpu_custom_call.1}
  #allocation0 [shape = 'u32[]', space=smem, size = 0x4, offset = 0x4, fixed_abs, tag = 'smem constant byte address 0x4 - core index']
  #allocation1 [shape = 'u32[144,128]{1,0:T(1,128)}', space=vmem, size = 0x12000, scoped, tag = 'internal scratch']
  %s0 = inlined_call_operand.vmem [shape: f32[2,8,64], index: 0, kind: input, shape index: {}]
  %s1 = inlined_call_operand.vmem [shape: f32[2,16,64], index: 1, kind: input, shape index: {}]
  %s2 = inlined_call_operand.vmem [shape: f32[64,64], index: 2, kind: input, shape index: {}]
  %s3 = inlined_call_operand.vmem [shape: f32[64,1], index: 3, kind: input, shape index: {}]
  %s4 = inlined_call_operand.vmem [shape: f32[128,64], index: 4, kind: input, shape index: {}]
  %s5 = inlined_call_operand.vmem [shape: f32[128,1], index: 5, kind: input, shape index: {}]
  %s6 = inlined_call_operand.vmem [shape: f32[64,64], index: 6, kind: input, shape index: {}]
  %s7 = inlined_call_operand.vmem [shape: f32[64,1], index: 7, kind: input, shape index: {}]
  %s8 = inlined_call_operand.vmem [shape: f32[8,1,1], index: 8, kind: input, shape index: {}]
  %s9 = inlined_call_operand.vmem [shape: f32[16,32], index: 9, kind: input, shape index: {}]
  %s10 = inlined_call_operand.vmem [shape: f32[1,64,16], index: 10, kind: output, shape index: {}]
  %s11 = sld [smem:[#allocation0]]
  $region50: #{tpu_custom_call.1} parent=0
    _
  %s13 = ssub.s32 1, %s11
  %s14 = scalar_select 0, %s13, %s11
  // Predicated region
  $region2: #{tpu_custom_call.1} parent=0 // pred_check
    _
  $region3: #{tpu_custom_call.1} parent=0 // pred_check_branch
    %16 = sbr.rel (0) target = $region5
  $region4: #{tpu_custom_call.1} parent=0 // pred_region
    _
  $region5: #{tpu_custom_call.1} parent=0 // pred_fallthru
    _
  // Predicated region
  $region6: #{tpu_custom_call.1} parent=0 // pred_check
    _
  $region7: #{tpu_custom_call.1} parent=0 // pred_check_branch
    %18 = sbr.rel (0) target = $region9
  $region8: #{tpu_custom_call.1} parent=0 // pred_region
    _
  $region9: #{tpu_custom_call.1} parent=0 // pred_fallthru
    _
  // Predicated region
  $region10: #{tpu_custom_call.1} parent=0 // pred_check
    _
  $region11: #{tpu_custom_call.1} parent=0 // pred_check_branch
    %20 = sbr.rel (0) target = $region13
  $region12: #{tpu_custom_call.1} parent=0 // pred_region
    _
  $region13: #{tpu_custom_call.1} parent=0 // pred_fallthru
    _
  // Predicated region
  $region14: #{tpu_custom_call.1} parent=0 // pred_check
    _
  $region15: #{tpu_custom_call.1} parent=0 // pred_check_branch
    %22 = sbr.rel (0) target = $region17
  $region16: #{tpu_custom_call.1} parent=0 // pred_region
    _
  $region17: #{tpu_custom_call.1} parent=0 // pred_fallthru
    _
  // Predicated region
  $region18: #{tpu_custom_call.1} parent=0 // pred_check
    _
  $region19: #{tpu_custom_call.1} parent=0 // pred_check_branch
    %24 = sbr.rel (0) target = $region21
  $region20: #{tpu_custom_call.1} parent=0 // pred_region
    _
  $region21: #{tpu_custom_call.1} parent=0 // pred_fallthru
    _
  // Predicated region
  $region22: #{tpu_custom_call.1} parent=0 // pred_check
    _
  $region23: #{tpu_custom_call.1} parent=0 // pred_check_branch
    %26 = sbr.rel (0) target = $region25
  $region24: #{tpu_custom_call.1} parent=0 // pred_region
    _
  $region25: #{tpu_custom_call.1} parent=0 // pred_fallthru
    _
  // Predicated region
  $region26: #{tpu_custom_call.1} parent=0 // pred_check
    _
  $region27: #{tpu_custom_call.1} parent=0 // pred_check_branch
    %28 = sbr.rel (0) target = $region29
  $region28: #{tpu_custom_call.1} parent=0 // pred_region
    _
  $region29: #{tpu_custom_call.1} parent=0 // pred_fallthru
    _
  // Predicated region
  $region30: #{tpu_custom_call.1} parent=0 // pred_check
    _
  $region31: #{tpu_custom_call.1} parent=0 // pred_check_branch
    %30 = sbr.rel (0) target = $region33
  $region32: #{tpu_custom_call.1} parent=0 // pred_region
    _
  $region33: #{tpu_custom_call.1} parent=0 // pred_fallthru
    _
  // Predicated region
  $region34: #{tpu_custom_call.1} parent=0 // pred_check
    _
  $region35: #{tpu_custom_call.1} parent=0 // pred_check_branch
    %32 = sbr.rel (0) target = $region37
  $region36: #{tpu_custom_call.1} parent=0 // pred_region
    _
  $region37: #{tpu_custom_call.1} parent=0 // pred_fallthru
    _
  // Predicated region
  $region38: #{tpu_custom_call.1} parent=0 // pred_check
    _
  $region39: #{tpu_custom_call.1} parent=0 // pred_check_branch
    %34 = sbr.rel (0) target = $region41
  $region40: #{tpu_custom_call.1} parent=0 // pred_region
    _
  $region41: #{tpu_custom_call.1} parent=0 // pred_fallthru
    _
  %v35 = vld [vmem:[%s0] sm:$0xff]
  %v36 = vld [vmem:[%s0 + $0x8] sm:$0xff]
  %v37 = vld [vmem:[%s1] sm:$0xff]
  %v38 = vld [vmem:[%s1 + $0x8] sm:$0xff]
  %v39 = vld [vmem:[%s1 + $0x10] sm:$0xff]
  %v40 = vld [vmem:[%s1 + $0x18] sm:$0xff]
  %v41 = vld [vmem:[%s2] sm:$0xff]
  %v42 = vld [vmem:[%s2 + $0x8] sm:$0xff]
  %v43 = vld [vmem:[%s2 + $0x10] sm:$0xff]
  %v44 = vld [vmem:[%s2 + $0x18] sm:$0xff]
  %v45 = vld [vmem:[%s2 + $0x20] sm:$0xff]
  %v46 = vld [vmem:[%s2 + $0x28] sm:$0xff]
  %v47 = vld [vmem:[%s2 + $0x30] sm:$0xff]
  %v48 = vld [vmem:[%s2 + $0x38] sm:$0xff]
  %v49 = vld [vmem:[%s3] sm:$0xff]
  %v50 = vld [vmem:[%s3 + $0x8] sm:$0xff]
  %v51 = vld [vmem:[%s3 + $0x10] sm:$0xff]
  %v52 = vld [vmem:[%s3 + $0x18] sm:$0xff]
  %v53 = vld [vmem:[%s3 + $0x20] sm:$0xff]
  %v54 = vld [vmem:[%s3 + $0x28] sm:$0xff]
  %v55 = vld [vmem:[%s3 + $0x30] sm:$0xff]
  %v56 = vld [vmem:[%s3 + $0x38] sm:$0xff]
  %58 = vset.pattern.permute.xlu0 0
  %59 = vperm.xlu0 %58, %v49
  %v60 = vpop.permute.xlu0 %59
  %63 = vset.pattern.permute.xlu0 0
  %64 = vperm.xlu0 %63, %v50
  %v65 = vpop.permute.xlu0 %64
  %68 = vset.pattern.permute.xlu0 0
  %69 = vperm.xlu0 %68, %v51
  %v70 = vpop.permute.xlu0 %69
  %73 = vset.pattern.permute.xlu0 0
  %74 = vperm.xlu0 %73, %v52
  %v75 = vpop.permute.xlu0 %74
  %78 = vset.pattern.permute.xlu0 0
  %79 = vperm.xlu0 %78, %v53
  %v80 = vpop.permute.xlu0 %79
  %83 = vset.pattern.permute.xlu0 0
  %84 = vperm.xlu0 %83, %v54
  %v85 = vpop.permute.xlu0 %84
  %88 = vset.pattern.permute.xlu0 0
  %89 = vperm.xlu0 %88, %v55
  %v90 = vpop.permute.xlu0 %89
  %93 = vset.pattern.permute.xlu0 0
  %94 = vperm.xlu0 %93, %v56
  %v95 = vpop.permute.xlu0 %94
  %vm97 = vcmask 523264
  %v99 = vsel %vm97, %v41, 0
  %v102 = vsel %vm97, %v42, 0
  %v105 = vsel %vm97, %v43, 0
  %v108 = vsel %vm97, %v44, 0
  %v111 = vsel %vm97, %v45, 0
  %v114 = vsel %vm97, %v46, 0
  %v117 = vsel %vm97, %v47, 0
  %v120 = vsel %vm97, %v48, 0
  %v123 = vsel %vm97, %v35, 0
  %v126 = vsel %vm97, %v36, 0
  %128 = vmatprep.subr.mxu0 0.0
  %129 = vmatpush1.xpose.msra.mxu0 %v123
  %130 = vmatprep.subr.mxu0 0.0
  %131 = vmatpush1.xpose.msra.mxu0 %v126
  %132 = vmatprep.subr.mxu0 0.0
  %133 = vmatpush1.xpose.msra.mxu0 0.0
  %134 = vmatprep.subr.mxu0 0.0
  %135 = vmatpush1.xpose.msra.mxu0 0.0
  %136 = vmatprep.subr.mxu0 0.0
  %137 = vmatpush1.xpose.msra.mxu0 0.0
  %138 = vmatprep.subr.mxu0 0.0
  %139 = vmatpush1.xpose.msra.mxu0 0.0
  %140 = vmatprep.subr.mxu0 0.0
  %141 = vmatpush1.xpose.msra.mxu0 0.0
  %142 = vmatprep.subr.mxu0 0.0
  %143 = vmatpush1.xpose.msra.mxu0 0.0
  %144 = vmatprep.subr.mxu0 0.0
  %145 = vmatpush1.xpose.msra.mxu0 0.0
  %146 = vmatprep.subr.mxu0 0.0
  %147 = vmatpush1.xpose.msra.mxu0 0.0
  %148 = vmatprep.subr.mxu0 0.0
  %149 = vmatpush1.xpose.msra.mxu0 0.0
  %150 = vmatprep.subr.mxu0 0.0
  %151 = vmatpush1.xpose.msra.mxu0 0.0
  %152 = vmatprep.subr.mxu0 0.0
  %153 = vmatpush1.xpose.msra.mxu0 0.0
  %154 = vmatprep.subr.mxu0 0.0
  %155 = vmatpush1.xpose.msra.mxu0 0.0
  %156 = vmatprep.subr.mxu0 0.0
  %157 = vmatpush1.xpose.msra.mxu0 0.0
  %158 = vmatprep.subr.mxu0 0.0
  %159 = vmatpush1.xpose.msra.mxu0 0.0
  %160 = vmatprep.subr.mxu0 0.0
  %161 = vmatpush1.xpose.msra.mxu0 0.0
  %162 = vmatprep.subr.mxu0 0.0
  %163 = vmatpush1.xpose.msra.mxu0 0.0
  %164 = vmatprep.subr.mxu0 0.0
  %165 = vmatpush1.xpose.msra.mxu0 0.0
  %166 = vmatprep.subr.mxu0 0.0
  %167 = vmatpush1.xpose.msra.mxu0 0.0
  %168 = vmatprep.subr.mxu0 0.0
  %169 = vmatpush1.xpose.msra.mxu0 0.0
  %170 = vmatprep.subr.mxu0 0.0
  %171 = vmatpush1.xpose.msra.mxu0 0.0
  %172 = vmatprep.subr.mxu0 0.0
  %173 = vmatpush1.xpose.msra.mxu0 0.0
  %174 = vmatprep.subr.mxu0 0.0
  %175 = vmatpush1.xpose.msra.mxu0 0.0
  %176 = vmatprep.subr.mxu0 0.0
  %177 = vmatpush1.xpose.msra.mxu0 0.0
  %178 = vmatprep.subr.mxu0 0.0
  %179 = vmatpush1.xpose.msra.mxu0 0.0
  %180 = vmatprep.subr.mxu0 0.0
  %181 = vmatpush1.xpose.msra.mxu0 0.0
  %182 = vmatprep.subr.mxu0 0.0
  %183 = vmatpush1.xpose.msra.mxu0 0.0
  %184 = vmatprep.subr.mxu0 0.0
  %185 = vmatpush1.xpose.msra.mxu0 0.0
  %186 = vmatprep.subr.mxu0 0.0
  %187 = vmatpush1.xpose.msra.mxu0 0.0
  %188 = vmatprep.subr.mxu0 0.0
  %189 = vmatpush1.xpose.msra.mxu0 0.0
  %190 = vmatprep.subr.mxu0 0.0
  %191 = vmatpush1.xpose.msra.mxu0 0.0
  %192 = vmatprep.mubr.f32.mxu0 0.0
  %193 = vmatmul.mubr.f32.gmra.mrb[0].mxu0 %v99
  %v194 = vpop.f32.mrb[0].mxu0
  %v195 = vadd.f32 %v60, %v194
  %v196 = vpop.f32.mrb[0].mxu0
  %197 = vmatprep.mubr.f32.mxu0 0.0
  %198 = vmatmul.mubr.f32.gmra.mrb[0].mxu0 %v102
  %v199 = vpop.f32.mrb[0].mxu0
  %v200 = vadd.f32 %v65, %v199
  %v201 = vpop.f32.mrb[0].mxu0
  %202 = vmatprep.mubr.f32.mxu0 0.0
  %203 = vmatmul.mubr.f32.gmra.mrb[0].mxu0 %v105
  %v204 = vpop.f32.mrb[0].mxu0
  %v205 = vadd.f32 %v70, %v204
  %v206 = vpop.f32.mrb[0].mxu0
  %207 = vmatprep.mubr.f32.mxu0 0.0
  %208 = vmatmul.mubr.f32.gmra.mrb[0].mxu0 %v108
  %v209 = vpop.f32.mrb[0].mxu0
  %v210 = vadd.f32 %v75, %v209
  %v211 = vpop.f32.mrb[0].mxu0
  %212 = vmatprep.mubr.f32.mxu0 0.0
  %213 = vmatmul.mubr.f32.gmra.mrb[0].mxu0 %v111
  %v214 = vpop.f32.mrb[0].mxu0
  %v215 = vadd.f32 %v80, %v214
  %v216 = vpop.f32.mrb[0].mxu0
  %217 = vmatprep.mubr.f32.mxu0 0.0
  %218 = vmatmul.mubr.f32.gmra.mrb[0].mxu0 %v114
  %v219 = vpop.f32.mrb[0].mxu0
  %v220 = vadd.f32 %v85, %v219
  %v221 = vpop.f32.mrb[0].mxu0
  %222 = vmatprep.mubr.f32.mxu0 0.0
  %223 = vmatmul.mubr.f32.gmra.mrb[0].mxu0 %v117
  %v224 = vpop.f32.mrb[0].mxu0
  %v225 = vadd.f32 %v90, %v224
  %v226 = vpop.f32.mrb[0].mxu0
  %227 = vmatprep.mubr.f32.mxu0 0.0
  %228 = vmatmul.mubr.f32.gmra.mrb[0].mxu0 %v120
  %v229 = vpop.f32.mrb[0].mxu0
  %v230 = vadd.f32 %v95, %v229
  %v231 = vpop.f32.mrb[0].mxu0
  %232 = vdwg.mxu0
  %v233 = vld [vmem:[%s4] sm:$0xff]
  %v234 = vld [vmem:[%s4 + $0x8] sm:$0xff]
  %v235 = vld [vmem:[%s4 + $0x10] sm:$0xff]
  %v236 = vld [vmem:[%s4 + $0x18] sm:$0xff]
  %v237 = vld [vmem:[%s4 + $0x20] sm:$0xff]
  %v238 = vld [vmem:[%s4 + $0x28] sm:$0xff]
  %v239 = vld [vmem:[%s4 + $0x30] sm:$0xff]
  %v240 = vld [vmem:[%s4 + $0x38] sm:$0xff]
  %v241 = vld [vmem:[%s4 + $0x40] sm:$0xff]
  %v242 = vld [vmem:[%s4 + $0x48] sm:$0xff]
  %v243 = vld [vmem:[%s4 + $0x50] sm:$0xff]
  %v244 = vld [vmem:[%s4 + $0x58] sm:$0xff]
  %v245 = vld [vmem:[%s4 + $0x60] sm:$0xff]
  %v246 = vld [vmem:[%s4 + $0x68] sm:$0xff]
  %v247 = vld [vmem:[%s4 + $0x70] sm:$0xff]
  %v248 = vld [vmem:[%s4 + $0x78] sm:$0xff]
  %v249 = vld [vmem:[%s5] sm:$0xff]
  %v250 = vld [vmem:[%s5 + $0x8] sm:$0xff]
  %v251 = vld [vmem:[%s5 + $0x10] sm:$0xff]
  %v252 = vld [vmem:[%s5 + $0x18] sm:$0xff]
  %v253 = vld [vmem:[%s5 + $0x20] sm:$0xff]
  %v254 = vld [vmem:[%s5 + $0x28] sm:$0xff]
  %v255 = vld [vmem:[%s5 + $0x30] sm:$0xff]
  %v256 = vld [vmem:[%s5 + $0x38] sm:$0xff]
  %v257 = vld [vmem:[%s5 + $0x40] sm:$0xff]
  %v258 = vld [vmem:[%s5 + $0x48] sm:$0xff]
  %v259 = vld [vmem:[%s5 + $0x50] sm:$0xff]
  %v260 = vld [vmem:[%s5 + $0x58] sm:$0xff]
  %v261 = vld [vmem:[%s5 + $0x60] sm:$0xff]
  %v262 = vld [vmem:[%s5 + $0x68] sm:$0xff]
  %v263 = vld [vmem:[%s5 + $0x70] sm:$0xff]
  %v264 = vld [vmem:[%s5 + $0x78] sm:$0xff]
  %266 = vset.pattern.permute.xlu0 0
  %267 = vperm.xlu0 %266, %v249
  %v268 = vpop.permute.xlu0 %267
  %271 = vset.pattern.permute.xlu0 0
  %272 = vperm.xlu0 %271, %v250
  %v273 = vpop.permute.xlu0 %272
  %276 = vset.pattern.permute.xlu0 0
  %277 = vperm.xlu0 %276, %v251
  %v278 = vpop.permute.xlu0 %277
  %281 = vset.pattern.permute.xlu0 0
  %282 = vperm.xlu0 %281, %v252
  %v283 = vpop.permute.xlu0 %282
  %286 = vset.pattern.permute.xlu0 0
  %287 = vperm.xlu0 %286, %v253
  %v288 = vpop.permute.xlu0 %287
  %291 = vset.pattern.permute.xlu0 0
  %292 = vperm.xlu0 %291, %v254
  %v293 = vpop.permute.xlu0 %292
  %296 = vset.pattern.permute.xlu0 0
  %297 = vperm.xlu0 %296, %v255
  %v298 = vpop.permute.xlu0 %297
  %301 = vset.pattern.permute.xlu0 0
  %302 = vperm.xlu0 %301, %v256
  %v303 = vpop.permute.xlu0 %302
  %306 = vset.pattern.permute.xlu0 0
  %307 = vperm.xlu0 %306, %v257
  %v308 = vpop.permute.xlu0 %307
  %311 = vset.pattern.permute.xlu0 0
  %312 = vperm.xlu0 %311, %v258
  %v313 = vpop.permute.xlu0 %312
  %316 = vset.pattern.permute.xlu0 0
  %317 = vperm.xlu0 %316, %v259
  %v318 = vpop.permute.xlu0 %317
  %321 = vset.pattern.permute.xlu0 0
  %322 = vperm.xlu0 %321, %v260
  %v323 = vpop.permute.xlu0 %322
  %326 = vset.pattern.permute.xlu0 0
  %327 = vperm.xlu0 %326, %v261
  %v328 = vpop.permute.xlu0 %327
  %331 = vset.pattern.permute.xlu0 0
  %332 = vperm.xlu0 %331, %v262
  %v333 = vpop.permute.xlu0 %332
  %336 = vset.pattern.permute.xlu0 0
  %337 = vperm.xlu0 %336, %v263
  %v338 = vpop.permute.xlu0 %337
  %341 = vset.pattern.permute.xlu0 0
  %342 = vperm.xlu0 %341, %v264
  %v343 = vpop.permute.xlu0 %342
  %v346 = vsel %vm97, %v233, 0
  %v349 = vsel %vm97, %v234, 0
  %v352 = vsel %vm97, %v235, 0
  %v355 = vsel %vm97, %v236, 0
  %v358 = vsel %vm97, %v237, 0
  %v361 = vsel %vm97, %v238, 0
  %v364 = vsel %vm97, %v239, 0
  %v367 = vsel %vm97, %v240, 0
  %v370 = vsel %vm97, %v241, 0
  %v373 = vsel %vm97, %v242, 0
  %v376 = vsel %vm97, %v243, 0
  %v379 = vsel %vm97, %v244, 0
  %v382 = vsel %vm97, %v245, 0
  %v385 = vsel %vm97, %v246, 0
  %v388 = vsel %vm97, %v247, 0
  %v391 = vsel %vm97, %v248, 0
  %v394 = vsel %vm97, %v37, 0
  %v397 = vsel %vm97, %v38, 0
  %v400 = vsel %vm97, %v39, 0
  %v403 = vsel %vm97, %v40, 0
  %405 = vmatprep.subr.mxu0 0.0
  %406 = vmatpush1.xpose.msra.mxu0 %v394
  %407 = vmatprep.subr.mxu0 0.0
  %408 = vmatpush1.xpose.msra.mxu0 %v397
  %409 = vmatprep.subr.mxu0 0.0
  %410 = vmatpush1.xpose.msra.mxu0 %v400
  %411 = vmatprep.subr.mxu0 0.0
  %412 = vmatpush1.xpose.msra.mxu0 %v403
  %413 = vmatprep.subr.mxu0 0.0
  %414 = vmatpush1.xpose.msra.mxu0 0.0
  %415 = vmatprep.subr.mxu0 0.0
  %416 = vmatpush1.xpose.msra.mxu0 0.0
  %417 = vmatprep.subr.mxu0 0.0
  %418 = vmatpush1.xpose.msra.mxu0 0.0
  %419 = vmatprep.subr.mxu0 0.0
  %420 = vmatpush1.xpose.msra.mxu0 0.0
  %421 = vmatprep.subr.mxu0 0.0
  %422 = vmatpush1.xpose.msra.mxu0 0.0
  %423 = vmatprep.subr.mxu0 0.0
  %424 = vmatpush1.xpose.msra.mxu0 0.0
  %425 = vmatprep.subr.mxu0 0.0
  %426 = vmatpush1.xpose.msra.mxu0 0.0
  %427 = vmatprep.subr.mxu0 0.0
  %428 = vmatpush1.xpose.msra.mxu0 0.0
  %429 = vmatprep.subr.mxu0 0.0
  %430 = vmatpush1.xpose.msra.mxu0 0.0
  %431 = vmatprep.subr.mxu0 0.0
  %432 = vmatpush1.xpose.msra.mxu0 0.0
  %433 = vmatprep.subr.mxu0 0.0
  %434 = vmatpush1.xpose.msra.mxu0 0.0
  %435 = vmatprep.subr.mxu0 0.0
  %436 = vmatpush1.xpose.msra.mxu0 0.0
  %437 = vmatprep.subr.mxu0 0.0
  %438 = vmatpush1.xpose.msra.mxu0 0.0
  %439 = vmatprep.subr.mxu0 0.0
  %440 = vmatpush1.xpose.msra.mxu0 0.0
  %441 = vmatprep.subr.mxu0 0.0
  %442 = vmatpush1.xpose.msra.mxu0 0.0
  %443 = vmatprep.subr.mxu0 0.0
  %444 = vmatpush1.xpose.msra.mxu0 0.0
  %445 = vmatprep.subr.mxu0 0.0
  %446 = vmatpush1.xpose.msra.mxu0 0.0
  %447 = vmatprep.subr.mxu0 0.0
  %448 = vmatpush1.xpose.msra.mxu0 0.0
  %449 = vmatprep.subr.mxu0 0.0
  %450 = vmatpush1.xpose.msra.mxu0 0.0
  %451 = vmatprep.subr.mxu0 0.0
  %452 = vmatpush1.xpose.msra.mxu0 0.0
  %453 = vmatprep.subr.mxu0 0.0
  %454 = vmatpush1.xpose.msra.mxu0 0.0
  %455 = vmatprep.subr.mxu0 0.0
  %456 = vmatpush1.xpose.msra.mxu0 0.0
  %457 = vmatprep.subr.mxu0 0.0
  %458 = vmatpush1.xpose.msra.mxu0 0.0
  %459 = vmatprep.subr.mxu0 0.0
  %460 = vmatpush1.xpose.msra.mxu0 0.0
  %461 = vmatprep.subr.mxu0 0.0
  %462 = vmatpush1.xpose.msra.mxu0 0.0
  %463 = vmatprep.subr.mxu0 0.0
  %464 = vmatpush1.xpose.msra.mxu0 0.0
  %465 = vmatprep.subr.mxu0 0.0
  %466 = vmatpush1.xpose.msra.mxu0 0.0
  %467 = vmatprep.subr.mxu0 0.0
  %468 = vmatpush1.xpose.msra.mxu0 0.0
  %469 = vmatprep.mubr.f32.mxu0 0.0
  %470 = vmatmul.mubr.f32.gmra.mrb[0].mxu0 %v346
  %v471 = vpop.f32.mrb[0].mxu0
  %v472 = vadd.f32 %v268, %v471
  %v473 = vpop.f32.mrb[0].mxu0
  %474 = vmatprep.mubr.f32.mxu0 0.0
  %475 = vmatmul.mubr.f32.gmra.mrb[0].mxu0 %v349
  %v476 = vpop.f32.mrb[0].mxu0
  %v477 = vadd.f32 %v273, %v476
  %v478 = vpop.f32.mrb[0].mxu0
  %479 = vmatprep.mubr.f32.mxu0 0.0
  %480 = vmatmul.mubr.f32.gmra.mrb[0].mxu0 %v352
  %v481 = vpop.f32.mrb[0].mxu0
  %v482 = vadd.f32 %v278, %v481
  %v483 = vpop.f32.mrb[0].mxu0
  %484 = vmatprep.mubr.f32.mxu0 0.0
  %485 = vmatmul.mubr.f32.gmra.mrb[0].mxu0 %v355
  %v486 = vpop.f32.mrb[0].mxu0
  %v487 = vadd.f32 %v283, %v486
  %v488 = vpop.f32.mrb[0].mxu0
  %489 = vmatprep.mubr.f32.mxu0 0.0
  %490 = vmatmul.mubr.f32.gmra.mrb[0].mxu0 %v358
  %v491 = vpop.f32.mrb[0].mxu0
  %v492 = vadd.f32 %v288, %v491
  %v493 = vpop.f32.mrb[0].mxu0
  %494 = vmatprep.mubr.f32.mxu0 0.0
  %495 = vmatmul.mubr.f32.gmra.mrb[0].mxu0 %v361
  %v496 = vpop.f32.mrb[0].mxu0
  %v497 = vadd.f32 %v293, %v496
  %v498 = vpop.f32.mrb[0].mxu0
  %499 = vmatprep.mubr.f32.mxu0 0.0
  %500 = vmatmul.mubr.f32.gmra.mrb[0].mxu0 %v364
  %v501 = vpop.f32.mrb[0].mxu0
  %v502 = vadd.f32 %v298, %v501
  %v503 = vpop.f32.mrb[0].mxu0
  %504 = vmatprep.mubr.f32.mxu0 0.0
  %505 = vmatmul.mubr.f32.gmra.mrb[0].mxu0 %v367
  %v506 = vpop.f32.mrb[0].mxu0
  %v507 = vadd.f32 %v303, %v506
  %v508 = vpop.f32.mrb[0].mxu0
  %509 = vmatprep.mubr.f32.mxu0 0.0
  %510 = vmatmul.mubr.f32.gmra.mrb[0].mxu0 %v370
  %v511 = vpop.f32.mrb[0].mxu0
  %v512 = vadd.f32 %v308, %v511
  %v513 = vpop.f32.mrb[0].mxu0
  %514 = vmatprep.mubr.f32.mxu0 0.0
  %515 = vmatmul.mubr.f32.gmra.mrb[0].mxu0 %v373
  %v516 = vpop.f32.mrb[0].mxu0
  %v517 = vadd.f32 %v313, %v516
  %v518 = vpop.f32.mrb[0].mxu0
  %519 = vmatprep.mubr.f32.mxu0 0.0
  %520 = vmatmul.mubr.f32.gmra.mrb[0].mxu0 %v376
  %v521 = vpop.f32.mrb[0].mxu0
  %v522 = vadd.f32 %v318, %v521
  %v523 = vpop.f32.mrb[0].mxu0
  %524 = vmatprep.mubr.f32.mxu0 0.0
  %525 = vmatmul.mubr.f32.gmra.mrb[0].mxu0 %v379
  %v526 = vpop.f32.mrb[0].mxu0
  %v527 = vadd.f32 %v323, %v526
  %v528 = vpop.f32.mrb[0].mxu0
  %529 = vmatprep.mubr.f32.mxu0 0.0
  %530 = vmatmul.mubr.f32.gmra.mrb[0].mxu0 %v382
  %v531 = vpop.f32.mrb[0].mxu0
  %v532 = vadd.f32 %v328, %v531
  %v533 = vpop.f32.mrb[0].mxu0
  %534 = vmatprep.mubr.f32.mxu0 0.0
  %535 = vmatmul.mubr.f32.gmra.mrb[0].mxu0 %v385
  %v536 = vpop.f32.mrb[0].mxu0
  %v537 = vadd.f32 %v333, %v536
  %v538 = vpop.f32.mrb[0].mxu0
  %539 = vmatprep.mubr.f32.mxu0 0.0
  %540 = vmatmul.mubr.f32.gmra.mrb[0].mxu0 %v388
  %v541 = vpop.f32.mrb[0].mxu0
  %v542 = vadd.f32 %v338, %v541
  %v543 = vpop.f32.mrb[0].mxu0
  %544 = vmatprep.mubr.f32.mxu0 0.0
  %545 = vmatmul.mubr.f32.gmra.mrb[0].mxu0 %v391
  %v546 = vpop.f32.mrb[0].mxu0
  %v547 = vadd.f32 %v343, %v546
  %v548 = vpop.f32.mrb[0].mxu0
  %549 = vdwg.mxu0
  %550 = vxpose.xlu0.b32.start [1/16] %v195, 128
  %551 = vxpose.xlu0.b32.cont [2/16] 0.0, 128
  %552 = vxpose.xlu0.b32.cont [3/16] 0.0, 128
  %553 = vxpose.xlu0.b32.cont [4/16] 0.0, 128
  %554 = vxpose.xlu0.b32.cont [5/16] 0.0, 128
  %555 = vxpose.xlu0.b32.cont [6/16] 0.0, 128
  %556 = vxpose.xlu0.b32.cont [7/16] 0.0, 128
  %557 = vxpose.xlu0.b32.cont [8/16] 0.0, 128
  %558 = vxpose.xlu0.b32.cont [9/16] 0.0, 128
  %559 = vxpose.xlu0.b32.cont [10/16] 0.0, 128
  %560 = vxpose.xlu0.b32.cont [11/16] 0.0, 128
  %561 = vxpose.xlu0.b32.cont [12/16] 0.0, 128
  %562 = vxpose.xlu0.b32.cont [13/16] 0.0, 128
  %563 = vxpose.xlu0.b32.cont [14/16] 0.0, 128
  %564 = vxpose.xlu0.b32.cont [15/16] 0.0, 128
  %565 = vxpose.xlu0.b32.end [16/16] 0.0, 128
  %v566 = vpop.trf.xlu0
  %v567 = vpop.trf.xlu0
  %v568 = vpop.trf.xlu0
  %v569 = vpop.trf.xlu0
  %v570 = vpop.trf.xlu0
  %v571 = vpop.trf.xlu0
  %v572 = vpop.trf.xlu0
  %v573 = vpop.trf.xlu0
  %v574 = vpop.trf.xlu0
  %v575 = vpop.trf.xlu0
  %v576 = vpop.trf.xlu0
  %v577 = vpop.trf.xlu0
  %v578 = vpop.trf.xlu0
  %v579 = vpop.trf.xlu0
  %v580 = vpop.trf.xlu0
  %v581 = vpop.trf.xlu0
  %582 = vxpose.xlu0.b32.start [1/16] %v200, 128
  %583 = vxpose.xlu0.b32.cont [2/16] 0.0, 128
  %584 = vxpose.xlu0.b32.cont [3/16] 0.0, 128
  %585 = vxpose.xlu0.b32.cont [4/16] 0.0, 128
  %586 = vxpose.xlu0.b32.cont [5/16] 0.0, 128
  %587 = vxpose.xlu0.b32.cont [6/16] 0.0, 128
  %588 = vxpose.xlu0.b32.cont [7/16] 0.0, 128
  %589 = vxpose.xlu0.b32.cont [8/16] 0.0, 128
  %590 = vxpose.xlu0.b32.cont [9/16] 0.0, 128
  %591 = vxpose.xlu0.b32.cont [10/16] 0.0, 128
  %592 = vxpose.xlu0.b32.cont [11/16] 0.0, 128
  %593 = vxpose.xlu0.b32.cont [12/16] 0.0, 128
  %594 = vxpose.xlu0.b32.cont [13/16] 0.0, 128
  %595 = vxpose.xlu0.b32.cont [14/16] 0.0, 128
  %596 = vxpose.xlu0.b32.cont [15/16] 0.0, 128
  %597 = vxpose.xlu0.b32.end [16/16] 0.0, 128
  %v598 = vpop.trf.xlu0
  %v599 = vpop.trf.xlu0
  %v600 = vpop.trf.xlu0
  %v601 = vpop.trf.xlu0
  %v602 = vpop.trf.xlu0
  %v603 = vpop.trf.xlu0
  %v604 = vpop.trf.xlu0
  %v605 = vpop.trf.xlu0
  %v606 = vpop.trf.xlu0
  %v607 = vpop.trf.xlu0
  %v608 = vpop.trf.xlu0
  %v609 = vpop.trf.xlu0
  %v610 = vpop.trf.xlu0
  %v611 = vpop.trf.xlu0
  %v612 = vpop.trf.xlu0
  %v613 = vpop.trf.xlu0
  %614 = vxpose.xlu0.b32.start [1/16] %v205, 128
  %615 = vxpose.xlu0.b32.cont [2/16] 0.0, 128
  %616 = vxpose.xlu0.b32.cont [3/16] 0.0, 128
  %617 = vxpose.xlu0.b32.cont [4/16] 0.0, 128
  %618 = vxpose.xlu0.b32.cont [5/16] 0.0, 128
  %619 = vxpose.xlu0.b32.cont [6/16] 0.0, 128
  %620 = vxpose.xlu0.b32.cont [7/16] 0.0, 128
  %621 = vxpose.xlu0.b32.cont [8/16] 0.0, 128
  %622 = vxpose.xlu0.b32.cont [9/16] 0.0, 128
  %623 = vxpose.xlu0.b32.cont [10/16] 0.0, 128
  %624 = vxpose.xlu0.b32.cont [11/16] 0.0, 128
  %625 = vxpose.xlu0.b32.cont [12/16] 0.0, 128
  %626 = vxpose.xlu0.b32.cont [13/16] 0.0, 128
  %627 = vxpose.xlu0.b32.cont [14/16] 0.0, 128
  %628 = vxpose.xlu0.b32.cont [15/16] 0.0, 128
  %629 = vxpose.xlu0.b32.end [16/16] 0.0, 128
  %v630 = vpop.trf.xlu0
  %v631 = vpop.trf.xlu0
  %v632 = vpop.trf.xlu0
  %v633 = vpop.trf.xlu0
  %v634 = vpop.trf.xlu0
  %v635 = vpop.trf.xlu0
  %v636 = vpop.trf.xlu0
  %v637 = vpop.trf.xlu0
  %v638 = vpop.trf.xlu0
  %v639 = vpop.trf.xlu0
  %v640 = vpop.trf.xlu0
  %v641 = vpop.trf.xlu0
  %v642 = vpop.trf.xlu0
  %v643 = vpop.trf.xlu0
  %v644 = vpop.trf.xlu0
  %v645 = vpop.trf.xlu0
  %646 = vxpose.xlu0.b32.start [1/16] %v210, 128
  %647 = vxpose.xlu0.b32.cont [2/16] 0.0, 128
  %648 = vxpose.xlu0.b32.cont [3/16] 0.0, 128
  %649 = vxpose.xlu0.b32.cont [4/16] 0.0, 128
  %650 = vxpose.xlu0.b32.cont [5/16] 0.0, 128
  %651 = vxpose.xlu0.b32.cont [6/16] 0.0, 128
  %652 = vxpose.xlu0.b32.cont [7/16] 0.0, 128
  %653 = vxpose.xlu0.b32.cont [8/16] 0.0, 128
  %654 = vxpose.xlu0.b32.cont [9/16] 0.0, 128
  %655 = vxpose.xlu0.b32.cont [10/16] 0.0, 128
  %656 = vxpose.xlu0.b32.cont [11/16] 0.0, 128
  %657 = vxpose.xlu0.b32.cont [12/16] 0.0, 128
  %658 = vxpose.xlu0.b32.cont [13/16] 0.0, 128
  %659 = vxpose.xlu0.b32.cont [14/16] 0.0, 128
  %660 = vxpose.xlu0.b32.cont [15/16] 0.0, 128
  %661 = vxpose.xlu0.b32.end [16/16] 0.0, 128
  %v662 = vpop.trf.xlu0
  %v663 = vpop.trf.xlu0
  %v664 = vpop.trf.xlu0
  %v665 = vpop.trf.xlu0
  %v666 = vpop.trf.xlu0
  %v667 = vpop.trf.xlu0
  %v668 = vpop.trf.xlu0
  %v669 = vpop.trf.xlu0
  %v670 = vpop.trf.xlu0
  %v671 = vpop.trf.xlu0
  %v672 = vpop.trf.xlu0
  %v673 = vpop.trf.xlu0
  %v674 = vpop.trf.xlu0
  %v675 = vpop.trf.xlu0
  %v676 = vpop.trf.xlu0
  %v677 = vpop.trf.xlu0
  %678 = vxpose.xlu0.b32.start [1/16] %v215, 128
  %679 = vxpose.xlu0.b32.cont [2/16] 0.0, 128
  %680 = vxpose.xlu0.b32.cont [3/16] 0.0, 128
  %681 = vxpose.xlu0.b32.cont [4/16] 0.0, 128
  %682 = vxpose.xlu0.b32.cont [5/16] 0.0, 128
  %683 = vxpose.xlu0.b32.cont [6/16] 0.0, 128
  %684 = vxpose.xlu0.b32.cont [7/16] 0.0, 128
  %685 = vxpose.xlu0.b32.cont [8/16] 0.0, 128
  %686 = vxpose.xlu0.b32.cont [9/16] 0.0, 128
  %687 = vxpose.xlu0.b32.cont [10/16] 0.0, 128
  %688 = vxpose.xlu0.b32.cont [11/16] 0.0, 128
  %689 = vxpose.xlu0.b32.cont [12/16] 0.0, 128
  %690 = vxpose.xlu0.b32.cont [13/16] 0.0, 128
  %691 = vxpose.xlu0.b32.cont [14/16] 0.0, 128
  %692 = vxpose.xlu0.b32.cont [15/16] 0.0, 128
  %693 = vxpose.xlu0.b32.end [16/16] 0.0, 128
  %v694 = vpop.trf.xlu0
  %v695 = vpop.trf.xlu0
  %v696 = vpop.trf.xlu0
  %v697 = vpop.trf.xlu0
  %v698 = vpop.trf.xlu0
  %v699 = vpop.trf.xlu0
  %v700 = vpop.trf.xlu0
  %v701 = vpop.trf.xlu0
  %v702 = vpop.trf.xlu0
  %v703 = vpop.trf.xlu0
  %v704 = vpop.trf.xlu0
  %v705 = vpop.trf.xlu0
  %v706 = vpop.trf.xlu0
  %v707 = vpop.trf.xlu0
  %v708 = vpop.trf.xlu0
  %v709 = vpop.trf.xlu0
  %710 = vxpose.xlu0.b32.start [1/16] %v220, 128
  %711 = vxpose.xlu0.b32.cont [2/16] 0.0, 128
  %712 = vxpose.xlu0.b32.cont [3/16] 0.0, 128
  %713 = vxpose.xlu0.b32.cont [4/16] 0.0, 128
  %714 = vxpose.xlu0.b32.cont [5/16] 0.0, 128
  %715 = vxpose.xlu0.b32.cont [6/16] 0.0, 128
  %716 = vxpose.xlu0.b32.cont [7/16] 0.0, 128
  %717 = vxpose.xlu0.b32.cont [8/16] 0.0, 128
  %718 = vxpose.xlu0.b32.cont [9/16] 0.0, 128
  %719 = vxpose.xlu0.b32.cont [10/16] 0.0, 128
  %720 = vxpose.xlu0.b32.cont [11/16] 0.0, 128
  %721 = vxpose.xlu0.b32.cont [12/16] 0.0, 128
  %722 = vxpose.xlu0.b32.cont [13/16] 0.0, 128
  %723 = vxpose.xlu0.b32.cont [14/16] 0.0, 128
  %724 = vxpose.xlu0.b32.cont [15/16] 0.0, 128
  %725 = vxpose.xlu0.b32.end [16/16] 0.0, 128
  %v726 = vpop.trf.xlu0
  %v727 = vpop.trf.xlu0
  %v728 = vpop.trf.xlu0
  %v729 = vpop.trf.xlu0
  %v730 = vpop.trf.xlu0
  %v731 = vpop.trf.xlu0
  %v732 = vpop.trf.xlu0
  %v733 = vpop.trf.xlu0
  %v734 = vpop.trf.xlu0
  %v735 = vpop.trf.xlu0
  %v736 = vpop.trf.xlu0
  %v737 = vpop.trf.xlu0
  %v738 = vpop.trf.xlu0
  %v739 = vpop.trf.xlu0
  %v740 = vpop.trf.xlu0
  %v741 = vpop.trf.xlu0
  %742 = vxpose.xlu0.b32.start [1/16] %v225, 128
  %743 = vxpose.xlu0.b32.cont [2/16] 0.0, 128
  %744 = vxpose.xlu0.b32.cont [3/16] 0.0, 128
  %745 = vxpose.xlu0.b32.cont [4/16] 0.0, 128
  %746 = vxpose.xlu0.b32.cont [5/16] 0.0, 128
  %747 = vxpose.xlu0.b32.cont [6/16] 0.0, 128
  %748 = vxpose.xlu0.b32.cont [7/16] 0.0, 128
  %749 = vxpose.xlu0.b32.cont [8/16] 0.0, 128
  %750 = vxpose.xlu0.b32.cont [9/16] 0.0, 128
  %751 = vxpose.xlu0.b32.cont [10/16] 0.0, 128
  %752 = vxpose.xlu0.b32.cont [11/16] 0.0, 128
  %753 = vxpose.xlu0.b32.cont [12/16] 0.0, 128
  %754 = vxpose.xlu0.b32.cont [13/16] 0.0, 128
  %755 = vxpose.xlu0.b32.cont [14/16] 0.0, 128
  %756 = vxpose.xlu0.b32.cont [15/16] 0.0, 128
  %757 = vxpose.xlu0.b32.end [16/16] 0.0, 128
  %v758 = vpop.trf.xlu0
  %v759 = vpop.trf.xlu0
  %v760 = vpop.trf.xlu0
  %v761 = vpop.trf.xlu0
  %v762 = vpop.trf.xlu0
  %v763 = vpop.trf.xlu0
  %v764 = vpop.trf.xlu0
  %v765 = vpop.trf.xlu0
  %v766 = vpop.trf.xlu0
  %v767 = vpop.trf.xlu0
  %v768 = vpop.trf.xlu0
  %v769 = vpop.trf.xlu0
  %v770 = vpop.trf.xlu0
  %v771 = vpop.trf.xlu0
  %v772 = vpop.trf.xlu0
  %v773 = vpop.trf.xlu0
  %774 = vxpose.xlu0.b32.start [1/16] %v230, 128
  %775 = vxpose.xlu0.b32.cont [2/16] 0.0, 128
  %776 = vxpose.xlu0.b32.cont [3/16] 0.0, 128
  %777 = vxpose.xlu0.b32.cont [4/16] 0.0, 128
  %778 = vxpose.xlu0.b32.cont [5/16] 0.0, 128
  %779 = vxpose.xlu0.b32.cont [6/16] 0.0, 128
  %780 = vxpose.xlu0.b32.cont [7/16] 0.0, 128
  %781 = vxpose.xlu0.b32.cont [8/16] 0.0, 128
  %782 = vxpose.xlu0.b32.cont [9/16] 0.0, 128
  %783 = vxpose.xlu0.b32.cont [10/16] 0.0, 128
  %784 = vxpose.xlu0.b32.cont [11/16] 0.0, 128
  %785 = vxpose.xlu0.b32.cont [12/16] 0.0, 128
  %786 = vxpose.xlu0.b32.cont [13/16] 0.0, 128
  %787 = vxpose.xlu0.b32.cont [14/16] 0.0, 128
  %788 = vxpose.xlu0.b32.cont [15/16] 0.0, 128
  %789 = vxpose.xlu0.b32.end [16/16] 0.0, 128
  %v790 = vpop.trf.xlu0
  %v791 = vpop.trf.xlu0
  %v792 = vpop.trf.xlu0
  %v793 = vpop.trf.xlu0
  %v794 = vpop.trf.xlu0
  %v795 = vpop.trf.xlu0
  %v796 = vpop.trf.xlu0
  %v797 = vpop.trf.xlu0
  %v798 = vpop.trf.xlu0
  %v799 = vpop.trf.xlu0
  %v800 = vpop.trf.xlu0
  %v801 = vpop.trf.xlu0
  %v802 = vpop.trf.xlu0
  %v803 = vpop.trf.xlu0
  %v804 = vpop.trf.xlu0
  %v805 = vpop.trf.xlu0
  %vm806 = vcmask 64512
  %v808 = vsel %vm806, %v566, 0
  %v811 = vsel %vm806, %v567, 0
  %813 = vmatprep.subr.mxu0 0.0
  %814 = vmatpush1.msra.mxu0 %v472
  %815 = vmatprep.subr.mxu0 0.0
  %816 = vmatpush1.msra.mxu0 0.0
  %817 = vmatprep.subr.mxu0 0.0
  %818 = vmatpush1.msra.mxu0 0.0
  %819 = vmatprep.subr.mxu0 0.0
  %820 = vmatpush1.msra.mxu0 0.0
  %821 = vmatprep.subr.mxu0 0.0
  %822 = vmatpush1.msra.mxu0 0.0
  %823 = vmatprep.subr.mxu0 0.0
  %824 = vmatpush1.msra.mxu0 0.0
  %825 = vmatprep.subr.mxu0 0.0
  %826 = vmatpush1.msra.mxu0 0.0
  %827 = vmatprep.subr.mxu0 0.0
  %828 = vmatpush1.msra.mxu0 0.0
  %829 = vmatprep.subr.mxu0 0.0
  %830 = vmatpush1.msra.mxu0 0.0
  %831 = vmatprep.subr.mxu0 0.0
  %832 = vmatpush1.msra.mxu0 0.0
  %833 = vmatprep.subr.mxu0 0.0
  %834 = vmatpush1.msra.mxu0 0.0
  %835 = vmatprep.subr.mxu0 0.0
  %836 = vmatpush1.msra.mxu0 0.0
  %837 = vmatprep.subr.mxu0 0.0
  %838 = vmatpush1.msra.mxu0 0.0
  %839 = vmatprep.subr.mxu0 0.0
  %840 = vmatpush1.msra.mxu0 0.0
  %841 = vmatprep.subr.mxu0 0.0
  %842 = vmatpush1.msra.mxu0 0.0
  %843 = vmatprep.subr.mxu0 0.0
  %844 = vmatpush1.msra.mxu0 0.0
  %845 = vmatprep.subr.mxu0 0.0
  %846 = vmatpush1.msra.mxu0 0.0
  %847 = vmatprep.subr.mxu0 0.0
  %848 = vmatpush1.msra.mxu0 0.0
  %849 = vmatprep.subr.mxu0 0.0
  %850 = vmatpush1.msra.mxu0 0.0
  %851 = vmatprep.subr.mxu0 0.0
  %852 = vmatpush1.msra.mxu0 0.0
  %853 = vmatprep.subr.mxu0 0.0
  %854 = vmatpush1.msra.mxu0 0.0
  %855 = vmatprep.subr.mxu0 0.0
  %856 = vmatpush1.msra.mxu0 0.0
  %857 = vmatprep.subr.mxu0 0.0
  %858 = vmatpush1.msra.mxu0 0.0
  %859 = vmatprep.subr.mxu0 0.0
  %860 = vmatpush1.msra.mxu0 0.0
  %861 = vmatprep.subr.mxu0 0.0
  %862 = vmatpush1.msra.mxu0 0.0
  %863 = vmatprep.subr.mxu0 0.0
  %864 = vmatpush1.msra.mxu0 0.0
  %865 = vmatprep.subr.mxu0 0.0
  %866 = vmatpush1.msra.mxu0 0.0
  %867 = vmatprep.subr.mxu0 0.0
  %868 = vmatpush1.msra.mxu0 0.0
  %869 = vmatprep.subr.mxu0 0.0
  %870 = vmatpush1.msra.mxu0 0.0
  %871 = vmatprep.subr.mxu0 0.0
  %872 = vmatpush1.msra.mxu0 0.0
  %873 = vmatprep.subr.mxu0 0.0
  %874 = vmatpush1.msra.mxu0 0.0
  %875 = vmatprep.subr.mxu0 0.0
  %876 = vmatpush1.msra.mxu0 0.0
  %877 = vmatprep.mubr.f32.mxu0 0.0
  %878 = vmatmul.mubr.f32.gmra.mrb[0].mxu0 %v808
  %v879 = vpop.f32.mrb[0].mxu0
  %v880 = vadd.f32 0.0, %v879
  %v881 = vpop.f32.mrb[0].mxu0
  %882 = vmatprep.mubr.f32.mxu0 0.0
  %883 = vmatmul.mubr.f32.gmra.mrb[0].mxu0 %v811
  %v884 = vpop.f32.mrb[0].mxu0
  %v885 = vadd.f32 0.0, %v884
  %v886 = vpop.f32.mrb[0].mxu0
  %887 = vdwg.mxu0
  %v889 = vsel %vm806, %v598, 0
  %v892 = vsel %vm806, %v599, 0
  %894 = vmatprep.subr.mxu0 0.0
  %895 = vmatpush1.msra.mxu0 %v477
  %896 = vmatprep.subr.mxu0 0.0
  %897 = vmatpush1.msra.mxu0 0.0
  %898 = vmatprep.subr.mxu0 0.0
  %899 = vmatpush1.msra.mxu0 0.0
  %900 = vmatprep.subr.mxu0 0.0
  %901 = vmatpush1.msra.mxu0 0.0
  %902 = vmatprep.subr.mxu0 0.0
  %903 = vmatpush1.msra.mxu0 0.0
  %904 = vmatprep.subr.mxu0 0.0
  %905 = vmatpush1.msra.mxu0 0.0
  %906 = vmatprep.subr.mxu0 0.0
  %907 = vmatpush1.msra.mxu0 0.0
  %908 = vmatprep.subr.mxu0 0.0
  %909 = vmatpush1.msra.mxu0 0.0
  %910 = vmatprep.subr.mxu0 0.0
  %911 = vmatpush1.msra.mxu0 0.0
  %912 = vmatprep.subr.mxu0 0.0
  %913 = vmatpush1.msra.mxu0 0.0
  %914 = vmatprep.subr.mxu0 0.0
  %915 = vmatpush1.msra.mxu0 0.0
  %916 = vmatprep.subr.mxu0 0.0
  %917 = vmatpush1.msra.mxu0 0.0
  %918 = vmatprep.subr.mxu0 0.0
  %919 = vmatpush1.msra.mxu0 0.0
  %920 = vmatprep.subr.mxu0 0.0
  %921 = vmatpush1.msra.mxu0 0.0
  %922 = vmatprep.subr.mxu0 0.0
  %923 = vmatpush1.msra.mxu0 0.0
  %924 = vmatprep.subr.mxu0 0.0
  %925 = vmatpush1.msra.mxu0 0.0
  %926 = vmatprep.subr.mxu0 0.0
  %927 = vmatpush1.msra.mxu0 0.0
  %928 = vmatprep.subr.mxu0 0.0
  %929 = vmatpush1.msra.mxu0 0.0
  %930 = vmatprep.subr.mxu0 0.0
  %931 = vmatpush1.msra.mxu0 0.0
  %932 = vmatprep.subr.mxu0 0.0
  %933 = vmatpush1.msra.mxu0 0.0
  %934 = vmatprep.subr.mxu0 0.0
  %935 = vmatpush1.msra.mxu0 0.0
  %936 = vmatprep.subr.mxu0 0.0
  %937 = vmatpush1.msra.mxu0 0.0
  %938 = vmatprep.subr.mxu0 0.0
  %939 = vmatpush1.msra.mxu0 0.0
  %940 = vmatprep.subr.mxu0 0.0
  %941 = vmatpush1.msra.mxu0 0.0
  %942 = vmatprep.subr.mxu0 0.0
  %943 = vmatpush1.msra.mxu0 0.0
  %944 = vmatprep.subr.mxu0 0.0
  %945 = vmatpush1.msra.mxu0 0.0
  %946 = vmatprep.subr.mxu0 0.0
  %947 = vmatpush1.msra.mxu0 0.0
  %948 = vmatprep.subr.mxu0 0.0
  %949 = vmatpush1.msra.mxu0 0.0
  %950 = vmatprep.subr.mxu0 0.0
  %951 = vmatpush1.msra.mxu0 0.0
  %952 = vmatprep.subr.mxu0 0.0
  %953 = vmatpush1.msra.mxu0 0.0
  %954 = vmatprep.subr.mxu0 0.0
  %955 = vmatpush1.msra.mxu0 0.0
  %956 = vmatprep.subr.mxu0 0.0
  %957 = vmatpush1.msra.mxu0 0.0
  %958 = vmatprep.mubr.f32.mxu0 0.0
  %959 = vmatmul.mubr.f32.gmra.mrb[0].mxu0 %v889
  %v960 = vpop.f32.mrb[0].mxu0
  %v961 = vadd.f32 0.0, %v960
  %v962 = vpop.f32.mrb[0].mxu0
  %963 = vmatprep.mubr.f32.mxu0 0.0
  %964 = vmatmul.mubr.f32.gmra.mrb[0].mxu0 %v892
  %v965 = vpop.f32.mrb[0].mxu0
  %v966 = vadd.f32 0.0, %v965
  %v967 = vpop.f32.mrb[0].mxu0
  %968 = vdwg.mxu0
  %v970 = vsel %vm806, %v630, 0
  %v973 = vsel %vm806, %v631, 0
  %975 = vmatprep.subr.mxu0 0.0
  %976 = vmatpush1.msra.mxu0 %v482
  %977 = vmatprep.subr.mxu0 0.0
  %978 = vmatpush1.msra.mxu0 0.0
  %979 = vmatprep.subr.mxu0 0.0
  %980 = vmatpush1.msra.mxu0 0.0
  %981 = vmatprep.subr.mxu0 0.0
  %982 = vmatpush1.msra.mxu0 0.0
  %983 = vmatprep.subr.mxu0 0.0
  %984 = vmatpush1.msra.mxu0 0.0
  %985 = vmatprep.subr.mxu0 0.0
  %986 = vmatpush1.msra.mxu0 0.0
  %987 = vmatprep.subr.mxu0 0.0
  %988 = vmatpush1.msra.mxu0 0.0
  %989 = vmatprep.subr.mxu0 0.0
  %990 = vmatpush1.msra.mxu0 0.0
  %991 = vmatprep.subr.mxu0 0.0
  %992 = vmatpush1.msra.mxu0 0.0
  %993 = vmatprep.subr.mxu0 0.0
  %994 = vmatpush1.msra.mxu0 0.0
  %995 = vmatprep.subr.mxu0 0.0
  %996 = vmatpush1.msra.mxu0 0.0
  %997 = vmatprep.subr.mxu0 0.0
  %998 = vmatpush1.msra.mxu0 0.0
  %999 = vmatprep.subr.mxu0 0.0
  %1000 = vmatpush1.msra.mxu0 0.0
  %1001 = vmatprep.subr.mxu0 0.0
  %1002 = vmatpush1.msra.mxu0 0.0
  %1003 = vmatprep.subr.mxu0 0.0
  %1004 = vmatpush1.msra.mxu0 0.0
  %1005 = vmatprep.subr.mxu0 0.0
  %1006 = vmatpush1.msra.mxu0 0.0
  %1007 = vmatprep.subr.mxu0 0.0
  %1008 = vmatpush1.msra.mxu0 0.0
  %1009 = vmatprep.subr.mxu0 0.0
  %1010 = vmatpush1.msra.mxu0 0.0
  %1011 = vmatprep.subr.mxu0 0.0
  %1012 = vmatpush1.msra.mxu0 0.0
  %1013 = vmatprep.subr.mxu0 0.0
  %1014 = vmatpush1.msra.mxu0 0.0
  %1015 = vmatprep.subr.mxu0 0.0
  %1016 = vmatpush1.msra.mxu0 0.0
  %1017 = vmatprep.subr.mxu0 0.0
  %1018 = vmatpush1.msra.mxu0 0.0
  %1019 = vmatprep.subr.mxu0 0.0
  %1020 = vmatpush1.msra.mxu0 0.0
  %1021 = vmatprep.subr.mxu0 0.0
  %1022 = vmatpush1.msra.mxu0 0.0
  %1023 = vmatprep.subr.mxu0 0.0
  %1024 = vmatpush1.msra.mxu0 0.0
  %1025 = vmatprep.subr.mxu0 0.0
  %1026 = vmatpush1.msra.mxu0 0.0
  %1027 = vmatprep.subr.mxu0 0.0
  %1028 = vmatpush1.msra.mxu0 0.0
  %1029 = vmatprep.subr.mxu0 0.0
  %1030 = vmatpush1.msra.mxu0 0.0
  %1031 = vmatprep.subr.mxu0 0.0
  %1032 = vmatpush1.msra.mxu0 0.0
  %1033 = vmatprep.subr.mxu0 0.0
  %1034 = vmatpush1.msra.mxu0 0.0
  %1035 = vmatprep.subr.mxu0 0.0
  %1036 = vmatpush1.msra.mxu0 0.0
  %1037 = vmatprep.subr.mxu0 0.0
  %1038 = vmatpush1.msra.mxu0 0.0
  %1039 = vmatprep.mubr.f32.mxu0 0.0
  %1040 = vmatmul.mubr.f32.gmra.mrb[0].mxu0 %v970
  %v1041 = vpop.f32.mrb[0].mxu0
  %v1042 = vadd.f32 0.0, %v1041
  %v1043 = vpop.f32.mrb[0].mxu0
  %1044 = vmatprep.mubr.f32.mxu0 0.0
  %1045 = vmatmul.mubr.f32.gmra.mrb[0].mxu0 %v973
  %v1046 = vpop.f32.mrb[0].mxu0
  %v1047 = vadd.f32 0.0, %v1046
  %v1048 = vpop.f32.mrb[0].mxu0
  %1049 = vdwg.mxu0
  %v1051 = vsel %vm806, %v662, 0
  %v1054 = vsel %vm806, %v663, 0
  %1056 = vmatprep.subr.mxu0 0.0
  %1057 = vmatpush1.msra.mxu0 %v487
  %1058 = vmatprep.subr.mxu0 0.0
  %1059 = vmatpush1.msra.mxu0 0.0
  %1060 = vmatprep.subr.mxu0 0.0
  %1061 = vmatpush1.msra.mxu0 0.0
  %1062 = vmatprep.subr.mxu0 0.0
  %1063 = vmatpush1.msra.mxu0 0.0
  %1064 = vmatprep.subr.mxu0 0.0
  %1065 = vmatpush1.msra.mxu0 0.0
  %1066 = vmatprep.subr.mxu0 0.0
  %1067 = vmatpush1.msra.mxu0 0.0
  %1068 = vmatprep.subr.mxu0 0.0
  %1069 = vmatpush1.msra.mxu0 0.0
  %1070 = vmatprep.subr.mxu0 0.0
  %1071 = vmatpush1.msra.mxu0 0.0
  %1072 = vmatprep.subr.mxu0 0.0
  %1073 = vmatpush1.msra.mxu0 0.0
  %1074 = vmatprep.subr.mxu0 0.0
  %1075 = vmatpush1.msra.mxu0 0.0
  %1076 = vmatprep.subr.mxu0 0.0
  %1077 = vmatpush1.msra.mxu0 0.0
  %1078 = vmatprep.subr.mxu0 0.0
  %1079 = vmatpush1.msra.mxu0 0.0
  %1080 = vmatprep.subr.mxu0 0.0
  %1081 = vmatpush1.msra.mxu0 0.0
  %1082 = vmatprep.subr.mxu0 0.0
  %1083 = vmatpush1.msra.mxu0 0.0
  %1084 = vmatprep.subr.mxu0 0.0
  %1085 = vmatpush1.msra.mxu0 0.0
  %1086 = vmatprep.subr.mxu0 0.0
  %1087 = vmatpush1.msra.mxu0 0.0
  %1088 = vmatprep.subr.mxu0 0.0
  %1089 = vmatpush1.msra.mxu0 0.0
  %1090 = vmatprep.subr.mxu0 0.0
  %1091 = vmatpush1.msra.mxu0 0.0
  %1092 = vmatprep.subr.mxu0 0.0
  %1093 = vmatpush1.msra.mxu0 0.0
  %1094 = vmatprep.subr.mxu0 0.0
  %1095 = vmatpush1.msra.mxu0 0.0
  %1096 = vmatprep.subr.mxu0 0.0
  %1097 = vmatpush1.msra.mxu0 0.0
  %1098 = vmatprep.subr.mxu0 0.0
  %1099 = vmatpush1.msra.mxu0 0.0
  %1100 = vmatprep.subr.mxu0 0.0
  %1101 = vmatpush1.msra.mxu0 0.0
  %1102 = vmatprep.subr.mxu0 0.0
  %1103 = vmatpush1.msra.mxu0 0.0
  %1104 = vmatprep.subr.mxu0 0.0
  %1105 = vmatpush1.msra.mxu0 0.0
  %1106 = vmatprep.subr.mxu0 0.0
  %1107 = vmatpush1.msra.mxu0 0.0
  %1108 = vmatprep.subr.mxu0 0.0
  %1109 = vmatpush1.msra.mxu0 0.0
  %1110 = vmatprep.subr.mxu0 0.0
  %1111 = vmatpush1.msra.mxu0 0.0
  %1112 = vmatprep.subr.mxu0 0.0
  %1113 = vmatpush1.msra.mxu0 0.0
  %1114 = vmatprep.subr.mxu0 0.0
  %1115 = vmatpush1.msra.mxu0 0.0
  %1116 = vmatprep.subr.mxu0 0.0
  %1117 = vmatpush1.msra.mxu0 0.0
  %1118 = vmatprep.subr.mxu0 0.0
  %1119 = vmatpush1.msra.mxu0 0.0
  %1120 = vmatprep.mubr.f32.mxu0 0.0
  %1121 = vmatmul.mubr.f32.gmra.mrb[0].mxu0 %v1051
  %v1122 = vpop.f32.mrb[0].mxu0
  %v1123 = vadd.f32 0.0, %v1122
  %v1124 = vpop.f32.mrb[0].mxu0
  %1125 = vmatprep.mubr.f32.mxu0 0.0
  %1126 = vmatmul.mubr.f32.gmra.mrb[0].mxu0 %v1054
  %v1127 = vpop.f32.mrb[0].mxu0
  %v1128 = vadd.f32 0.0, %v1127
  %v1129 = vpop.f32.mrb[0].mxu0
  %1130 = vdwg.mxu0
  %v1132 = vsel %vm806, %v694, 0
  %v1135 = vsel %vm806, %v695, 0
  %1137 = vmatprep.subr.mxu0 0.0
  %1138 = vmatpush1.msra.mxu0 %v492
  %1139 = vmatprep.subr.mxu0 0.0
  %1140 = vmatpush1.msra.mxu0 0.0
  %1141 = vmatprep.subr.mxu0 0.0
  %1142 = vmatpush1.msra.mxu0 0.0
  %1143 = vmatprep.subr.mxu0 0.0
  %1144 = vmatpush1.msra.mxu0 0.0
  %1145 = vmatprep.subr.mxu0 0.0
  %1146 = vmatpush1.msra.mxu0 0.0
  %1147 = vmatprep.subr.mxu0 0.0
  %1148 = vmatpush1.msra.mxu0 0.0
  %1149 = vmatprep.subr.mxu0 0.0
  %1150 = vmatpush1.msra.mxu0 0.0
  %1151 = vmatprep.subr.mxu0 0.0
  %1152 = vmatpush1.msra.mxu0 0.0
  %1153 = vmatprep.subr.mxu0 0.0
  %1154 = vmatpush1.msra.mxu0 0.0
  %1155 = vmatprep.subr.mxu0 0.0
  %1156 = vmatpush1.msra.mxu0 0.0
  %1157 = vmatprep.subr.mxu0 0.0
  %1158 = vmatpush1.msra.mxu0 0.0
  %1159 = vmatprep.subr.mxu0 0.0
  %1160 = vmatpush1.msra.mxu0 0.0
  %1161 = vmatprep.subr.mxu0 0.0
  %1162 = vmatpush1.msra.mxu0 0.0
  %1163 = vmatprep.subr.mxu0 0.0
  %1164 = vmatpush1.msra.mxu0 0.0
  %1165 = vmatprep.subr.mxu0 0.0
  %1166 = vmatpush1.msra.mxu0 0.0
  %1167 = vmatprep.subr.mxu0 0.0
  %1168 = vmatpush1.msra.mxu0 0.0
  %1169 = vmatprep.subr.mxu0 0.0
  %1170 = vmatpush1.msra.mxu0 0.0
  %1171 = vmatprep.subr.mxu0 0.0
  %1172 = vmatpush1.msra.mxu0 0.0
  %1173 = vmatprep.subr.mxu0 0.0
  %1174 = vmatpush1.msra.mxu0 0.0
  %1175 = vmatprep.subr.mxu0 0.0
  %1176 = vmatpush1.msra.mxu0 0.0
  %1177 = vmatprep.subr.mxu0 0.0
  %1178 = vmatpush1.msra.mxu0 0.0
  %1179 = vmatprep.subr.mxu0 0.0
  %1180 = vmatpush1.msra.mxu0 0.0
  %1181 = vmatprep.subr.mxu0 0.0
  %1182 = vmatpush1.msra.mxu0 0.0
  %1183 = vmatprep.subr.mxu0 0.0
  %1184 = vmatpush1.msra.mxu0 0.0
  %1185 = vmatprep.subr.mxu0 0.0
  %1186 = vmatpush1.msra.mxu0 0.0
  %1187 = vmatprep.subr.mxu0 0.0
  %1188 = vmatpush1.msra.mxu0 0.0
  %1189 = vmatprep.subr.mxu0 0.0
  %1190 = vmatpush1.msra.mxu0 0.0
  %1191 = vmatprep.subr.mxu0 0.0
  %1192 = vmatpush1.msra.mxu0 0.0
  %1193 = vmatprep.subr.mxu0 0.0
  %1194 = vmatpush1.msra.mxu0 0.0
  %1195 = vmatprep.subr.mxu0 0.0
  %1196 = vmatpush1.msra.mxu0 0.0
  %1197 = vmatprep.subr.mxu0 0.0
  %1198 = vmatpush1.msra.mxu0 0.0
  %1199 = vmatprep.subr.mxu0 0.0
  %1200 = vmatpush1.msra.mxu0 0.0
  %1201 = vmatprep.mubr.f32.mxu0 0.0
  %1202 = vmatmul.mubr.f32.gmra.mrb[0].mxu0 %v1132
  %v1203 = vpop.f32.mrb[0].mxu0
  %v1204 = vadd.f32 0.0, %v1203
  %v1205 = vpop.f32.mrb[0].mxu0
  %1206 = vmatprep.mubr.f32.mxu0 0.0
  %1207 = vmatmul.mubr.f32.gmra.mrb[0].mxu0 %v1135
  %v1208 = vpop.f32.mrb[0].mxu0
  %v1209 = vadd.f32 0.0, %v1208
  %v1210 = vpop.f32.mrb[0].mxu0
  %1211 = vdwg.mxu0
  %v1213 = vsel %vm806, %v726, 0
  %v1216 = vsel %vm806, %v727, 0
  %1218 = vmatprep.subr.mxu0 0.0
  %1219 = vmatpush1.msra.mxu0 %v497
  %1220 = vmatprep.subr.mxu0 0.0
  %1221 = vmatpush1.msra.mxu0 0.0
  %1222 = vmatprep.subr.mxu0 0.0
  %1223 = vmatpush1.msra.mxu0 0.0
  %1224 = vmatprep.subr.mxu0 0.0
  %1225 = vmatpush1.msra.mxu0 0.0
  %1226 = vmatprep.subr.mxu0 0.0
  %1227 = vmatpush1.msra.mxu0 0.0
  %1228 = vmatprep.subr.mxu0 0.0
  %1229 = vmatpush1.msra.mxu0 0.0
  %1230 = vmatprep.subr.mxu0 0.0
  %1231 = vmatpush1.msra.mxu0 0.0
  %1232 = vmatprep.subr.mxu0 0.0
  %1233 = vmatpush1.msra.mxu0 0.0
  %1234 = vmatprep.subr.mxu0 0.0
  %1235 = vmatpush1.msra.mxu0 0.0
  %1236 = vmatprep.subr.mxu0 0.0
  %1237 = vmatpush1.msra.mxu0 0.0
  %1238 = vmatprep.subr.mxu0 0.0
  %1239 = vmatpush1.msra.mxu0 0.0
  %1240 = vmatprep.subr.mxu0 0.0
  %1241 = vmatpush1.msra.mxu0 0.0
  %1242 = vmatprep.subr.mxu0 0.0
  %1243 = vmatpush1.msra.mxu0 0.0
  %1244 = vmatprep.subr.mxu0 0.0
  %1245 = vmatpush1.msra.mxu0 0.0
  %1246 = vmatprep.subr.mxu0 0.0
  %1247 = vmatpush1.msra.mxu0 0.0
  %1248 = vmatprep.subr.mxu0 0.0
  %1249 = vmatpush1.msra.mxu0 0.0
  %1250 = vmatprep.subr.mxu0 0.0
  %1251 = vmatpush1.msra.mxu0 0.0
  %1252 = vmatprep.subr.mxu0 0.0
  %1253 = vmatpush1.msra.mxu0 0.0
  %1254 = vmatprep.subr.mxu0 0.0
  %1255 = vmatpush1.msra.mxu0 0.0
  %1256 = vmatprep.subr.mxu0 0.0
  %1257 = vmatpush1.msra.mxu0 0.0
  %1258 = vmatprep.subr.mxu0 0.0
  %1259 = vmatpush1.msra.mxu0 0.0
  %1260 = vmatprep.subr.mxu0 0.0
  %1261 = vmatpush1.msra.mxu0 0.0
  %1262 = vmatprep.subr.mxu0 0.0
  %1263 = vmatpush1.msra.mxu0 0.0
  %1264 = vmatprep.subr.mxu0 0.0
  %1265 = vmatpush1.msra.mxu0 0.0
  %1266 = vmatprep.subr.mxu0 0.0
  %1267 = vmatpush1.msra.mxu0 0.0
  %1268 = vmatprep.subr.mxu0 0.0
  %1269 = vmatpush1.msra.mxu0 0.0
  %1270 = vmatprep.subr.mxu0 0.0
  %1271 = vmatpush1.msra.mxu0 0.0
  %1272 = vmatprep.subr.mxu0 0.0
  %1273 = vmatpush1.msra.mxu0 0.0
  %1274 = vmatprep.subr.mxu0 0.0
  %1275 = vmatpush1.msra.mxu0 0.0
  %1276 = vmatprep.subr.mxu0 0.0
  %1277 = vmatpush1.msra.mxu0 0.0
  %1278 = vmatprep.subr.mxu0 0.0
  %1279 = vmatpush1.msra.mxu0 0.0
  %1280 = vmatprep.subr.mxu0 0.0
  %1281 = vmatpush1.msra.mxu0 0.0
  %1282 = vmatprep.mubr.f32.mxu0 0.0
  %1283 = vmatmul.mubr.f32.gmra.mrb[0].mxu0 %v1213
  %v1284 = vpop.f32.mrb[0].mxu0
  %v1285 = vadd.f32 0.0, %v1284
  %v1286 = vpop.f32.mrb[0].mxu0
  %1287 = vmatprep.mubr.f32.mxu0 0.0
  %1288 = vmatmul.mubr.f32.gmra.mrb[0].mxu0 %v1216
  %v1289 = vpop.f32.mrb[0].mxu0
  %v1290 = vadd.f32 0.0, %v1289
  %v1291 = vpop.f32.mrb[0].mxu0
  %1292 = vdwg.mxu0
  %v1294 = vsel %vm806, %v758, 0
  %v1297 = vsel %vm806, %v759, 0
  %1299 = vmatprep.subr.mxu0 0.0
  %1300 = vmatpush1.msra.mxu0 %v502
  %1301 = vmatprep.subr.mxu0 0.0
  %1302 = vmatpush1.msra.mxu0 0.0
  %1303 = vmatprep.subr.mxu0 0.0
  %1304 = vmatpush1.msra.mxu0 0.0
  %1305 = vmatprep.subr.mxu0 0.0
  %1306 = vmatpush1.msra.mxu0 0.0
  %1307 = vmatprep.subr.mxu0 0.0
  %1308 = vmatpush1.msra.mxu0 0.0
  %1309 = vmatprep.subr.mxu0 0.0
  %1310 = vmatpush1.msra.mxu0 0.0
  %1311 = vmatprep.subr.mxu0 0.0
  %1312 = vmatpush1.msra.mxu0 0.0
  %1313 = vmatprep.subr.mxu0 0.0
  %1314 = vmatpush1.msra.mxu0 0.0
  %1315 = vmatprep.subr.mxu0 0.0
  %1316 = vmatpush1.msra.mxu0 0.0
  %1317 = vmatprep.subr.mxu0 0.0
  %1318 = vmatpush1.msra.mxu0 0.0
  %1319 = vmatprep.subr.mxu0 0.0
  %1320 = vmatpush1.msra.mxu0 0.0
  %1321 = vmatprep.subr.mxu0 0.0
  %1322 = vmatpush1.msra.mxu0 0.0
  %1323 = vmatprep.subr.mxu0 0.0
  %1324 = vmatpush1.msra.mxu0 0.0
  %1325 = vmatprep.subr.mxu0 0.0
  %1326 = vmatpush1.msra.mxu0 0.0
  %1327 = vmatprep.subr.mxu0 0.0
  %1328 = vmatpush1.msra.mxu0 0.0
  %1329 = vmatprep.subr.mxu0 0.0
  %1330 = vmatpush1.msra.mxu0 0.0
  %1331 = vmatprep.subr.mxu0 0.0
  %1332 = vmatpush1.msra.mxu0 0.0
  %1333 = vmatprep.subr.mxu0 0.0
  %1334 = vmatpush1.msra.mxu0 0.0
  %1335 = vmatprep.subr.mxu0 0.0
  %1336 = vmatpush1.msra.mxu0 0.0
  %1337 = vmatprep.subr.mxu0 0.0
  %1338 = vmatpush1.msra.mxu0 0.0
  %1339 = vmatprep.subr.mxu0 0.0
  %1340 = vmatpush1.msra.mxu0 0.0
  %1341 = vmatprep.subr.mxu0 0.0
  %1342 = vmatpush1.msra.mxu0 0.0
  %1343 = vmatprep.subr.mxu0 0.0
  %1344 = vmatpush1.msra.mxu0 0.0
  %1345 = vmatprep.subr.mxu0 0.0
  %1346 = vmatpush1.msra.mxu0 0.0
  %1347 = vmatprep.subr.mxu0 0.0
  %1348 = vmatpush1.msra.mxu0 0.0
  %1349 = vmatprep.subr.mxu0 0.0
  %1350 = vmatpush1.msra.mxu0 0.0
  %1351 = vmatprep.subr.mxu0 0.0
  %1352 = vmatpush1.msra.mxu0 0.0
  %1353 = vmatprep.subr.mxu0 0.0
  %1354 = vmatpush1.msra.mxu0 0.0
  %1355 = vmatprep.subr.mxu0 0.0
  %1356 = vmatpush1.msra.mxu0 0.0
  %1357 = vmatprep.subr.mxu0 0.0
  %1358 = vmatpush1.msra.mxu0 0.0
  %1359 = vmatprep.subr.mxu0 0.0
  %1360 = vmatpush1.msra.mxu0 0.0
  %1361 = vmatprep.subr.mxu0 0.0
  %1362 = vmatpush1.msra.mxu0 0.0
  %1363 = vmatprep.mubr.f32.mxu0 0.0
  %1364 = vmatmul.mubr.f32.gmra.mrb[0].mxu0 %v1294
  %v1365 = vpop.f32.mrb[0].mxu0
  %v1366 = vadd.f32 0.0, %v1365
  %v1367 = vpop.f32.mrb[0].mxu0
  %1368 = vmatprep.mubr.f32.mxu0 0.0
  %1369 = vmatmul.mubr.f32.gmra.mrb[0].mxu0 %v1297
  %v1370 = vpop.f32.mrb[0].mxu0
  %v1371 = vadd.f32 0.0, %v1370
  %v1372 = vpop.f32.mrb[0].mxu0
  %1373 = vdwg.mxu0
  %v1375 = vsel %vm806, %v790, 0
  %v1378 = vsel %vm806, %v791, 0
  %1380 = vmatprep.subr.mxu0 0.0
  %1381 = vmatpush1.msra.mxu0 %v507
  %1382 = vmatprep.subr.mxu0 0.0
  %1383 = vmatpush1.msra.mxu0 0.0
  %1384 = vmatprep.subr.mxu0 0.0
  %1385 = vmatpush1.msra.mxu0 0.0
  %1386 = vmatprep.subr.mxu0 0.0
  %1387 = vmatpush1.msra.mxu0 0.0
  %1388 = vmatprep.subr.mxu0 0.0
  %1389 = vmatpush1.msra.mxu0 0.0
  %1390 = vmatprep.subr.mxu0 0.0
  %1391 = vmatpush1.msra.mxu0 0.0
  %1392 = vmatprep.subr.mxu0 0.0
  %1393 = vmatpush1.msra.mxu0 0.0
  %1394 = vmatprep.subr.mxu0 0.0
  %1395 = vmatpush1.msra.mxu0 0.0
  %1396 = vmatprep.subr.mxu0 0.0
  %1397 = vmatpush1.msra.mxu0 0.0
  %1398 = vmatprep.subr.mxu0 0.0
  %1399 = vmatpush1.msra.mxu0 0.0
  %1400 = vmatprep.subr.mxu0 0.0
  %1401 = vmatpush1.msra.mxu0 0.0
  %1402 = vmatprep.subr.mxu0 0.0
  %1403 = vmatpush1.msra.mxu0 0.0
  %1404 = vmatprep.subr.mxu0 0.0
  %1405 = vmatpush1.msra.mxu0 0.0
  %1406 = vmatprep.subr.mxu0 0.0
  %1407 = vmatpush1.msra.mxu0 0.0
  %1408 = vmatprep.subr.mxu0 0.0
  %1409 = vmatpush1.msra.mxu0 0.0
  %1410 = vmatprep.subr.mxu0 0.0
  %1411 = vmatpush1.msra.mxu0 0.0
  %1412 = vmatprep.subr.mxu0 0.0
  %1413 = vmatpush1.msra.mxu0 0.0
  %1414 = vmatprep.subr.mxu0 0.0
  %1415 = vmatpush1.msra.mxu0 0.0
  %1416 = vmatprep.subr.mxu0 0.0
  %1417 = vmatpush1.msra.mxu0 0.0
  %1418 = vmatprep.subr.mxu0 0.0
  %1419 = vmatpush1.msra.mxu0 0.0
  %1420 = vmatprep.subr.mxu0 0.0
  %1421 = vmatpush1.msra.mxu0 0.0
  %1422 = vmatprep.subr.mxu0 0.0
  %1423 = vmatpush1.msra.mxu0 0.0
  %1424 = vmatprep.subr.mxu0 0.0
  %1425 = vmatpush1.msra.mxu0 0.0
  %1426 = vmatprep.subr.mxu0 0.0
  %1427 = vmatpush1.msra.mxu0 0.0
  %1428 = vmatprep.subr.mxu0 0.0
  %1429 = vmatpush1.msra.mxu0 0.0
  %1430 = vmatprep.subr.mxu0 0.0
  %1431 = vmatpush1.msra.mxu0 0.0
  %1432 = vmatprep.subr.mxu0 0.0
  %1433 = vmatpush1.msra.mxu0 0.0
  %1434 = vmatprep.subr.mxu0 0.0
  %1435 = vmatpush1.msra.mxu0 0.0
  %1436 = vmatprep.subr.mxu0 0.0
  %1437 = vmatpush1.msra.mxu0 0.0
  %1438 = vmatprep.subr.mxu0 0.0
  %1439 = vmatpush1.msra.mxu0 0.0
  %1440 = vmatprep.subr.mxu0 0.0
  %1441 = vmatpush1.msra.mxu0 0.0
  %1442 = vmatprep.subr.mxu0 0.0
  %1443 = vmatpush1.msra.mxu0 0.0
  %1444 = vmatprep.mubr.f32.mxu0 0.0
  %1445 = vmatmul.mubr.f32.gmra.mrb[0].mxu0 %v1375
  %v1446 = vpop.f32.mrb[0].mxu0
  %v1447 = vadd.f32 0.0, %v1446
  %v1448 = vpop.f32.mrb[0].mxu0
  %1449 = vmatprep.mubr.f32.mxu0 0.0
  %1450 = vmatmul.mubr.f32.gmra.mrb[0].mxu0 %v1378
  %v1451 = vpop.f32.mrb[0].mxu0
  %v1452 = vadd.f32 0.0, %v1451
  %v1453 = vpop.f32.mrb[0].mxu0
  %1454 = vdwg.mxu0
  %v1455 = vmul.f32 %v880, 0.35355338
  %v1456 = vmul.f32 %v885, 0.35355338
  %v1457 = vmul.f32 %v961, 0.35355338
  %v1458 = vmul.f32 %v966, 0.35355338
  %v1459 = vmul.f32 %v1042, 0.35355338
  %v1460 = vmul.f32 %v1047, 0.35355338
  %v1461 = vmul.f32 %v1123, 0.35355338
  %v1462 = vmul.f32 %v1128, 0.35355338
  %v1463 = vmul.f32 %v1204, 0.35355338
  %v1464 = vmul.f32 %v1209, 0.35355338
  %v1465 = vmul.f32 %v1285, 0.35355338
  %v1466 = vmul.f32 %v1290, 0.35355338
  %v1467 = vmul.f32 %v1366, 0.35355338
  %v1468 = vmul.f32 %v1371, 0.35355338
  %v1469 = vmul.f32 %v1447, 0.35355338
  %v1470 = vmul.f32 %v1452, 0.35355338
  %v1471 = vld [vmem:[%s8] sm:$0x1]
  %v1472 = vld [vmem:[%s8 + $0x1] sm:$0x1]
  %v1473 = vld [vmem:[%s8 + $0x2] sm:$0x1]
  %v1474 = vld [vmem:[%s8 + $0x3] sm:$0x1]
  %v1475 = vld [vmem:[%s8 + $0x4] sm:$0x1]
  %v1476 = vld [vmem:[%s8 + $0x5] sm:$0x1]
  %v1477 = vld [vmem:[%s8 + $0x6] sm:$0x1]
  %v1478 = vld [vmem:[%s8 + $0x7] sm:$0x1]
  %v1487 = vlaneseq
  %v1488 = vshrl.u32 %v1487, 7
  %v1489 = vsub.s32 0, %v1488
  %v1490 = vrot.slane %v1471, %v1489
  %v1491 = vlaneseq
  %v1492 = vshrl.u32 %v1491, 7
  %v1493 = vsub.s32 0, %v1492
  %v1494 = vrot.slane %v1472, %v1493
  %v1495 = vlaneseq
  %v1496 = vshrl.u32 %v1495, 7
  %v1497 = vsub.s32 0, %v1496
  %v1498 = vrot.slane %v1473, %v1497
  %v1499 = vlaneseq
  %v1500 = vshrl.u32 %v1499, 7
  %v1501 = vsub.s32 0, %v1500
  %v1502 = vrot.slane %v1474, %v1501
  %v1503 = vlaneseq
  %v1504 = vshrl.u32 %v1503, 7
  %v1505 = vsub.s32 0, %v1504
  %v1506 = vrot.slane %v1475, %v1505
  %v1507 = vlaneseq
  %v1508 = vshrl.u32 %v1507, 7
  %v1509 = vsub.s32 0, %v1508
  %v1510 = vrot.slane %v1476, %v1509
  %v1511 = vlaneseq
  %v1512 = vshrl.u32 %v1511, 7
  %v1513 = vsub.s32 0, %v1512
  %v1514 = vrot.slane %v1477, %v1513
  %v1515 = vlaneseq
  %v1516 = vshrl.u32 %v1515, 7
  %v1517 = vsub.s32 0, %v1516
  %v1518 = vrot.slane %v1478, %v1517
  %1519 = vset.pattern.permute.xlu0 0
  %1520 = vperm.xlu0 %1519, %v1490
  %v1521 = vpop.permute.xlu0 %1520
  %1523 = vset.pattern.permute.xlu0 0
  %1524 = vperm.xlu0 %1523, %v1494
  %v1525 = vpop.permute.xlu0 %1524
  %1527 = vset.pattern.permute.xlu0 0
  %1528 = vperm.xlu0 %1527, %v1498
  %v1529 = vpop.permute.xlu0 %1528
  %1531 = vset.pattern.permute.xlu0 0
  %1532 = vperm.xlu0 %1531, %v1502
  %v1533 = vpop.permute.xlu0 %1532
  %1535 = vset.pattern.permute.xlu0 0
  %1536 = vperm.xlu0 %1535, %v1506
  %v1537 = vpop.permute.xlu0 %1536
  %1539 = vset.pattern.permute.xlu0 0
  %1540 = vperm.xlu0 %1539, %v1510
  %v1541 = vpop.permute.xlu0 %1540
  %1543 = vset.pattern.permute.xlu0 0
  %1544 = vperm.xlu0 %1543, %v1514
  %v1545 = vpop.permute.xlu0 %1544
  %1547 = vset.pattern.permute.xlu0 0
  %1548 = vperm.xlu0 %1547, %v1518
  %v1549 = vpop.permute.xlu0 %1548
  %v1551 = vmul.f32 %v1455, %v1521
  %v1552 = vmul.f32 %v1456, %v1521
  %v1553 = vmul.f32 %v1457, %v1525
  %v1554 = vmul.f32 %v1458, %v1525
  %v1555 = vmul.f32 %v1459, %v1529
  %v1556 = vmul.f32 %v1460, %v1529
  %v1557 = vmul.f32 %v1461, %v1533
  %v1558 = vmul.f32 %v1462, %v1533
  %v1559 = vmul.f32 %v1463, %v1537
  %v1560 = vmul.f32 %v1464, %v1537
  %v1561 = vmul.f32 %v1465, %v1541
  %v1562 = vmul.f32 %v1466, %v1541
  %v1563 = vmul.f32 %v1467, %v1545
  %v1564 = vmul.f32 %v1468, %v1545
  %v1565 = vmul.f32 %v1469, %v1549
  %v1566 = vmul.f32 %v1470, %v1549
  %v1567 = vand.u32 2147483647, %v1551
  %vm1568 = vcmp.le.f32.partialorder %v1567, 0.7853982
  %vm1569 = vcmp.lt.s32.totalorder %v1551, 0
  %v1570 = vand.u32 %v1551, 2139095040
  %v1571 = vshrl.u32 %v1570, 23
  %v1572 = vsub.s32 %v1571, 127
  %v1573 = vand.u32 2147483647, %v1551
  %v1574 = vand.u32 %v1573, 8388607
  %v1575 = vor.u32 %v1574, 8388608
  %v1576 = vsub.s32 0, %v1575
  %v1577 = vadd.s32 %v1572, 1
  %vm1578 = vcmp.gt.s32.totalorder %v1577, 0
  %v1579 = vsel %vm1578, %v1577, 0
  %v1580 = vshrl.u32 %v1579, 5
  %v1581 = vand.u32 %v1579, 31
  %v1582 = vsub.s32 32, %v1581
  %v1583 = vshrl.u32 683565275, %v1582
  %v1584 = vshll.u32 683565275, %v1581
  %v1585 = vshrl.u32 2475754826, %v1582
  %v1586 = vor.u32 %v1584, %v1585
  %v1587 = vshll.u32 2475754826, %v1581
  %v1588 = vshrl.u32 2131351028, %v1582
  %v1589 = vor.u32 %v1587, %v1588
  %v1590 = vshll.u32 2131351028, %v1581
  %v1591 = vshrl.u32 2102212464, %v1582
  %v1592 = vor.u32 %v1590, %v1591
  %v1593 = vshll.u32 2102212464, %v1581
  %v1594 = vshrl.u32 920167782, %v1582
  %v1595 = vor.u32 %v1593, %v1594
  %v1596 = vshll.u32 920167782, %v1581
  %v1597 = vshrl.u32 1326507024, %v1582
  %v1598 = vor.u32 %v1596, %v1597
  %vm1599 = vcmp.lt.s32.totalorder %v1580, 1
  %vm1600 = vcmp.lt.s32.totalorder %v1580, 2
  %vm1601 = vcmp.lt.s32.totalorder %v1580, 3
  %vm1602 = vcmp.lt.s32.totalorder %v1580, 4
  %v1603 = vsel %vm1599, %v1583, %v1586
  %v1604 = vsel %vm1602, %v1592, 2102212464
  %v1605 = vsel %vm1601, %v1589, %v1604
  %v1606 = vsel %vm1600, %v1603, %v1605
  %v1607 = vsel %vm1599, %v1586, %v1589
  %v1608 = vsel %vm1602, %v1595, 920167782
  %v1609 = vsel %vm1601, %v1592, %v1608
  %v1610 = vsel %vm1600, %v1607, %v1609
  %v1611 = vsel %vm1599, %v1589, %v1592
  %v1612 = vsel %vm1602, %v1598, 1326507024
  %v1613 = vsel %vm1601, %v1595, %v1612
  %v1614 = vsel %vm1600, %v1611, %v1613
  %v1615 = vshll.u32 %v1575, 8
  %v1616 = vmul.u32.u64.compose %v1615, %v1614
  %v1617 = vextract.low.u32 %v1616
  %v1618 = vextract.high.u32 %v1616
  %v1619 = vmul.u32.u64.compose %v1615, %v1610
  %v1620 = vextract.low.u32 %v1619
  %v1621 = vextract.high.u32 %v1619
  %v1622 = vmul.u32 %v1615, %v1606
  %v1623 = vadd.s32 %v1618, %v1620
  %vm1624 = vc.u32 %v1618, %v1620
  %v1625 = vadd.s32 %v1621, 1
  %v1626 = vsel %vm1624, %v1625, %v1621
  %v1627 = vadd.s32 %v1622, %v1626
  %v1628 = vadd.s32 %v1627, 536870912
  %v1629 = vshrl.u32 %v1628, 30
  %v1630 = vshll.u32 %v1629, 30
  %v1631 = vsub.s32 %v1627, %v1630
  %vm1632 = vcmp.lt.s32.totalorder %v1631, 0
  %v1633 = vsub.s32 0, %v1631
  %v1634 = vsel %vm1632, %v1633, %v1631
  %v1635 = vclz %v1634
  %v1636 = vsub.s32 %v1635, 2
  %vm1637 = vcmp.gt.s32.totalorder 0, %v1636
  %v1638 = vsel %vm1637, 0, %v1636
  %v1639 = vsub.s32 32, %v1638
  %v1640 = vshll.u32 %v1631, %v1638
  %v1641 = vshrl.u32 %v1623, %v1639
  %v1642 = vor.u32 %v1640, %v1641
  %v1643 = vsub.s32 4294967266, %v1638
  %v1644 = vadd.s32 %v1643, 127
  %v1645 = vshll.u32 %v1644, 23
  %v1646 = vor.u32 4788187, %v1645
  %v1647 = vand.u32 2147483647, %v1646
  %v1649 = vcvt.s32.f32 %v1642
  %v1650 = vmul.f32 %v1649, %v1647
  %v1651 = vxor.u32 %v1650, 2147483648
  %v1652 = vsel %vm1569, %v1651, %v1650
  %v1653 = vsub.s32 4, %v1629
  %v1654 = vsel %vm1569, %v1653, %v1629
  %v1655 = vsel %vm1568, %v1551, %v1652
  %v1656 = vsel %vm1568, 0, %v1654
  %v1657 = vcosq.f32.pop %v1655
  %v1658 = vsinq.f32.pop %v1655
  %vm1659 = vweird.f32 %v1551
  %v1660 = vadd.s32 %v1656, 3
  %v1661 = vand.u32 %v1660, 3
  %vm1662 = vcmp.lt.s32.totalorder %v1661, 2
  %vm1663 = vcmp.eq.s32.totalorder %v1661, 0
  %v1664 = vxor.u32 %v1658, 2147483648
  %v1665 = vsel %vm1663, %v1657, %v1664
  %vm1666 = vcmp.eq.s32.totalorder %v1661, 2
  %v1667 = vxor.u32 %v1657, 2147483648
  %v1668 = vsel %vm1666, %v1667, %v1658
  %v1669 = vsel %vm1662, %v1665, %v1668
  %v1670 = vsel %vm1659, nan, %v1669
  %v1671 = vand.u32 2147483647, %v1552
  %vm1672 = vcmp.le.f32.partialorder %v1671, 0.7853982
  %vm1673 = vcmp.lt.s32.totalorder %v1552, 0
  %v1674 = vand.u32 %v1552, 2139095040
  %v1675 = vshrl.u32 %v1674, 23
  %v1676 = vsub.s32 %v1675, 127
  %v1677 = vand.u32 2147483647, %v1552
  %v1678 = vand.u32 %v1677, 8388607
  %v1679 = vor.u32 %v1678, 8388608
  %v1680 = vsub.s32 0, %v1679
  %v1681 = vadd.s32 %v1676, 1
  %vm1682 = vcmp.gt.s32.totalorder %v1681, 0
  %v1683 = vsel %vm1682, %v1681, 0
  %v1684 = vshrl.u32 %v1683, 5
  %v1685 = vand.u32 %v1683, 31
  %v1686 = vsub.s32 32, %v1685
  %v1687 = vshrl.u32 683565275, %v1686
  %v1688 = vshll.u32 683565275, %v1685
  %v1689 = vshrl.u32 2475754826, %v1686
  %v1690 = vor.u32 %v1688, %v1689
  %v1691 = vshll.u32 2475754826, %v1685
  %v1692 = vshrl.u32 2131351028, %v1686
  %v1693 = vor.u32 %v1691, %v1692
  %v1694 = vshll.u32 2131351028, %v1685
  %v1695 = vshrl.u32 2102212464, %v1686
  %v1696 = vor.u32 %v1694, %v1695
  %v1697 = vshll.u32 2102212464, %v1685
  %v1698 = vshrl.u32 920167782, %v1686
  %v1699 = vor.u32 %v1697, %v1698
  %v1700 = vshll.u32 920167782, %v1685
  %v1701 = vshrl.u32 1326507024, %v1686
  %v1702 = vor.u32 %v1700, %v1701
  %vm1703 = vcmp.lt.s32.totalorder %v1684, 1
  %vm1704 = vcmp.lt.s32.totalorder %v1684, 2
  %vm1705 = vcmp.lt.s32.totalorder %v1684, 3
  %vm1706 = vcmp.lt.s32.totalorder %v1684, 4
  %v1707 = vsel %vm1703, %v1687, %v1690
  %v1708 = vsel %vm1706, %v1696, 2102212464
  %v1709 = vsel %vm1705, %v1693, %v1708
  %v1710 = vsel %vm1704, %v1707, %v1709
  %v1711 = vsel %vm1703, %v1690, %v1693
  %v1712 = vsel %vm1706, %v1699, 920167782
  %v1713 = vsel %vm1705, %v1696, %v1712
  %v1714 = vsel %vm1704, %v1711, %v1713
  %v1715 = vsel %vm1703, %v1693, %v1696
  %v1716 = vsel %vm1706, %v1702, 1326507024
  %v1717 = vsel %vm1705, %v1699, %v1716
  %v1718 = vsel %vm1704, %v1715, %v1717
  %v1719 = vshll.u32 %v1679, 8
  %v1720 = vmul.u32.u64.compose %v1719, %v1718
  %v1721 = vextract.low.u32 %v1720
  %v1722 = vextract.high.u32 %v1720
  %v1723 = vmul.u32.u64.compose %v1719, %v1714
  %v1724 = vextract.low.u32 %v1723
  %v1725 = vextract.high.u32 %v1723
  %v1726 = vmul.u32 %v1719, %v1710
  %v1727 = vadd.s32 %v1722, %v1724
  %vm1728 = vc.u32 %v1722, %v1724
  %v1729 = vadd.s32 %v1725, 1
  %v1730 = vsel %vm1728, %v1729, %v1725
  %v1731 = vadd.s32 %v1726, %v1730
  %v1732 = vadd.s32 %v1731, 536870912
  %v1733 = vshrl.u32 %v1732, 30
  %v1734 = vshll.u32 %v1733, 30
  %v1735 = vsub.s32 %v1731, %v1734
  %vm1736 = vcmp.lt.s32.totalorder %v1735, 0
  %v1737 = vsub.s32 0, %v1735
  %v1738 = vsel %vm1736, %v1737, %v1735
  %v1739 = vclz %v1738
  %v1740 = vsub.s32 %v1739, 2
  %vm1741 = vcmp.gt.s32.totalorder 0, %v1740
  %v1742 = vsel %vm1741, 0, %v1740
  %v1743 = vsub.s32 32, %v1742
  %v1744 = vshll.u32 %v1735, %v1742
  %v1745 = vshrl.u32 %v1727, %v1743
  %v1746 = vor.u32 %v1744, %v1745
  %v1747 = vsub.s32 4294967266, %v1742
  %v1748 = vadd.s32 %v1747, 127
  %v1749 = vshll.u32 %v1748, 23
  %v1750 = vor.u32 4788187, %v1749
  %v1751 = vand.u32 2147483647, %v1750
  %v1753 = vcvt.s32.f32 %v1746
  %v1754 = vmul.f32 %v1753, %v1751
  %v1755 = vxor.u32 %v1754, 2147483648
  %v1756 = vsel %vm1673, %v1755, %v1754
  %v1757 = vsub.s32 4, %v1733
  %v1758 = vsel %vm1673, %v1757, %v1733
  %v1759 = vsel %vm1672, %v1552, %v1756
  %v1760 = vsel %vm1672, 0, %v1758
  %v1761 = vcosq.f32.pop %v1759
  %v1762 = vsinq.f32.pop %v1759
  %vm1763 = vweird.f32 %v1552
  %v1764 = vadd.s32 %v1760, 3
  %v1765 = vand.u32 %v1764, 3
  %vm1766 = vcmp.lt.s32.totalorder %v1765, 2
  %vm1767 = vcmp.eq.s32.totalorder %v1765, 0
  %v1768 = vxor.u32 %v1762, 2147483648
  %v1769 = vsel %vm1767, %v1761, %v1768
  %vm1770 = vcmp.eq.s32.totalorder %v1765, 2
  %v1771 = vxor.u32 %v1761, 2147483648
  %v1772 = vsel %vm1770, %v1771, %v1762
  %v1773 = vsel %vm1766, %v1769, %v1772
  %v1774 = vsel %vm1763, nan, %v1773
  %v1775 = vand.u32 2147483647, %v1553
  %vm1776 = vcmp.le.f32.partialorder %v1775, 0.7853982
  %vm1777 = vcmp.lt.s32.totalorder %v1553, 0
  %v1778 = vand.u32 %v1553, 2139095040
  %v1779 = vshrl.u32 %v1778, 23
  %v1780 = vsub.s32 %v1779, 127
  %v1781 = vand.u32 2147483647, %v1553
  %v1782 = vand.u32 %v1781, 8388607
  %v1783 = vor.u32 %v1782, 8388608
  %v1784 = vsub.s32 0, %v1783
  %v1785 = vadd.s32 %v1780, 1
  %vm1786 = vcmp.gt.s32.totalorder %v1785, 0
  %v1787 = vsel %vm1786, %v1785, 0
  %v1788 = vshrl.u32 %v1787, 5
  %v1789 = vand.u32 %v1787, 31
  %v1790 = vsub.s32 32, %v1789
  %v1791 = vshrl.u32 683565275, %v1790
  %v1792 = vshll.u32 683565275, %v1789
  %v1793 = vshrl.u32 2475754826, %v1790
  %v1794 = vor.u32 %v1792, %v1793
  %v1795 = vshll.u32 2475754826, %v1789
  %v1796 = vshrl.u32 2131351028, %v1790
  %v1797 = vor.u32 %v1795, %v1796
  %v1798 = vshll.u32 2131351028, %v1789
  %v1799 = vshrl.u32 2102212464, %v1790
  %v1800 = vor.u32 %v1798, %v1799
  %v1801 = vshll.u32 2102212464, %v1789
  %v1802 = vshrl.u32 920167782, %v1790
  %v1803 = vor.u32 %v1801, %v1802
  %v1804 = vshll.u32 920167782, %v1789
  %v1805 = vshrl.u32 1326507024, %v1790
  %v1806 = vor.u32 %v1804, %v1805
  %vm1807 = vcmp.lt.s32.totalorder %v1788, 1
  %vm1808 = vcmp.lt.s32.totalorder %v1788, 2
  %vm1809 = vcmp.lt.s32.totalorder %v1788, 3
  %vm1810 = vcmp.lt.s32.totalorder %v1788, 4
  %v1811 = vsel %vm1807, %v1791, %v1794
  %v1812 = vsel %vm1810, %v1800, 2102212464
  %v1813 = vsel %vm1809, %v1797, %v1812
  %v1814 = vsel %vm1808, %v1811, %v1813
  %v1815 = vsel %vm1807, %v1794, %v1797
  %v1816 = vsel %vm1810, %v1803, 920167782
  %v1817 = vsel %vm1809, %v1800, %v1816
  %v1818 = vsel %vm1808, %v1815, %v1817
  %v1819 = vsel %vm1807, %v1797, %v1800
  %v1820 = vsel %vm1810, %v1806, 1326507024
  %v1821 = vsel %vm1809, %v1803, %v1820
  %v1822 = vsel %vm1808, %v1819, %v1821
  %v1823 = vshll.u32 %v1783, 8
  %v1824 = vmul.u32.u64.compose %v1823, %v1822
  %v1825 = vextract.low.u32 %v1824
  %v1826 = vextract.high.u32 %v1824
  %v1827 = vmul.u32.u64.compose %v1823, %v1818
  %v1828 = vextract.low.u32 %v1827
  %v1829 = vextract.high.u32 %v1827
  %v1830 = vmul.u32 %v1823, %v1814
  %v1831 = vadd.s32 %v1826, %v1828
  %vm1832 = vc.u32 %v1826, %v1828
  %v1833 = vadd.s32 %v1829, 1
  %v1834 = vsel %vm1832, %v1833, %v1829
  %v1835 = vadd.s32 %v1830, %v1834
  %v1836 = vadd.s32 %v1835, 536870912
  %v1837 = vshrl.u32 %v1836, 30
  %v1838 = vshll.u32 %v1837, 30
  %v1839 = vsub.s32 %v1835, %v1838
  %vm1840 = vcmp.lt.s32.totalorder %v1839, 0
  %v1841 = vsub.s32 0, %v1839
  %v1842 = vsel %vm1840, %v1841, %v1839
  %v1843 = vclz %v1842
  %v1844 = vsub.s32 %v1843, 2
  %vm1845 = vcmp.gt.s32.totalorder 0, %v1844
  %v1846 = vsel %vm1845, 0, %v1844
  %v1847 = vsub.s32 32, %v1846
  %v1848 = vshll.u32 %v1839, %v1846
  %v1849 = vshrl.u32 %v1831, %v1847
  %v1850 = vor.u32 %v1848, %v1849
  %v1851 = vsub.s32 4294967266, %v1846
  %v1852 = vadd.s32 %v1851, 127
  %v1853 = vshll.u32 %v1852, 23
  %v1854 = vor.u32 4788187, %v1853
  %v1855 = vand.u32 2147483647, %v1854
  %v1857 = vcvt.s32.f32 %v1850
  %v1858 = vmul.f32 %v1857, %v1855
  %v1859 = vxor.u32 %v1858, 2147483648
  %v1860 = vsel %vm1777, %v1859, %v1858
  %v1861 = vsub.s32 4, %v1837
  %v1862 = vsel %vm1777, %v1861, %v1837
  %v1863 = vsel %vm1776, %v1553, %v1860
  %v1864 = vsel %vm1776, 0, %v1862
  %v1865 = vcosq.f32.pop %v1863
  %v1866 = vsinq.f32.pop %v1863
  %vm1867 = vweird.f32 %v1553
  %v1868 = vadd.s32 %v1864, 3
  %v1869 = vand.u32 %v1868, 3
  %vm1870 = vcmp.lt.s32.totalorder %v1869, 2
  %vm1871 = vcmp.eq.s32.totalorder %v1869, 0
  %v1872 = vxor.u32 %v1866, 2147483648
  %v1873 = vsel %vm1871, %v1865, %v1872
  %vm1874 = vcmp.eq.s32.totalorder %v1869, 2
  %v1875 = vxor.u32 %v1865, 2147483648
  %v1876 = vsel %vm1874, %v1875, %v1866
  %v1877 = vsel %vm1870, %v1873, %v1876
  %v1878 = vsel %vm1867, nan, %v1877
  %v1879 = vand.u32 2147483647, %v1554
  %vm1880 = vcmp.le.f32.partialorder %v1879, 0.7853982
  %vm1881 = vcmp.lt.s32.totalorder %v1554, 0
  %v1882 = vand.u32 %v1554, 2139095040
  %v1883 = vshrl.u32 %v1882, 23
  %v1884 = vsub.s32 %v1883, 127
  %v1885 = vand.u32 2147483647, %v1554
  %v1886 = vand.u32 %v1885, 8388607
  %v1887 = vor.u32 %v1886, 8388608
  %v1888 = vsub.s32 0, %v1887
  %v1889 = vadd.s32 %v1884, 1
  %vm1890 = vcmp.gt.s32.totalorder %v1889, 0
  %v1891 = vsel %vm1890, %v1889, 0
  %v1892 = vshrl.u32 %v1891, 5
  %v1893 = vand.u32 %v1891, 31
  %v1894 = vsub.s32 32, %v1893
  %v1895 = vshrl.u32 683565275, %v1894
  %v1896 = vshll.u32 683565275, %v1893
  %v1897 = vshrl.u32 2475754826, %v1894
  %v1898 = vor.u32 %v1896, %v1897
  %v1899 = vshll.u32 2475754826, %v1893
  %v1900 = vshrl.u32 2131351028, %v1894
  %v1901 = vor.u32 %v1899, %v1900
  %v1902 = vshll.u32 2131351028, %v1893
  %v1903 = vshrl.u32 2102212464, %v1894
  %v1904 = vor.u32 %v1902, %v1903
  %v1905 = vshll.u32 2102212464, %v1893
  %v1906 = vshrl.u32 920167782, %v1894
  %v1907 = vor.u32 %v1905, %v1906
  %v1908 = vshll.u32 920167782, %v1893
  %v1909 = vshrl.u32 1326507024, %v1894
  %v1910 = vor.u32 %v1908, %v1909
  %vm1911 = vcmp.lt.s32.totalorder %v1892, 1
  %vm1912 = vcmp.lt.s32.totalorder %v1892, 2
  %vm1913 = vcmp.lt.s32.totalorder %v1892, 3
  %vm1914 = vcmp.lt.s32.totalorder %v1892, 4
  %v1915 = vsel %vm1911, %v1895, %v1898
  %v1916 = vsel %vm1914, %v1904, 2102212464
  %v1917 = vsel %vm1913, %v1901, %v1916
  %v1918 = vsel %vm1912, %v1915, %v1917
  %v1919 = vsel %vm1911, %v1898, %v1901
  %v1920 = vsel %vm1914, %v1907, 920167782
  %v1921 = vsel %vm1913, %v1904, %v1920
  %v1922 = vsel %vm1912, %v1919, %v1921
  %v1923 = vsel %vm1911, %v1901, %v1904
  %v1924 = vsel %vm1914, %v1910, 1326507024
  %v1925 = vsel %vm1913, %v1907, %v1924
  %v1926 = vsel %vm1912, %v1923, %v1925
  %v1927 = vshll.u32 %v1887, 8
  %v1928 = vmul.u32.u64.compose %v1927, %v1926
  %v1929 = vextract.low.u32 %v1928
  %v1930 = vextract.high.u32 %v1928
  %v1931 = vmul.u32.u64.compose %v1927, %v1922
  %v1932 = vextract.low.u32 %v1931
  %v1933 = vextract.high.u32 %v1931
  %v1934 = vmul.u32 %v1927, %v1918
  %v1935 = vadd.s32 %v1930, %v1932
  %vm1936 = vc.u32 %v1930, %v1932
  %v1937 = vadd.s32 %v1933, 1
  %v1938 = vsel %vm1936, %v1937, %v1933
  %v1939 = vadd.s32 %v1934, %v1938
  %v1940 = vadd.s32 %v1939, 536870912
  %v1941 = vshrl.u32 %v1940, 30
  %v1942 = vshll.u32 %v1941, 30
  %v1943 = vsub.s32 %v1939, %v1942
  %vm1944 = vcmp.lt.s32.totalorder %v1943, 0
  %v1945 = vsub.s32 0, %v1943
  %v1946 = vsel %vm1944, %v1945, %v1943
  %v1947 = vclz %v1946
  %v1948 = vsub.s32 %v1947, 2
  %vm1949 = vcmp.gt.s32.totalorder 0, %v1948
  %v1950 = vsel %vm1949, 0, %v1948
  %v1951 = vsub.s32 32, %v1950
  %v1952 = vshll.u32 %v1943, %v1950
  %v1953 = vshrl.u32 %v1935, %v1951
  %v1954 = vor.u32 %v1952, %v1953
  %v1955 = vsub.s32 4294967266, %v1950
  %v1956 = vadd.s32 %v1955, 127
  %v1957 = vshll.u32 %v1956, 23
  %v1958 = vor.u32 4788187, %v1957
  %v1959 = vand.u32 2147483647, %v1958
  %v1961 = vcvt.s32.f32 %v1954
  %v1962 = vmul.f32 %v1961, %v1959
  %v1963 = vxor.u32 %v1962, 2147483648
  %v1964 = vsel %vm1881, %v1963, %v1962
  %v1965 = vsub.s32 4, %v1941
  %v1966 = vsel %vm1881, %v1965, %v1941
  %v1967 = vsel %vm1880, %v1554, %v1964
  %v1968 = vsel %vm1880, 0, %v1966
  %v1969 = vcosq.f32.pop %v1967
  %v1970 = vsinq.f32.pop %v1967
  %vm1971 = vweird.f32 %v1554
  %v1972 = vadd.s32 %v1968, 3
  %v1973 = vand.u32 %v1972, 3
  %vm1974 = vcmp.lt.s32.totalorder %v1973, 2
  %vm1975 = vcmp.eq.s32.totalorder %v1973, 0
  %v1976 = vxor.u32 %v1970, 2147483648
  %v1977 = vsel %vm1975, %v1969, %v1976
  %vm1978 = vcmp.eq.s32.totalorder %v1973, 2
  %v1979 = vxor.u32 %v1969, 2147483648
  %v1980 = vsel %vm1978, %v1979, %v1970
  %v1981 = vsel %vm1974, %v1977, %v1980
  %v1982 = vsel %vm1971, nan, %v1981
  %v1983 = vand.u32 2147483647, %v1555
  %vm1984 = vcmp.le.f32.partialorder %v1983, 0.7853982
  %vm1985 = vcmp.lt.s32.totalorder %v1555, 0
  %v1986 = vand.u32 %v1555, 2139095040
  %v1987 = vshrl.u32 %v1986, 23
  %v1988 = vsub.s32 %v1987, 127
  %v1989 = vand.u32 2147483647, %v1555
  %v1990 = vand.u32 %v1989, 8388607
  %v1991 = vor.u32 %v1990, 8388608
  %v1992 = vsub.s32 0, %v1991
  %v1993 = vadd.s32 %v1988, 1
  %vm1994 = vcmp.gt.s32.totalorder %v1993, 0
  %v1995 = vsel %vm1994, %v1993, 0
  %v1996 = vshrl.u32 %v1995, 5
  %v1997 = vand.u32 %v1995, 31
  %v1998 = vsub.s32 32, %v1997
  %v1999 = vshrl.u32 683565275, %v1998
  %v2000 = vshll.u32 683565275, %v1997
  %v2001 = vshrl.u32 2475754826, %v1998
  %v2002 = vor.u32 %v2000, %v2001
  %v2003 = vshll.u32 2475754826, %v1997
  %v2004 = vshrl.u32 2131351028, %v1998
  %v2005 = vor.u32 %v2003, %v2004
  %v2006 = vshll.u32 2131351028, %v1997
  %v2007 = vshrl.u32 2102212464, %v1998
  %v2008 = vor.u32 %v2006, %v2007
  %v2009 = vshll.u32 2102212464, %v1997
  %v2010 = vshrl.u32 920167782, %v1998
  %v2011 = vor.u32 %v2009, %v2010
  %v2012 = vshll.u32 920167782, %v1997
  %v2013 = vshrl.u32 1326507024, %v1998
  %v2014 = vor.u32 %v2012, %v2013
  %vm2015 = vcmp.lt.s32.totalorder %v1996, 1
  %vm2016 = vcmp.lt.s32.totalorder %v1996, 2
  %vm2017 = vcmp.lt.s32.totalorder %v1996, 3
  %vm2018 = vcmp.lt.s32.totalorder %v1996, 4
  %v2019 = vsel %vm2015, %v1999, %v2002
  %v2020 = vsel %vm2018, %v2008, 2102212464
  %v2021 = vsel %vm2017, %v2005, %v2020
  %v2022 = vsel %vm2016, %v2019, %v2021
  %v2023 = vsel %vm2015, %v2002, %v2005
  %v2024 = vsel %vm2018, %v2011, 920167782
  %v2025 = vsel %vm2017, %v2008, %v2024
  %v2026 = vsel %vm2016, %v2023, %v2025
  %v2027 = vsel %vm2015, %v2005, %v2008
  %v2028 = vsel %vm2018, %v2014, 1326507024
  %v2029 = vsel %vm2017, %v2011, %v2028
  %v2030 = vsel %vm2016, %v2027, %v2029
  %v2031 = vshll.u32 %v1991, 8
  %v2032 = vmul.u32.u64.compose %v2031, %v2030
  %v2033 = vextract.low.u32 %v2032
  %v2034 = vextract.high.u32 %v2032
  %v2035 = vmul.u32.u64.compose %v2031, %v2026
  %v2036 = vextract.low.u32 %v2035
  %v2037 = vextract.high.u32 %v2035
  %v2038 = vmul.u32 %v2031, %v2022
  %v2039 = vadd.s32 %v2034, %v2036
  %vm2040 = vc.u32 %v2034, %v2036
  %v2041 = vadd.s32 %v2037, 1
  %v2042 = vsel %vm2040, %v2041, %v2037
  %v2043 = vadd.s32 %v2038, %v2042
  %v2044 = vadd.s32 %v2043, 536870912
  %v2045 = vshrl.u32 %v2044, 30
  %v2046 = vshll.u32 %v2045, 30
  %v2047 = vsub.s32 %v2043, %v2046
  %vm2048 = vcmp.lt.s32.totalorder %v2047, 0
  %v2049 = vsub.s32 0, %v2047
  %v2050 = vsel %vm2048, %v2049, %v2047
  %v2051 = vclz %v2050
  %v2052 = vsub.s32 %v2051, 2
  %vm2053 = vcmp.gt.s32.totalorder 0, %v2052
  %v2054 = vsel %vm2053, 0, %v2052
  %v2055 = vsub.s32 32, %v2054
  %v2056 = vshll.u32 %v2047, %v2054
  %v2057 = vshrl.u32 %v2039, %v2055
  %v2058 = vor.u32 %v2056, %v2057
  %v2059 = vsub.s32 4294967266, %v2054
  %v2060 = vadd.s32 %v2059, 127
  %v2061 = vshll.u32 %v2060, 23
  %v2062 = vor.u32 4788187, %v2061
  %v2063 = vand.u32 2147483647, %v2062
  %v2065 = vcvt.s32.f32 %v2058
  %v2066 = vmul.f32 %v2065, %v2063
  %v2067 = vxor.u32 %v2066, 2147483648
  %v2068 = vsel %vm1985, %v2067, %v2066
  %v2069 = vsub.s32 4, %v2045
  %v2070 = vsel %vm1985, %v2069, %v2045
  %v2071 = vsel %vm1984, %v1555, %v2068
  %v2072 = vsel %vm1984, 0, %v2070
  %v2073 = vcosq.f32.pop %v2071
  %v2074 = vsinq.f32.pop %v2071
  %vm2075 = vweird.f32 %v1555
  %v2076 = vadd.s32 %v2072, 3
  %v2077 = vand.u32 %v2076, 3
  %vm2078 = vcmp.lt.s32.totalorder %v2077, 2
  %vm2079 = vcmp.eq.s32.totalorder %v2077, 0
  %v2080 = vxor.u32 %v2074, 2147483648
  %v2081 = vsel %vm2079, %v2073, %v2080
  %vm2082 = vcmp.eq.s32.totalorder %v2077, 2
  %v2083 = vxor.u32 %v2073, 2147483648
  %v2084 = vsel %vm2082, %v2083, %v2074
  %v2085 = vsel %vm2078, %v2081, %v2084
  %v2086 = vsel %vm2075, nan, %v2085
  %v2087 = vand.u32 2147483647, %v1556
  %vm2088 = vcmp.le.f32.partialorder %v2087, 0.7853982
  %vm2089 = vcmp.lt.s32.totalorder %v1556, 0
  %v2090 = vand.u32 %v1556, 2139095040
  %v2091 = vshrl.u32 %v2090, 23
  %v2092 = vsub.s32 %v2091, 127
  %v2093 = vand.u32 2147483647, %v1556
  %v2094 = vand.u32 %v2093, 8388607
  %v2095 = vor.u32 %v2094, 8388608
  %v2096 = vsub.s32 0, %v2095
  %v2097 = vadd.s32 %v2092, 1
  %vm2098 = vcmp.gt.s32.totalorder %v2097, 0
  %v2099 = vsel %vm2098, %v2097, 0
  %v2100 = vshrl.u32 %v2099, 5
  %v2101 = vand.u32 %v2099, 31
  %v2102 = vsub.s32 32, %v2101
  %v2103 = vshrl.u32 683565275, %v2102
  %v2104 = vshll.u32 683565275, %v2101
  %v2105 = vshrl.u32 2475754826, %v2102
  %v2106 = vor.u32 %v2104, %v2105
  %v2107 = vshll.u32 2475754826, %v2101
  %v2108 = vshrl.u32 2131351028, %v2102
  %v2109 = vor.u32 %v2107, %v2108
  %v2110 = vshll.u32 2131351028, %v2101
  %v2111 = vshrl.u32 2102212464, %v2102
  %v2112 = vor.u32 %v2110, %v2111
  %v2113 = vshll.u32 2102212464, %v2101
  %v2114 = vshrl.u32 920167782, %v2102
  %v2115 = vor.u32 %v2113, %v2114
  %v2116 = vshll.u32 920167782, %v2101
  %v2117 = vshrl.u32 1326507024, %v2102
  %v2118 = vor.u32 %v2116, %v2117
  %vm2119 = vcmp.lt.s32.totalorder %v2100, 1
  %vm2120 = vcmp.lt.s32.totalorder %v2100, 2
  %vm2121 = vcmp.lt.s32.totalorder %v2100, 3
  %vm2122 = vcmp.lt.s32.totalorder %v2100, 4
  %v2123 = vsel %vm2119, %v2103, %v2106
  %v2124 = vsel %vm2122, %v2112, 2102212464
  %v2125 = vsel %vm2121, %v2109, %v2124
  %v2126 = vsel %vm2120, %v2123, %v2125
  %v2127 = vsel %vm2119, %v2106, %v2109
  %v2128 = vsel %vm2122, %v2115, 920167782
  %v2129 = vsel %vm2121, %v2112, %v2128
  %v2130 = vsel %vm2120, %v2127, %v2129
  %v2131 = vsel %vm2119, %v2109, %v2112
  %v2132 = vsel %vm2122, %v2118, 1326507024
  %v2133 = vsel %vm2121, %v2115, %v2132
  %v2134 = vsel %vm2120, %v2131, %v2133
  %v2135 = vshll.u32 %v2095, 8
  %v2136 = vmul.u32.u64.compose %v2135, %v2134
  %v2137 = vextract.low.u32 %v2136
  %v2138 = vextract.high.u32 %v2136
  %v2139 = vmul.u32.u64.compose %v2135, %v2130
  %v2140 = vextract.low.u32 %v2139
  %v2141 = vextract.high.u32 %v2139
  %v2142 = vmul.u32 %v2135, %v2126
  %v2143 = vadd.s32 %v2138, %v2140
  %vm2144 = vc.u32 %v2138, %v2140
  %v2145 = vadd.s32 %v2141, 1
  %v2146 = vsel %vm2144, %v2145, %v2141
  %v2147 = vadd.s32 %v2142, %v2146
  %v2148 = vadd.s32 %v2147, 536870912
  %v2149 = vshrl.u32 %v2148, 30
  %v2150 = vshll.u32 %v2149, 30
  %v2151 = vsub.s32 %v2147, %v2150
  %vm2152 = vcmp.lt.s32.totalorder %v2151, 0
  %v2153 = vsub.s32 0, %v2151
  %v2154 = vsel %vm2152, %v2153, %v2151
  %v2155 = vclz %v2154
  %v2156 = vsub.s32 %v2155, 2
  %vm2157 = vcmp.gt.s32.totalorder 0, %v2156
  %v2158 = vsel %vm2157, 0, %v2156
  %v2159 = vsub.s32 32, %v2158
  %v2160 = vshll.u32 %v2151, %v2158
  %v2161 = vshrl.u32 %v2143, %v2159
  %v2162 = vor.u32 %v2160, %v2161
  %v2163 = vsub.s32 4294967266, %v2158
  %v2164 = vadd.s32 %v2163, 127
  %v2165 = vshll.u32 %v2164, 23
  %v2166 = vor.u32 4788187, %v2165
  %v2167 = vand.u32 2147483647, %v2166
  %v2169 = vcvt.s32.f32 %v2162
  %v2170 = vmul.f32 %v2169, %v2167
  %v2171 = vxor.u32 %v2170, 2147483648
  %v2172 = vsel %vm2089, %v2171, %v2170
  %v2173 = vsub.s32 4, %v2149
  %v2174 = vsel %vm2089, %v2173, %v2149
  %v2175 = vsel %vm2088, %v1556, %v2172
  %v2176 = vsel %vm2088, 0, %v2174
  %v2177 = vcosq.f32.pop %v2175
  %v2178 = vsinq.f32.pop %v2175
  %vm2179 = vweird.f32 %v1556
  %v2180 = vadd.s32 %v2176, 3
  %v2181 = vand.u32 %v2180, 3
  %vm2182 = vcmp.lt.s32.totalorder %v2181, 2
  %vm2183 = vcmp.eq.s32.totalorder %v2181, 0
  %v2184 = vxor.u32 %v2178, 2147483648
  %v2185 = vsel %vm2183, %v2177, %v2184
  %vm2186 = vcmp.eq.s32.totalorder %v2181, 2
  %v2187 = vxor.u32 %v2177, 2147483648
  %v2188 = vsel %vm2186, %v2187, %v2178
  %v2189 = vsel %vm2182, %v2185, %v2188
  %v2190 = vsel %vm2179, nan, %v2189
  %v2191 = vand.u32 2147483647, %v1557
  %vm2192 = vcmp.le.f32.partialorder %v2191, 0.7853982
  %vm2193 = vcmp.lt.s32.totalorder %v1557, 0
  %v2194 = vand.u32 %v1557, 2139095040
  %v2195 = vshrl.u32 %v2194, 23
  %v2196 = vsub.s32 %v2195, 127
  %v2197 = vand.u32 2147483647, %v1557
  %v2198 = vand.u32 %v2197, 8388607
  %v2199 = vor.u32 %v2198, 8388608
  %v2200 = vsub.s32 0, %v2199
  %v2201 = vadd.s32 %v2196, 1
  %vm2202 = vcmp.gt.s32.totalorder %v2201, 0
  %v2203 = vsel %vm2202, %v2201, 0
  %v2204 = vshrl.u32 %v2203, 5
  %v2205 = vand.u32 %v2203, 31
  %v2206 = vsub.s32 32, %v2205
  %v2207 = vshrl.u32 683565275, %v2206
  %v2208 = vshll.u32 683565275, %v2205
  %v2209 = vshrl.u32 2475754826, %v2206
  %v2210 = vor.u32 %v2208, %v2209
  %v2211 = vshll.u32 2475754826, %v2205
  %v2212 = vshrl.u32 2131351028, %v2206
  %v2213 = vor.u32 %v2211, %v2212
  %v2214 = vshll.u32 2131351028, %v2205
  %v2215 = vshrl.u32 2102212464, %v2206
  %v2216 = vor.u32 %v2214, %v2215
  %v2217 = vshll.u32 2102212464, %v2205
  %v2218 = vshrl.u32 920167782, %v2206
  %v2219 = vor.u32 %v2217, %v2218
  %v2220 = vshll.u32 920167782, %v2205
  %v2221 = vshrl.u32 1326507024, %v2206
  %v2222 = vor.u32 %v2220, %v2221
  %vm2223 = vcmp.lt.s32.totalorder %v2204, 1
  %vm2224 = vcmp.lt.s32.totalorder %v2204, 2
  %vm2225 = vcmp.lt.s32.totalorder %v2204, 3
  %vm2226 = vcmp.lt.s32.totalorder %v2204, 4
  %v2227 = vsel %vm2223, %v2207, %v2210
  %v2228 = vsel %vm2226, %v2216, 2102212464
  %v2229 = vsel %vm2225, %v2213, %v2228
  %v2230 = vsel %vm2224, %v2227, %v2229
  %v2231 = vsel %vm2223, %v2210, %v2213
  %v2232 = vsel %vm2226, %v2219, 920167782
  %v2233 = vsel %vm2225, %v2216, %v2232
  %v2234 = vsel %vm2224, %v2231, %v2233
  %v2235 = vsel %vm2223, %v2213, %v2216
  %v2236 = vsel %vm2226, %v2222, 1326507024
  %v2237 = vsel %vm2225, %v2219, %v2236
  %v2238 = vsel %vm2224, %v2235, %v2237
  %v2239 = vshll.u32 %v2199, 8
  %v2240 = vmul.u32.u64.compose %v2239, %v2238
  %v2241 = vextract.low.u32 %v2240
  %v2242 = vextract.high.u32 %v2240
  %v2243 = vmul.u32.u64.compose %v2239, %v2234
  %v2244 = vextract.low.u32 %v2243
  %v2245 = vextract.high.u32 %v2243
  %v2246 = vmul.u32 %v2239, %v2230
  %v2247 = vadd.s32 %v2242, %v2244
  %vm2248 = vc.u32 %v2242, %v2244
  %v2249 = vadd.s32 %v2245, 1
  %v2250 = vsel %vm2248, %v2249, %v2245
  %v2251 = vadd.s32 %v2246, %v2250
  %v2252 = vadd.s32 %v2251, 536870912
  %v2253 = vshrl.u32 %v2252, 30
  %v2254 = vshll.u32 %v2253, 30
  %v2255 = vsub.s32 %v2251, %v2254
  %vm2256 = vcmp.lt.s32.totalorder %v2255, 0
  %v2257 = vsub.s32 0, %v2255
  %v2258 = vsel %vm2256, %v2257, %v2255
  %v2259 = vclz %v2258
  %v2260 = vsub.s32 %v2259, 2
  %vm2261 = vcmp.gt.s32.totalorder 0, %v2260
  %v2262 = vsel %vm2261, 0, %v2260
  %v2263 = vsub.s32 32, %v2262
  %v2264 = vshll.u32 %v2255, %v2262
  %v2265 = vshrl.u32 %v2247, %v2263
  %v2266 = vor.u32 %v2264, %v2265
  %v2267 = vsub.s32 4294967266, %v2262
  %v2268 = vadd.s32 %v2267, 127
  %v2269 = vshll.u32 %v2268, 23
  %v2270 = vor.u32 4788187, %v2269
  %v2271 = vand.u32 2147483647, %v2270
  %v2273 = vcvt.s32.f32 %v2266
  %v2274 = vmul.f32 %v2273, %v2271
  %v2275 = vxor.u32 %v2274, 2147483648
  %v2276 = vsel %vm2193, %v2275, %v2274
  %v2277 = vsub.s32 4, %v2253
  %v2278 = vsel %vm2193, %v2277, %v2253
  %v2279 = vsel %vm2192, %v1557, %v2276
  %v2280 = vsel %vm2192, 0, %v2278
  %v2281 = vcosq.f32.pop %v2279
  %v2282 = vsinq.f32.pop %v2279
  %vm2283 = vweird.f32 %v1557
  %v2284 = vadd.s32 %v2280, 3
  %v2285 = vand.u32 %v2284, 3
  %vm2286 = vcmp.lt.s32.totalorder %v2285, 2
  %vm2287 = vcmp.eq.s32.totalorder %v2285, 0
  %v2288 = vxor.u32 %v2282, 2147483648
  %v2289 = vsel %vm2287, %v2281, %v2288
  %vm2290 = vcmp.eq.s32.totalorder %v2285, 2
  %v2291 = vxor.u32 %v2281, 2147483648
  %v2292 = vsel %vm2290, %v2291, %v2282
  %v2293 = vsel %vm2286, %v2289, %v2292
  %v2294 = vsel %vm2283, nan, %v2293
  %v2295 = vand.u32 2147483647, %v1558
  %vm2296 = vcmp.le.f32.partialorder %v2295, 0.7853982
  %vm2297 = vcmp.lt.s32.totalorder %v1558, 0
  %v2298 = vand.u32 %v1558, 2139095040
  %v2299 = vshrl.u32 %v2298, 23
  %v2300 = vsub.s32 %v2299, 127
  %v2301 = vand.u32 2147483647, %v1558
  %v2302 = vand.u32 %v2301, 8388607
  %v2303 = vor.u32 %v2302, 8388608
  %v2304 = vsub.s32 0, %v2303
  %v2305 = vadd.s32 %v2300, 1
  %vm2306 = vcmp.gt.s32.totalorder %v2305, 0
  %v2307 = vsel %vm2306, %v2305, 0
  %v2308 = vshrl.u32 %v2307, 5
  %v2309 = vand.u32 %v2307, 31
  %v2310 = vsub.s32 32, %v2309
  %v2311 = vshrl.u32 683565275, %v2310
  %v2312 = vshll.u32 683565275, %v2309
  %v2313 = vshrl.u32 2475754826, %v2310
  %v2314 = vor.u32 %v2312, %v2313
  %v2315 = vshll.u32 2475754826, %v2309
  %v2316 = vshrl.u32 2131351028, %v2310
  %v2317 = vor.u32 %v2315, %v2316
  %v2318 = vshll.u32 2131351028, %v2309
  %v2319 = vshrl.u32 2102212464, %v2310
  %v2320 = vor.u32 %v2318, %v2319
  %v2321 = vshll.u32 2102212464, %v2309
  %v2322 = vshrl.u32 920167782, %v2310
  %v2323 = vor.u32 %v2321, %v2322
  %v2324 = vshll.u32 920167782, %v2309
  %v2325 = vshrl.u32 1326507024, %v2310
  %v2326 = vor.u32 %v2324, %v2325
  %vm2327 = vcmp.lt.s32.totalorder %v2308, 1
  %vm2328 = vcmp.lt.s32.totalorder %v2308, 2
  %vm2329 = vcmp.lt.s32.totalorder %v2308, 3
  %vm2330 = vcmp.lt.s32.totalorder %v2308, 4
  %v2331 = vsel %vm2327, %v2311, %v2314
  %v2332 = vsel %vm2330, %v2320, 2102212464
  %v2333 = vsel %vm2329, %v2317, %v2332
  %v2334 = vsel %vm2328, %v2331, %v2333
  %v2335 = vsel %vm2327, %v2314, %v2317
  %v2336 = vsel %vm2330, %v2323, 920167782
  %v2337 = vsel %vm2329, %v2320, %v2336
  %v2338 = vsel %vm2328, %v2335, %v2337
  %v2339 = vsel %vm2327, %v2317, %v2320
  %v2340 = vsel %vm2330, %v2326, 1326507024
  %v2341 = vsel %vm2329, %v2323, %v2340
  %v2342 = vsel %vm2328, %v2339, %v2341
  %v2343 = vshll.u32 %v2303, 8
  %v2344 = vmul.u32.u64.compose %v2343, %v2342
  %v2345 = vextract.low.u32 %v2344
  %v2346 = vextract.high.u32 %v2344
  %v2347 = vmul.u32.u64.compose %v2343, %v2338
  %v2348 = vextract.low.u32 %v2347
  %v2349 = vextract.high.u32 %v2347
  %v2350 = vmul.u32 %v2343, %v2334
  %v2351 = vadd.s32 %v2346, %v2348
  %vm2352 = vc.u32 %v2346, %v2348
  %v2353 = vadd.s32 %v2349, 1
  %v2354 = vsel %vm2352, %v2353, %v2349
  %v2355 = vadd.s32 %v2350, %v2354
  %v2356 = vadd.s32 %v2355, 536870912
  %v2357 = vshrl.u32 %v2356, 30
  %v2358 = vshll.u32 %v2357, 30
  %v2359 = vsub.s32 %v2355, %v2358
  %vm2360 = vcmp.lt.s32.totalorder %v2359, 0
  %v2361 = vsub.s32 0, %v2359
  %v2362 = vsel %vm2360, %v2361, %v2359
  %v2363 = vclz %v2362
  %v2364 = vsub.s32 %v2363, 2
  %vm2365 = vcmp.gt.s32.totalorder 0, %v2364
  %v2366 = vsel %vm2365, 0, %v2364
  %v2367 = vsub.s32 32, %v2366
  %v2368 = vshll.u32 %v2359, %v2366
  %v2369 = vshrl.u32 %v2351, %v2367
  %v2370 = vor.u32 %v2368, %v2369
  %v2371 = vsub.s32 4294967266, %v2366
  %v2372 = vadd.s32 %v2371, 127
  %v2373 = vshll.u32 %v2372, 23
  %v2374 = vor.u32 4788187, %v2373
  %v2375 = vand.u32 2147483647, %v2374
  %v2377 = vcvt.s32.f32 %v2370
  %v2378 = vmul.f32 %v2377, %v2375
  %v2379 = vxor.u32 %v2378, 2147483648
  %v2380 = vsel %vm2297, %v2379, %v2378
  %v2381 = vsub.s32 4, %v2357
  %v2382 = vsel %vm2297, %v2381, %v2357
  %v2383 = vsel %vm2296, %v1558, %v2380
  %v2384 = vsel %vm2296, 0, %v2382
  %v2385 = vcosq.f32.pop %v2383
  %v2386 = vsinq.f32.pop %v2383
  %vm2387 = vweird.f32 %v1558
  %v2388 = vadd.s32 %v2384, 3
  %v2389 = vand.u32 %v2388, 3
  %vm2390 = vcmp.lt.s32.totalorder %v2389, 2
  %vm2391 = vcmp.eq.s32.totalorder %v2389, 0
  %v2392 = vxor.u32 %v2386, 2147483648
  %v2393 = vsel %vm2391, %v2385, %v2392
  %vm2394 = vcmp.eq.s32.totalorder %v2389, 2
  %v2395 = vxor.u32 %v2385, 2147483648
  %v2396 = vsel %vm2394, %v2395, %v2386
  %v2397 = vsel %vm2390, %v2393, %v2396
  %v2398 = vsel %vm2387, nan, %v2397
  %v2399 = vand.u32 2147483647, %v1559
  %vm2400 = vcmp.le.f32.partialorder %v2399, 0.7853982
  %vm2401 = vcmp.lt.s32.totalorder %v1559, 0
  %v2402 = vand.u32 %v1559, 2139095040
  %v2403 = vshrl.u32 %v2402, 23
  %v2404 = vsub.s32 %v2403, 127
  %v2405 = vand.u32 2147483647, %v1559
  %v2406 = vand.u32 %v2405, 8388607
  %v2407 = vor.u32 %v2406, 8388608
  %v2408 = vsub.s32 0, %v2407
  %v2409 = vadd.s32 %v2404, 1
  %vm2410 = vcmp.gt.s32.totalorder %v2409, 0
  %v2411 = vsel %vm2410, %v2409, 0
  %v2412 = vshrl.u32 %v2411, 5
  %v2413 = vand.u32 %v2411, 31
  %v2414 = vsub.s32 32, %v2413
  %v2415 = vshrl.u32 683565275, %v2414
  %v2416 = vshll.u32 683565275, %v2413
  %v2417 = vshrl.u32 2475754826, %v2414
  %v2418 = vor.u32 %v2416, %v2417
  %v2419 = vshll.u32 2475754826, %v2413
  %v2420 = vshrl.u32 2131351028, %v2414
  %v2421 = vor.u32 %v2419, %v2420
  %v2422 = vshll.u32 2131351028, %v2413
  %v2423 = vshrl.u32 2102212464, %v2414
  %v2424 = vor.u32 %v2422, %v2423
  %v2425 = vshll.u32 2102212464, %v2413
  %v2426 = vshrl.u32 920167782, %v2414
  %v2427 = vor.u32 %v2425, %v2426
  %v2428 = vshll.u32 920167782, %v2413
  %v2429 = vshrl.u32 1326507024, %v2414
  %v2430 = vor.u32 %v2428, %v2429
  %vm2431 = vcmp.lt.s32.totalorder %v2412, 1
  %vm2432 = vcmp.lt.s32.totalorder %v2412, 2
  %vm2433 = vcmp.lt.s32.totalorder %v2412, 3
  %vm2434 = vcmp.lt.s32.totalorder %v2412, 4
  %v2435 = vsel %vm2431, %v2415, %v2418
  %v2436 = vsel %vm2434, %v2424, 2102212464
  %v2437 = vsel %vm2433, %v2421, %v2436
  %v2438 = vsel %vm2432, %v2435, %v2437
  %v2439 = vsel %vm2431, %v2418, %v2421
  %v2440 = vsel %vm2434, %v2427, 920167782
  %v2441 = vsel %vm2433, %v2424, %v2440
  %v2442 = vsel %vm2432, %v2439, %v2441
  %v2443 = vsel %vm2431, %v2421, %v2424
  %v2444 = vsel %vm2434, %v2430, 1326507024
  %v2445 = vsel %vm2433, %v2427, %v2444
  %v2446 = vsel %vm2432, %v2443, %v2445
  %v2447 = vshll.u32 %v2407, 8
  %v2448 = vmul.u32.u64.compose %v2447, %v2446
  %v2449 = vextract.low.u32 %v2448
  %v2450 = vextract.high.u32 %v2448
  %v2451 = vmul.u32.u64.compose %v2447, %v2442
  %v2452 = vextract.low.u32 %v2451
  %v2453 = vextract.high.u32 %v2451
  %v2454 = vmul.u32 %v2447, %v2438
  %v2455 = vadd.s32 %v2450, %v2452
  %vm2456 = vc.u32 %v2450, %v2452
  %v2457 = vadd.s32 %v2453, 1
  %v2458 = vsel %vm2456, %v2457, %v2453
  %v2459 = vadd.s32 %v2454, %v2458
  %v2460 = vadd.s32 %v2459, 536870912
  %v2461 = vshrl.u32 %v2460, 30
  %v2462 = vshll.u32 %v2461, 30
  %v2463 = vsub.s32 %v2459, %v2462
  %vm2464 = vcmp.lt.s32.totalorder %v2463, 0
  %v2465 = vsub.s32 0, %v2463
  %v2466 = vsel %vm2464, %v2465, %v2463
  %v2467 = vclz %v2466
  %v2468 = vsub.s32 %v2467, 2
  %vm2469 = vcmp.gt.s32.totalorder 0, %v2468
  %v2470 = vsel %vm2469, 0, %v2468
  %v2471 = vsub.s32 32, %v2470
  %v2472 = vshll.u32 %v2463, %v2470
  %v2473 = vshrl.u32 %v2455, %v2471
  %v2474 = vor.u32 %v2472, %v2473
  %v2475 = vsub.s32 4294967266, %v2470
  %v2476 = vadd.s32 %v2475, 127
  %v2477 = vshll.u32 %v2476, 23
  %v2478 = vor.u32 4788187, %v2477
  %v2479 = vand.u32 2147483647, %v2478
  %v2481 = vcvt.s32.f32 %v2474
  %v2482 = vmul.f32 %v2481, %v2479
  %v2483 = vxor.u32 %v2482, 2147483648
  %v2484 = vsel %vm2401, %v2483, %v2482
  %v2485 = vsub.s32 4, %v2461
  %v2486 = vsel %vm2401, %v2485, %v2461
  %v2487 = vsel %vm2400, %v1559, %v2484
  %v2488 = vsel %vm2400, 0, %v2486
  %v2489 = vcosq.f32.pop %v2487
  %v2490 = vsinq.f32.pop %v2487
  %vm2491 = vweird.f32 %v1559
  %v2492 = vadd.s32 %v2488, 3
  %v2493 = vand.u32 %v2492, 3
  %vm2494 = vcmp.lt.s32.totalorder %v2493, 2
  %vm2495 = vcmp.eq.s32.totalorder %v2493, 0
  %v2496 = vxor.u32 %v2490, 2147483648
  %v2497 = vsel %vm2495, %v2489, %v2496
  %vm2498 = vcmp.eq.s32.totalorder %v2493, 2
  %v2499 = vxor.u32 %v2489, 2147483648
  %v2500 = vsel %vm2498, %v2499, %v2490
  %v2501 = vsel %vm2494, %v2497, %v2500
  %v2502 = vsel %vm2491, nan, %v2501
  %v2503 = vand.u32 2147483647, %v1560
  %vm2504 = vcmp.le.f32.partialorder %v2503, 0.7853982
  %vm2505 = vcmp.lt.s32.totalorder %v1560, 0
  %v2506 = vand.u32 %v1560, 2139095040
  %v2507 = vshrl.u32 %v2506, 23
  %v2508 = vsub.s32 %v2507, 127
  %v2509 = vand.u32 2147483647, %v1560
  %v2510 = vand.u32 %v2509, 8388607
  %v2511 = vor.u32 %v2510, 8388608
  %v2512 = vsub.s32 0, %v2511
  %v2513 = vadd.s32 %v2508, 1
  %vm2514 = vcmp.gt.s32.totalorder %v2513, 0
  %v2515 = vsel %vm2514, %v2513, 0
  %v2516 = vshrl.u32 %v2515, 5
  %v2517 = vand.u32 %v2515, 31
  %v2518 = vsub.s32 32, %v2517
  %v2519 = vshrl.u32 683565275, %v2518
  %v2520 = vshll.u32 683565275, %v2517
  %v2521 = vshrl.u32 2475754826, %v2518
  %v2522 = vor.u32 %v2520, %v2521
  %v2523 = vshll.u32 2475754826, %v2517
  %v2524 = vshrl.u32 2131351028, %v2518
  %v2525 = vor.u32 %v2523, %v2524
  %v2526 = vshll.u32 2131351028, %v2517
  %v2527 = vshrl.u32 2102212464, %v2518
  %v2528 = vor.u32 %v2526, %v2527
  %v2529 = vshll.u32 2102212464, %v2517
  %v2530 = vshrl.u32 920167782, %v2518
  %v2531 = vor.u32 %v2529, %v2530
  %v2532 = vshll.u32 920167782, %v2517
  %v2533 = vshrl.u32 1326507024, %v2518
  %v2534 = vor.u32 %v2532, %v2533
  %vm2535 = vcmp.lt.s32.totalorder %v2516, 1
  %vm2536 = vcmp.lt.s32.totalorder %v2516, 2
  %vm2537 = vcmp.lt.s32.totalorder %v2516, 3
  %vm2538 = vcmp.lt.s32.totalorder %v2516, 4
  %v2539 = vsel %vm2535, %v2519, %v2522
  %v2540 = vsel %vm2538, %v2528, 2102212464
  %v2541 = vsel %vm2537, %v2525, %v2540
  %v2542 = vsel %vm2536, %v2539, %v2541
  %v2543 = vsel %vm2535, %v2522, %v2525
  %v2544 = vsel %vm2538, %v2531, 920167782
  %v2545 = vsel %vm2537, %v2528, %v2544
  %v2546 = vsel %vm2536, %v2543, %v2545
  %v2547 = vsel %vm2535, %v2525, %v2528
  %v2548 = vsel %vm2538, %v2534, 1326507024
  %v2549 = vsel %vm2537, %v2531, %v2548
  %v2550 = vsel %vm2536, %v2547, %v2549
  %v2551 = vshll.u32 %v2511, 8
  %v2552 = vmul.u32.u64.compose %v2551, %v2550
  %v2553 = vextract.low.u32 %v2552
  %v2554 = vextract.high.u32 %v2552
  %v2555 = vmul.u32.u64.compose %v2551, %v2546
  %v2556 = vextract.low.u32 %v2555
  %v2557 = vextract.high.u32 %v2555
  %v2558 = vmul.u32 %v2551, %v2542
  %v2559 = vadd.s32 %v2554, %v2556
  %vm2560 = vc.u32 %v2554, %v2556
  %v2561 = vadd.s32 %v2557, 1
  %v2562 = vsel %vm2560, %v2561, %v2557
  %v2563 = vadd.s32 %v2558, %v2562
  %v2564 = vadd.s32 %v2563, 536870912
  %v2565 = vshrl.u32 %v2564, 30
  %v2566 = vshll.u32 %v2565, 30
  %v2567 = vsub.s32 %v2563, %v2566
  %vm2568 = vcmp.lt.s32.totalorder %v2567, 0
  %v2569 = vsub.s32 0, %v2567
  %v2570 = vsel %vm2568, %v2569, %v2567
  %v2571 = vclz %v2570
  %v2572 = vsub.s32 %v2571, 2
  %vm2573 = vcmp.gt.s32.totalorder 0, %v2572
  %v2574 = vsel %vm2573, 0, %v2572
  %v2575 = vsub.s32 32, %v2574
  %v2576 = vshll.u32 %v2567, %v2574
  %v2577 = vshrl.u32 %v2559, %v2575
  %v2578 = vor.u32 %v2576, %v2577
  %v2579 = vsub.s32 4294967266, %v2574
  %v2580 = vadd.s32 %v2579, 127
  %v2581 = vshll.u32 %v2580, 23
  %v2582 = vor.u32 4788187, %v2581
  %v2583 = vand.u32 2147483647, %v2582
  %v2585 = vcvt.s32.f32 %v2578
  %v2586 = vmul.f32 %v2585, %v2583
  %v2587 = vxor.u32 %v2586, 2147483648
  %v2588 = vsel %vm2505, %v2587, %v2586
  %v2589 = vsub.s32 4, %v2565
  %v2590 = vsel %vm2505, %v2589, %v2565
  %v2591 = vsel %vm2504, %v1560, %v2588
  %v2592 = vsel %vm2504, 0, %v2590
  %v2593 = vcosq.f32.pop %v2591
  %v2594 = vsinq.f32.pop %v2591
  %vm2595 = vweird.f32 %v1560
  %v2596 = vadd.s32 %v2592, 3
  %v2597 = vand.u32 %v2596, 3
  %vm2598 = vcmp.lt.s32.totalorder %v2597, 2
  %vm2599 = vcmp.eq.s32.totalorder %v2597, 0
  %v2600 = vxor.u32 %v2594, 2147483648
  %v2601 = vsel %vm2599, %v2593, %v2600
  %vm2602 = vcmp.eq.s32.totalorder %v2597, 2
  %v2603 = vxor.u32 %v2593, 2147483648
  %v2604 = vsel %vm2602, %v2603, %v2594
  %v2605 = vsel %vm2598, %v2601, %v2604
  %v2606 = vsel %vm2595, nan, %v2605
  %v2607 = vand.u32 2147483647, %v1561
  %vm2608 = vcmp.le.f32.partialorder %v2607, 0.7853982
  %vm2609 = vcmp.lt.s32.totalorder %v1561, 0
  %v2610 = vand.u32 %v1561, 2139095040
  %v2611 = vshrl.u32 %v2610, 23
  %v2612 = vsub.s32 %v2611, 127
  %v2613 = vand.u32 2147483647, %v1561
  %v2614 = vand.u32 %v2613, 8388607
  %v2615 = vor.u32 %v2614, 8388608
  %v2616 = vsub.s32 0, %v2615
  %v2617 = vadd.s32 %v2612, 1
  %vm2618 = vcmp.gt.s32.totalorder %v2617, 0
  %v2619 = vsel %vm2618, %v2617, 0
  %v2620 = vshrl.u32 %v2619, 5
  %v2621 = vand.u32 %v2619, 31
  %v2622 = vsub.s32 32, %v2621
  %v2623 = vshrl.u32 683565275, %v2622
  %v2624 = vshll.u32 683565275, %v2621
  %v2625 = vshrl.u32 2475754826, %v2622
  %v2626 = vor.u32 %v2624, %v2625
  %v2627 = vshll.u32 2475754826, %v2621
  %v2628 = vshrl.u32 2131351028, %v2622
  %v2629 = vor.u32 %v2627, %v2628
  %v2630 = vshll.u32 2131351028, %v2621
  %v2631 = vshrl.u32 2102212464, %v2622
  %v2632 = vor.u32 %v2630, %v2631
  %v2633 = vshll.u32 2102212464, %v2621
  %v2634 = vshrl.u32 920167782, %v2622
  %v2635 = vor.u32 %v2633, %v2634
  %v2636 = vshll.u32 920167782, %v2621
  %v2637 = vshrl.u32 1326507024, %v2622
  %v2638 = vor.u32 %v2636, %v2637
  %vm2639 = vcmp.lt.s32.totalorder %v2620, 1
  %vm2640 = vcmp.lt.s32.totalorder %v2620, 2
  %vm2641 = vcmp.lt.s32.totalorder %v2620, 3
  %vm2642 = vcmp.lt.s32.totalorder %v2620, 4
  %v2643 = vsel %vm2639, %v2623, %v2626
  %v2644 = vsel %vm2642, %v2632, 2102212464
  %v2645 = vsel %vm2641, %v2629, %v2644
  %v2646 = vsel %vm2640, %v2643, %v2645
  %v2647 = vsel %vm2639, %v2626, %v2629
  %v2648 = vsel %vm2642, %v2635, 920167782
  %v2649 = vsel %vm2641, %v2632, %v2648
  %v2650 = vsel %vm2640, %v2647, %v2649
  %v2651 = vsel %vm2639, %v2629, %v2632
  %v2652 = vsel %vm2642, %v2638, 1326507024
  %v2653 = vsel %vm2641, %v2635, %v2652
  %v2654 = vsel %vm2640, %v2651, %v2653
  %v2655 = vshll.u32 %v2615, 8
  %v2656 = vmul.u32.u64.compose %v2655, %v2654
  %v2657 = vextract.low.u32 %v2656
  %v2658 = vextract.high.u32 %v2656
  %v2659 = vmul.u32.u64.compose %v2655, %v2650
  %v2660 = vextract.low.u32 %v2659
  %v2661 = vextract.high.u32 %v2659
  %v2662 = vmul.u32 %v2655, %v2646
  %v2663 = vadd.s32 %v2658, %v2660
  %vm2664 = vc.u32 %v2658, %v2660
  %v2665 = vadd.s32 %v2661, 1
  %v2666 = vsel %vm2664, %v2665, %v2661
  %v2667 = vadd.s32 %v2662, %v2666
  %v2668 = vadd.s32 %v2667, 536870912
  %v2669 = vshrl.u32 %v2668, 30
  %v2670 = vshll.u32 %v2669, 30
  %v2671 = vsub.s32 %v2667, %v2670
  %vm2672 = vcmp.lt.s32.totalorder %v2671, 0
  %v2673 = vsub.s32 0, %v2671
  %v2674 = vsel %vm2672, %v2673, %v2671
  %v2675 = vclz %v2674
  %v2676 = vsub.s32 %v2675, 2
  %vm2677 = vcmp.gt.s32.totalorder 0, %v2676
  %v2678 = vsel %vm2677, 0, %v2676
  %v2679 = vsub.s32 32, %v2678
  %v2680 = vshll.u32 %v2671, %v2678
  %v2681 = vshrl.u32 %v2663, %v2679
  %v2682 = vor.u32 %v2680, %v2681
  %v2683 = vsub.s32 4294967266, %v2678
  %v2684 = vadd.s32 %v2683, 127
  %v2685 = vshll.u32 %v2684, 23
  %v2686 = vor.u32 4788187, %v2685
  %v2687 = vand.u32 2147483647, %v2686
  %v2689 = vcvt.s32.f32 %v2682
  %v2690 = vmul.f32 %v2689, %v2687
  %v2691 = vxor.u32 %v2690, 2147483648
  %v2692 = vsel %vm2609, %v2691, %v2690
  %v2693 = vsub.s32 4, %v2669
  %v2694 = vsel %vm2609, %v2693, %v2669
  %v2695 = vsel %vm2608, %v1561, %v2692
  %v2696 = vsel %vm2608, 0, %v2694
  %v2697 = vcosq.f32.pop %v2695
  %v2698 = vsinq.f32.pop %v2695
  %vm2699 = vweird.f32 %v1561
  %v2700 = vadd.s32 %v2696, 3
  %v2701 = vand.u32 %v2700, 3
  %vm2702 = vcmp.lt.s32.totalorder %v2701, 2
  %vm2703 = vcmp.eq.s32.totalorder %v2701, 0
  %v2704 = vxor.u32 %v2698, 2147483648
  %v2705 = vsel %vm2703, %v2697, %v2704
  %vm2706 = vcmp.eq.s32.totalorder %v2701, 2
  %v2707 = vxor.u32 %v2697, 2147483648
  %v2708 = vsel %vm2706, %v2707, %v2698
  %v2709 = vsel %vm2702, %v2705, %v2708
  %v2710 = vsel %vm2699, nan, %v2709
  %v2711 = vand.u32 2147483647, %v1562
  %vm2712 = vcmp.le.f32.partialorder %v2711, 0.7853982
  %vm2713 = vcmp.lt.s32.totalorder %v1562, 0
  %v2714 = vand.u32 %v1562, 2139095040
  %v2715 = vshrl.u32 %v2714, 23
  %v2716 = vsub.s32 %v2715, 127
  %v2717 = vand.u32 2147483647, %v1562
  %v2718 = vand.u32 %v2717, 8388607
  %v2719 = vor.u32 %v2718, 8388608
  %v2720 = vsub.s32 0, %v2719
  %v2721 = vadd.s32 %v2716, 1
  %vm2722 = vcmp.gt.s32.totalorder %v2721, 0
  %v2723 = vsel %vm2722, %v2721, 0
  %v2724 = vshrl.u32 %v2723, 5
  %v2725 = vand.u32 %v2723, 31
  %v2726 = vsub.s32 32, %v2725
  %v2727 = vshrl.u32 683565275, %v2726
  %v2728 = vshll.u32 683565275, %v2725
  %v2729 = vshrl.u32 2475754826, %v2726
  %v2730 = vor.u32 %v2728, %v2729
  %v2731 = vshll.u32 2475754826, %v2725
  %v2732 = vshrl.u32 2131351028, %v2726
  %v2733 = vor.u32 %v2731, %v2732
  %v2734 = vshll.u32 2131351028, %v2725
  %v2735 = vshrl.u32 2102212464, %v2726
  %v2736 = vor.u32 %v2734, %v2735
  %v2737 = vshll.u32 2102212464, %v2725
  %v2738 = vshrl.u32 920167782, %v2726
  %v2739 = vor.u32 %v2737, %v2738
  %v2740 = vshll.u32 920167782, %v2725
  %v2741 = vshrl.u32 1326507024, %v2726
  %v2742 = vor.u32 %v2740, %v2741
  %vm2743 = vcmp.lt.s32.totalorder %v2724, 1
  %vm2744 = vcmp.lt.s32.totalorder %v2724, 2
  %vm2745 = vcmp.lt.s32.totalorder %v2724, 3
  %vm2746 = vcmp.lt.s32.totalorder %v2724, 4
  %v2747 = vsel %vm2743, %v2727, %v2730
  %v2748 = vsel %vm2746, %v2736, 2102212464
  %v2749 = vsel %vm2745, %v2733, %v2748
  %v2750 = vsel %vm2744, %v2747, %v2749
  %v2751 = vsel %vm2743, %v2730, %v2733
  %v2752 = vsel %vm2746, %v2739, 920167782
  %v2753 = vsel %vm2745, %v2736, %v2752
  %v2754 = vsel %vm2744, %v2751, %v2753
  %v2755 = vsel %vm2743, %v2733, %v2736
  %v2756 = vsel %vm2746, %v2742, 1326507024
  %v2757 = vsel %vm2745, %v2739, %v2756
  %v2758 = vsel %vm2744, %v2755, %v2757
  %v2759 = vshll.u32 %v2719, 8
  %v2760 = vmul.u32.u64.compose %v2759, %v2758
  %v2761 = vextract.low.u32 %v2760
  %v2762 = vextract.high.u32 %v2760
  %v2763 = vmul.u32.u64.compose %v2759, %v2754
  %v2764 = vextract.low.u32 %v2763
  %v2765 = vextract.high.u32 %v2763
  %v2766 = vmul.u32 %v2759, %v2750
  %v2767 = vadd.s32 %v2762, %v2764
  %vm2768 = vc.u32 %v2762, %v2764
  %v2769 = vadd.s32 %v2765, 1
  %v2770 = vsel %vm2768, %v2769, %v2765
  %v2771 = vadd.s32 %v2766, %v2770
  %v2772 = vadd.s32 %v2771, 536870912
  %v2773 = vshrl.u32 %v2772, 30
  %v2774 = vshll.u32 %v2773, 30
  %v2775 = vsub.s32 %v2771, %v2774
  %vm2776 = vcmp.lt.s32.totalorder %v2775, 0
  %v2777 = vsub.s32 0, %v2775
  %v2778 = vsel %vm2776, %v2777, %v2775
  %v2779 = vclz %v2778
  %v2780 = vsub.s32 %v2779, 2
  %vm2781 = vcmp.gt.s32.totalorder 0, %v2780
  %v2782 = vsel %vm2781, 0, %v2780
  %v2783 = vsub.s32 32, %v2782
  %v2784 = vshll.u32 %v2775, %v2782
  %v2785 = vshrl.u32 %v2767, %v2783
  %v2786 = vor.u32 %v2784, %v2785
  %v2787 = vsub.s32 4294967266, %v2782
  %v2788 = vadd.s32 %v2787, 127
  %v2789 = vshll.u32 %v2788, 23
  %v2790 = vor.u32 4788187, %v2789
  %v2791 = vand.u32 2147483647, %v2790
  %v2793 = vcvt.s32.f32 %v2786
  %v2794 = vmul.f32 %v2793, %v2791
  %v2795 = vxor.u32 %v2794, 2147483648
  %v2796 = vsel %vm2713, %v2795, %v2794
  %v2797 = vsub.s32 4, %v2773
  %v2798 = vsel %vm2713, %v2797, %v2773
  %v2799 = vsel %vm2712, %v1562, %v2796
  %v2800 = vsel %vm2712, 0, %v2798
  %v2801 = vcosq.f32.pop %v2799
  %v2802 = vsinq.f32.pop %v2799
  %vm2803 = vweird.f32 %v1562
  %v2804 = vadd.s32 %v2800, 3
  %v2805 = vand.u32 %v2804, 3
  %vm2806 = vcmp.lt.s32.totalorder %v2805, 2
  %vm2807 = vcmp.eq.s32.totalorder %v2805, 0
  %v2808 = vxor.u32 %v2802, 2147483648
  %v2809 = vsel %vm2807, %v2801, %v2808
  %vm2810 = vcmp.eq.s32.totalorder %v2805, 2
  %v2811 = vxor.u32 %v2801, 2147483648
  %v2812 = vsel %vm2810, %v2811, %v2802
  %v2813 = vsel %vm2806, %v2809, %v2812
  %v2814 = vsel %vm2803, nan, %v2813
  %v2815 = vand.u32 2147483647, %v1563
  %vm2816 = vcmp.le.f32.partialorder %v2815, 0.7853982
  %vm2817 = vcmp.lt.s32.totalorder %v1563, 0
  %v2818 = vand.u32 %v1563, 2139095040
  %v2819 = vshrl.u32 %v2818, 23
  %v2820 = vsub.s32 %v2819, 127
  %v2821 = vand.u32 2147483647, %v1563
  %v2822 = vand.u32 %v2821, 8388607
  %v2823 = vor.u32 %v2822, 8388608
  %v2824 = vsub.s32 0, %v2823
  %v2825 = vadd.s32 %v2820, 1
  %vm2826 = vcmp.gt.s32.totalorder %v2825, 0
  %v2827 = vsel %vm2826, %v2825, 0
  %v2828 = vshrl.u32 %v2827, 5
  %v2829 = vand.u32 %v2827, 31
  %v2830 = vsub.s32 32, %v2829
  %v2831 = vshrl.u32 683565275, %v2830
  %v2832 = vshll.u32 683565275, %v2829
  %v2833 = vshrl.u32 2475754826, %v2830
  %v2834 = vor.u32 %v2832, %v2833
  %v2835 = vshll.u32 2475754826, %v2829
  %v2836 = vshrl.u32 2131351028, %v2830
  %v2837 = vor.u32 %v2835, %v2836
  %v2838 = vshll.u32 2131351028, %v2829
  %v2839 = vshrl.u32 2102212464, %v2830
  %v2840 = vor.u32 %v2838, %v2839
  %v2841 = vshll.u32 2102212464, %v2829
  %v2842 = vshrl.u32 920167782, %v2830
  %v2843 = vor.u32 %v2841, %v2842
  %v2844 = vshll.u32 920167782, %v2829
  %v2845 = vshrl.u32 1326507024, %v2830
  %v2846 = vor.u32 %v2844, %v2845
  %vm2847 = vcmp.lt.s32.totalorder %v2828, 1
  %vm2848 = vcmp.lt.s32.totalorder %v2828, 2
  %vm2849 = vcmp.lt.s32.totalorder %v2828, 3
  %vm2850 = vcmp.lt.s32.totalorder %v2828, 4
  %v2851 = vsel %vm2847, %v2831, %v2834
  %v2852 = vsel %vm2850, %v2840, 2102212464
  %v2853 = vsel %vm2849, %v2837, %v2852
  %v2854 = vsel %vm2848, %v2851, %v2853
  %v2855 = vsel %vm2847, %v2834, %v2837
  %v2856 = vsel %vm2850, %v2843, 920167782
  %v2857 = vsel %vm2849, %v2840, %v2856
  %v2858 = vsel %vm2848, %v2855, %v2857
  %v2859 = vsel %vm2847, %v2837, %v2840
  %v2860 = vsel %vm2850, %v2846, 1326507024
  %v2861 = vsel %vm2849, %v2843, %v2860
  %v2862 = vsel %vm2848, %v2859, %v2861
  %v2863 = vshll.u32 %v2823, 8
  %v2864 = vmul.u32.u64.compose %v2863, %v2862
  %v2865 = vextract.low.u32 %v2864
  %v2866 = vextract.high.u32 %v2864
  %v2867 = vmul.u32.u64.compose %v2863, %v2858
  %v2868 = vextract.low.u32 %v2867
  %v2869 = vextract.high.u32 %v2867
  %v2870 = vmul.u32 %v2863, %v2854
  %v2871 = vadd.s32 %v2866, %v2868
  %vm2872 = vc.u32 %v2866, %v2868
  %v2873 = vadd.s32 %v2869, 1
  %v2874 = vsel %vm2872, %v2873, %v2869
  %v2875 = vadd.s32 %v2870, %v2874
  %v2876 = vadd.s32 %v2875, 536870912
  %v2877 = vshrl.u32 %v2876, 30
  %v2878 = vshll.u32 %v2877, 30
  %v2879 = vsub.s32 %v2875, %v2878
  %vm2880 = vcmp.lt.s32.totalorder %v2879, 0
  %v2881 = vsub.s32 0, %v2879
  %v2882 = vsel %vm2880, %v2881, %v2879
  %v2883 = vclz %v2882
  %v2884 = vsub.s32 %v2883, 2
  %vm2885 = vcmp.gt.s32.totalorder 0, %v2884
  %v2886 = vsel %vm2885, 0, %v2884
  %v2887 = vsub.s32 32, %v2886
  %v2888 = vshll.u32 %v2879, %v2886
  %v2889 = vshrl.u32 %v2871, %v2887
  %v2890 = vor.u32 %v2888, %v2889
  %v2891 = vsub.s32 4294967266, %v2886
  %v2892 = vadd.s32 %v2891, 127
  %v2893 = vshll.u32 %v2892, 23
  %v2894 = vor.u32 4788187, %v2893
  %v2895 = vand.u32 2147483647, %v2894
  %v2897 = vcvt.s32.f32 %v2890
  %v2898 = vmul.f32 %v2897, %v2895
  %v2899 = vxor.u32 %v2898, 2147483648
  %v2900 = vsel %vm2817, %v2899, %v2898
  %v2901 = vsub.s32 4, %v2877
  %v2902 = vsel %vm2817, %v2901, %v2877
  %v2903 = vsel %vm2816, %v1563, %v2900
  %v2904 = vsel %vm2816, 0, %v2902
  %v2905 = vcosq.f32.pop %v2903
  %v2906 = vsinq.f32.pop %v2903
  %vm2907 = vweird.f32 %v1563
  %v2908 = vadd.s32 %v2904, 3
  %v2909 = vand.u32 %v2908, 3
  %vm2910 = vcmp.lt.s32.totalorder %v2909, 2
  %vm2911 = vcmp.eq.s32.totalorder %v2909, 0
  %v2912 = vxor.u32 %v2906, 2147483648
  %v2913 = vsel %vm2911, %v2905, %v2912
  %vm2914 = vcmp.eq.s32.totalorder %v2909, 2
  %v2915 = vxor.u32 %v2905, 2147483648
  %v2916 = vsel %vm2914, %v2915, %v2906
  %v2917 = vsel %vm2910, %v2913, %v2916
  %v2918 = vsel %vm2907, nan, %v2917
  %v2919 = vand.u32 2147483647, %v1564
  %vm2920 = vcmp.le.f32.partialorder %v2919, 0.7853982
  %vm2921 = vcmp.lt.s32.totalorder %v1564, 0
  %v2922 = vand.u32 %v1564, 2139095040
  %v2923 = vshrl.u32 %v2922, 23
  %v2924 = vsub.s32 %v2923, 127
  %v2925 = vand.u32 2147483647, %v1564
  %v2926 = vand.u32 %v2925, 8388607
  %v2927 = vor.u32 %v2926, 8388608
  %v2928 = vsub.s32 0, %v2927
  %v2929 = vadd.s32 %v2924, 1
  %vm2930 = vcmp.gt.s32.totalorder %v2929, 0
  %v2931 = vsel %vm2930, %v2929, 0
  %v2932 = vshrl.u32 %v2931, 5
  %v2933 = vand.u32 %v2931, 31
  %v2934 = vsub.s32 32, %v2933
  %v2935 = vshrl.u32 683565275, %v2934
  %v2936 = vshll.u32 683565275, %v2933
  %v2937 = vshrl.u32 2475754826, %v2934
  %v2938 = vor.u32 %v2936, %v2937
  %v2939 = vshll.u32 2475754826, %v2933
  %v2940 = vshrl.u32 2131351028, %v2934
  %v2941 = vor.u32 %v2939, %v2940
  %v2942 = vshll.u32 2131351028, %v2933
  %v2943 = vshrl.u32 2102212464, %v2934
  %v2944 = vor.u32 %v2942, %v2943
  %v2945 = vshll.u32 2102212464, %v2933
  %v2946 = vshrl.u32 920167782, %v2934
  %v2947 = vor.u32 %v2945, %v2946
  %v2948 = vshll.u32 920167782, %v2933
  %v2949 = vshrl.u32 1326507024, %v2934
  %v2950 = vor.u32 %v2948, %v2949
  %vm2951 = vcmp.lt.s32.totalorder %v2932, 1
  %vm2952 = vcmp.lt.s32.totalorder %v2932, 2
  %vm2953 = vcmp.lt.s32.totalorder %v2932, 3
  %vm2954 = vcmp.lt.s32.totalorder %v2932, 4
  %v2955 = vsel %vm2951, %v2935, %v2938
  %v2956 = vsel %vm2954, %v2944, 2102212464
  %v2957 = vsel %vm2953, %v2941, %v2956
  %v2958 = vsel %vm2952, %v2955, %v2957
  %v2959 = vsel %vm2951, %v2938, %v2941
  %v2960 = vsel %vm2954, %v2947, 920167782
  %v2961 = vsel %vm2953, %v2944, %v2960
  %v2962 = vsel %vm2952, %v2959, %v2961
  %v2963 = vsel %vm2951, %v2941, %v2944
  %v2964 = vsel %vm2954, %v2950, 1326507024
  %v2965 = vsel %vm2953, %v2947, %v2964
  %v2966 = vsel %vm2952, %v2963, %v2965
  %v2967 = vshll.u32 %v2927, 8
  %v2968 = vmul.u32.u64.compose %v2967, %v2966
  %v2969 = vextract.low.u32 %v2968
  %v2970 = vextract.high.u32 %v2968
  %v2971 = vmul.u32.u64.compose %v2967, %v2962
  %v2972 = vextract.low.u32 %v2971
  %v2973 = vextract.high.u32 %v2971
  %v2974 = vmul.u32 %v2967, %v2958
  %v2975 = vadd.s32 %v2970, %v2972
  %vm2976 = vc.u32 %v2970, %v2972
  %v2977 = vadd.s32 %v2973, 1
  %v2978 = vsel %vm2976, %v2977, %v2973
  %v2979 = vadd.s32 %v2974, %v2978
  %v2980 = vadd.s32 %v2979, 536870912
  %v2981 = vshrl.u32 %v2980, 30
  %v2982 = vshll.u32 %v2981, 30
  %v2983 = vsub.s32 %v2979, %v2982
  %vm2984 = vcmp.lt.s32.totalorder %v2983, 0
  %v2985 = vsub.s32 0, %v2983
  %v2986 = vsel %vm2984, %v2985, %v2983
  %v2987 = vclz %v2986
  %v2988 = vsub.s32 %v2987, 2
  %vm2989 = vcmp.gt.s32.totalorder 0, %v2988
  %v2990 = vsel %vm2989, 0, %v2988
  %v2991 = vsub.s32 32, %v2990
  %v2992 = vshll.u32 %v2983, %v2990
  %v2993 = vshrl.u32 %v2975, %v2991
  %v2994 = vor.u32 %v2992, %v2993
  %v2995 = vsub.s32 4294967266, %v2990
  %v2996 = vadd.s32 %v2995, 127
  %v2997 = vshll.u32 %v2996, 23
  %v2998 = vor.u32 4788187, %v2997
  %v2999 = vand.u32 2147483647, %v2998
  %v3001 = vcvt.s32.f32 %v2994
  %v3002 = vmul.f32 %v3001, %v2999
  %v3003 = vxor.u32 %v3002, 2147483648
  %v3004 = vsel %vm2921, %v3003, %v3002
  %v3005 = vsub.s32 4, %v2981
  %v3006 = vsel %vm2921, %v3005, %v2981
  %v3007 = vsel %vm2920, %v1564, %v3004
  %v3008 = vsel %vm2920, 0, %v3006
  %v3009 = vcosq.f32.pop %v3007
  %v3010 = vsinq.f32.pop %v3007
  %vm3011 = vweird.f32 %v1564
  %v3012 = vadd.s32 %v3008, 3
  %v3013 = vand.u32 %v3012, 3
  %vm3014 = vcmp.lt.s32.totalorder %v3013, 2
  %vm3015 = vcmp.eq.s32.totalorder %v3013, 0
  %v3016 = vxor.u32 %v3010, 2147483648
  %v3017 = vsel %vm3015, %v3009, %v3016
  %vm3018 = vcmp.eq.s32.totalorder %v3013, 2
  %v3019 = vxor.u32 %v3009, 2147483648
  %v3020 = vsel %vm3018, %v3019, %v3010
  %v3021 = vsel %vm3014, %v3017, %v3020
  %v3022 = vsel %vm3011, nan, %v3021
  %v3023 = vand.u32 2147483647, %v1565
  %vm3024 = vcmp.le.f32.partialorder %v3023, 0.7853982
  %vm3025 = vcmp.lt.s32.totalorder %v1565, 0
  %v3026 = vand.u32 %v1565, 2139095040
  %v3027 = vshrl.u32 %v3026, 23
  %v3028 = vsub.s32 %v3027, 127
  %v3029 = vand.u32 2147483647, %v1565
  %v3030 = vand.u32 %v3029, 8388607
  %v3031 = vor.u32 %v3030, 8388608
  %v3032 = vsub.s32 0, %v3031
  %v3033 = vadd.s32 %v3028, 1
  %vm3034 = vcmp.gt.s32.totalorder %v3033, 0
  %v3035 = vsel %vm3034, %v3033, 0
  %v3036 = vshrl.u32 %v3035, 5
  %v3037 = vand.u32 %v3035, 31
  %v3038 = vsub.s32 32, %v3037
  %v3039 = vshrl.u32 683565275, %v3038
  %v3040 = vshll.u32 683565275, %v3037
  %v3041 = vshrl.u32 2475754826, %v3038
  %v3042 = vor.u32 %v3040, %v3041
  %v3043 = vshll.u32 2475754826, %v3037
  %v3044 = vshrl.u32 2131351028, %v3038
  %v3045 = vor.u32 %v3043, %v3044
  %v3046 = vshll.u32 2131351028, %v3037
  %v3047 = vshrl.u32 2102212464, %v3038
  %v3048 = vor.u32 %v3046, %v3047
  %v3049 = vshll.u32 2102212464, %v3037
  %v3050 = vshrl.u32 920167782, %v3038
  %v3051 = vor.u32 %v3049, %v3050
  %v3052 = vshll.u32 920167782, %v3037
  %v3053 = vshrl.u32 1326507024, %v3038
  %v3054 = vor.u32 %v3052, %v3053
  %vm3055 = vcmp.lt.s32.totalorder %v3036, 1
  %vm3056 = vcmp.lt.s32.totalorder %v3036, 2
  %vm3057 = vcmp.lt.s32.totalorder %v3036, 3
  %vm3058 = vcmp.lt.s32.totalorder %v3036, 4
  %v3059 = vsel %vm3055, %v3039, %v3042
  %v3060 = vsel %vm3058, %v3048, 2102212464
  %v3061 = vsel %vm3057, %v3045, %v3060
  %v3062 = vsel %vm3056, %v3059, %v3061
  %v3063 = vsel %vm3055, %v3042, %v3045
  %v3064 = vsel %vm3058, %v3051, 920167782
  %v3065 = vsel %vm3057, %v3048, %v3064
  %v3066 = vsel %vm3056, %v3063, %v3065
  %v3067 = vsel %vm3055, %v3045, %v3048
  %v3068 = vsel %vm3058, %v3054, 1326507024
  %v3069 = vsel %vm3057, %v3051, %v3068
  %v3070 = vsel %vm3056, %v3067, %v3069
  %v3071 = vshll.u32 %v3031, 8
  %v3072 = vmul.u32.u64.compose %v3071, %v3070
  %v3073 = vextract.low.u32 %v3072
  %v3074 = vextract.high.u32 %v3072
  %v3075 = vmul.u32.u64.compose %v3071, %v3066
  %v3076 = vextract.low.u32 %v3075
  %v3077 = vextract.high.u32 %v3075
  %v3078 = vmul.u32 %v3071, %v3062
  %v3079 = vadd.s32 %v3074, %v3076
  %vm3080 = vc.u32 %v3074, %v3076
  %v3081 = vadd.s32 %v3077, 1
  %v3082 = vsel %vm3080, %v3081, %v3077
  %v3083 = vadd.s32 %v3078, %v3082
  %v3084 = vadd.s32 %v3083, 536870912
  %v3085 = vshrl.u32 %v3084, 30
  %v3086 = vshll.u32 %v3085, 30
  %v3087 = vsub.s32 %v3083, %v3086
  %vm3088 = vcmp.lt.s32.totalorder %v3087, 0
  %v3089 = vsub.s32 0, %v3087
  %v3090 = vsel %vm3088, %v3089, %v3087
  %v3091 = vclz %v3090
  %v3092 = vsub.s32 %v3091, 2
  %vm3093 = vcmp.gt.s32.totalorder 0, %v3092
  %v3094 = vsel %vm3093, 0, %v3092
  %v3095 = vsub.s32 32, %v3094
  %v3096 = vshll.u32 %v3087, %v3094
  %v3097 = vshrl.u32 %v3079, %v3095
  %v3098 = vor.u32 %v3096, %v3097
  %v3099 = vsub.s32 4294967266, %v3094
  %v3100 = vadd.s32 %v3099, 127
  %v3101 = vshll.u32 %v3100, 23
  %v3102 = vor.u32 4788187, %v3101
  %v3103 = vand.u32 2147483647, %v3102
  %v3105 = vcvt.s32.f32 %v3098
  %v3106 = vmul.f32 %v3105, %v3103
  %v3107 = vxor.u32 %v3106, 2147483648
  %v3108 = vsel %vm3025, %v3107, %v3106
  %v3109 = vsub.s32 4, %v3085
  %v3110 = vsel %vm3025, %v3109, %v3085
  %v3111 = vsel %vm3024, %v1565, %v3108
  %v3112 = vsel %vm3024, 0, %v3110
  %v3113 = vcosq.f32.pop %v3111
  %v3114 = vsinq.f32.pop %v3111
  %vm3115 = vweird.f32 %v1565
  %v3116 = vadd.s32 %v3112, 3
  %v3117 = vand.u32 %v3116, 3
  %vm3118 = vcmp.lt.s32.totalorder %v3117, 2
  %vm3119 = vcmp.eq.s32.totalorder %v3117, 0
  %v3120 = vxor.u32 %v3114, 2147483648
  %v3121 = vsel %vm3119, %v3113, %v3120
  %vm3122 = vcmp.eq.s32.totalorder %v3117, 2
  %v3123 = vxor.u32 %v3113, 2147483648
  %v3124 = vsel %vm3122, %v3123, %v3114
  %v3125 = vsel %vm3118, %v3121, %v3124
  %v3126 = vsel %vm3115, nan, %v3125
  %v3127 = vand.u32 2147483647, %v1566
  %vm3128 = vcmp.le.f32.partialorder %v3127, 0.7853982
  %vm3129 = vcmp.lt.s32.totalorder %v1566, 0
  %v3130 = vand.u32 %v1566, 2139095040
  %v3131 = vshrl.u32 %v3130, 23
  %v3132 = vsub.s32 %v3131, 127
  %v3133 = vand.u32 2147483647, %v1566
  %v3134 = vand.u32 %v3133, 8388607
  %v3135 = vor.u32 %v3134, 8388608
  %v3136 = vsub.s32 0, %v3135
  %v3137 = vadd.s32 %v3132, 1
  %vm3138 = vcmp.gt.s32.totalorder %v3137, 0
  %v3139 = vsel %vm3138, %v3137, 0
  %v3140 = vshrl.u32 %v3139, 5
  %v3141 = vand.u32 %v3139, 31
  %v3142 = vsub.s32 32, %v3141
  %v3143 = vshrl.u32 683565275, %v3142
  %v3144 = vshll.u32 683565275, %v3141
  %v3145 = vshrl.u32 2475754826, %v3142
  %v3146 = vor.u32 %v3144, %v3145
  %v3147 = vshll.u32 2475754826, %v3141
  %v3148 = vshrl.u32 2131351028, %v3142
  %v3149 = vor.u32 %v3147, %v3148
  %v3150 = vshll.u32 2131351028, %v3141
  %v3151 = vshrl.u32 2102212464, %v3142
  %v3152 = vor.u32 %v3150, %v3151
  %v3153 = vshll.u32 2102212464, %v3141
  %v3154 = vshrl.u32 920167782, %v3142
  %v3155 = vor.u32 %v3153, %v3154
  %v3156 = vshll.u32 920167782, %v3141
  %v3157 = vshrl.u32 1326507024, %v3142
  %v3158 = vor.u32 %v3156, %v3157
  %vm3159 = vcmp.lt.s32.totalorder %v3140, 1
  %vm3160 = vcmp.lt.s32.totalorder %v3140, 2
  %vm3161 = vcmp.lt.s32.totalorder %v3140, 3
  %vm3162 = vcmp.lt.s32.totalorder %v3140, 4
  %v3163 = vsel %vm3159, %v3143, %v3146
  %v3164 = vsel %vm3162, %v3152, 2102212464
  %v3165 = vsel %vm3161, %v3149, %v3164
  %v3166 = vsel %vm3160, %v3163, %v3165
  %v3167 = vsel %vm3159, %v3146, %v3149
  %v3168 = vsel %vm3162, %v3155, 920167782
  %v3169 = vsel %vm3161, %v3152, %v3168
  %v3170 = vsel %vm3160, %v3167, %v3169
  %v3171 = vsel %vm3159, %v3149, %v3152
  %v3172 = vsel %vm3162, %v3158, 1326507024
  %v3173 = vsel %vm3161, %v3155, %v3172
  %v3174 = vsel %vm3160, %v3171, %v3173
  %v3175 = vshll.u32 %v3135, 8
  %v3176 = vmul.u32.u64.compose %v3175, %v3174
  %v3177 = vextract.low.u32 %v3176
  %v3178 = vextract.high.u32 %v3176
  %v3179 = vmul.u32.u64.compose %v3175, %v3170
  %v3180 = vextract.low.u32 %v3179
  %v3181 = vextract.high.u32 %v3179
  %v3182 = vmul.u32 %v3175, %v3166
  %v3183 = vadd.s32 %v3178, %v3180
  %vm3184 = vc.u32 %v3178, %v3180
  %v3185 = vadd.s32 %v3181, 1
  %v3186 = vsel %vm3184, %v3185, %v3181
  %v3187 = vadd.s32 %v3182, %v3186
  %v3188 = vadd.s32 %v3187, 536870912
  %v3189 = vshrl.u32 %v3188, 30
  %v3190 = vshll.u32 %v3189, 30
  %v3191 = vsub.s32 %v3187, %v3190
  %vm3192 = vcmp.lt.s32.totalorder %v3191, 0
  %v3193 = vsub.s32 0, %v3191
  %v3194 = vsel %vm3192, %v3193, %v3191
  %v3195 = vclz %v3194
  %v3196 = vsub.s32 %v3195, 2
  %vm3197 = vcmp.gt.s32.totalorder 0, %v3196
  %v3198 = vsel %vm3197, 0, %v3196
  %v3199 = vsub.s32 32, %v3198
  %v3200 = vshll.u32 %v3191, %v3198
  %v3201 = vshrl.u32 %v3183, %v3199
  %v3202 = vor.u32 %v3200, %v3201
  %v3203 = vsub.s32 4294967266, %v3198
  %v3204 = vadd.s32 %v3203, 127
  %v3205 = vshll.u32 %v3204, 23
  %v3206 = vor.u32 4788187, %v3205
  %v3207 = vand.u32 2147483647, %v3206
  %v3209 = vcvt.s32.f32 %v3202
  %v3210 = vmul.f32 %v3209, %v3207
  %v3211 = vxor.u32 %v3210, 2147483648
  %v3212 = vsel %vm3129, %v3211, %v3210
  %v3213 = vsub.s32 4, %v3189
  %v3214 = vsel %vm3129, %v3213, %v3189
  %v3215 = vsel %vm3128, %v1566, %v3212
  %v3216 = vsel %vm3128, 0, %v3214
  %v3217 = vcosq.f32.pop %v3215
  %v3218 = vsinq.f32.pop %v3215
  %vm3219 = vweird.f32 %v1566
  %v3220 = vadd.s32 %v3216, 3
  %v3221 = vand.u32 %v3220, 3
  %vm3222 = vcmp.lt.s32.totalorder %v3221, 2
  %vm3223 = vcmp.eq.s32.totalorder %v3221, 0
  %v3224 = vxor.u32 %v3218, 2147483648
  %v3225 = vsel %vm3223, %v3217, %v3224
  %vm3226 = vcmp.eq.s32.totalorder %v3221, 2
  %v3227 = vxor.u32 %v3217, 2147483648
  %v3228 = vsel %vm3226, %v3227, %v3218
  %v3229 = vsel %vm3222, %v3225, %v3228
  %v3230 = vsel %vm3219, nan, %v3229
  %v3231 = vadd.f32 %v1455, %v1670
  %v3232 = vadd.f32 %v1456, %v1774
  %v3233 = vadd.f32 %v1457, %v1878
  %v3234 = vadd.f32 %v1458, %v1982
  %v3235 = vadd.f32 %v1459, %v2086
  %v3236 = vadd.f32 %v1460, %v2190
  %v3237 = vadd.f32 %v1461, %v2294
  %v3238 = vadd.f32 %v1462, %v2398
  %v3239 = vadd.f32 %v1463, %v2502
  %v3240 = vadd.f32 %v1464, %v2606
  %v3241 = vadd.f32 %v1465, %v2710
  %v3242 = vadd.f32 %v1466, %v2814
  %v3243 = vadd.f32 %v1467, %v2918
  %v3244 = vadd.f32 %v1468, %v3022
  %v3245 = vadd.f32 %v1469, %v3126
  %v3246 = vadd.f32 %v1470, %v3230
  %v3247 = vld [vmem:[%s9] sm:$0xff]
  %v3248 = vld [vmem:[%s9 + $0x8] sm:$0xff]
  %v3249 = vadd.f32 %v3231, %v3247
  %v3250 = vadd.f32 %v3232, %v3248
  %v3251 = vadd.f32 %v3233, %v3247
  %v3252 = vadd.f32 %v3234, %v3248
  %v3253 = vadd.f32 %v3235, %v3247
  %v3254 = vadd.f32 %v3236, %v3248
  %v3255 = vadd.f32 %v3237, %v3247
  %v3256 = vadd.f32 %v3238, %v3248
  %v3257 = vadd.f32 %v3239, %v3247
  %v3258 = vadd.f32 %v3240, %v3248
  %v3259 = vadd.f32 %v3241, %v3247
  %v3260 = vadd.f32 %v3242, %v3248
  %v3261 = vadd.f32 %v3243, %v3247
  %v3262 = vadd.f32 %v3244, %v3248
  %v3263 = vadd.f32 %v3245, %v3247
  %v3264 = vadd.f32 %v3246, %v3248
  %vm3265 = vcmask 261120
  %v3266 = vsel %vm3265, %v3249, -inf
  %3267 = vmax.xlane.f32.xlu0 %v3266
  %v3268 = vpop.xlane.xlu0 %3267
  %v3269 = vsel %vm3265, %v3250, -inf
  %3270 = vmax.xlane.f32.xlu0 %v3269
  %v3271 = vpop.xlane.xlu0 %3270
  %v3272 = vsel %vm3265, %v3251, -inf
  %3273 = vmax.xlane.f32.xlu0 %v3272
  %v3274 = vpop.xlane.xlu0 %3273
  %v3275 = vsel %vm3265, %v3252, -inf
  %3276 = vmax.xlane.f32.xlu0 %v3275
  %v3277 = vpop.xlane.xlu0 %3276
  %v3278 = vsel %vm3265, %v3253, -inf
  %3279 = vmax.xlane.f32.xlu0 %v3278
  %v3280 = vpop.xlane.xlu0 %3279
  %v3281 = vsel %vm3265, %v3254, -inf
  %3282 = vmax.xlane.f32.xlu0 %v3281
  %v3283 = vpop.xlane.xlu0 %3282
  %v3284 = vsel %vm3265, %v3255, -inf
  %3285 = vmax.xlane.f32.xlu0 %v3284
  %v3286 = vpop.xlane.xlu0 %3285
  %v3287 = vsel %vm3265, %v3256, -inf
  %3288 = vmax.xlane.f32.xlu0 %v3287
  %v3289 = vpop.xlane.xlu0 %3288
  %v3290 = vsel %vm3265, %v3257, -inf
  %3291 = vmax.xlane.f32.xlu0 %v3290
  %v3292 = vpop.xlane.xlu0 %3291
  %v3293 = vsel %vm3265, %v3258, -inf
  %3294 = vmax.xlane.f32.xlu0 %v3293
  %v3295 = vpop.xlane.xlu0 %3294
  %v3296 = vsel %vm3265, %v3259, -inf
  %3297 = vmax.xlane.f32.xlu0 %v3296
  %v3298 = vpop.xlane.xlu0 %3297
  %v3299 = vsel %vm3265, %v3260, -inf
  %3300 = vmax.xlane.f32.xlu0 %v3299
  %v3301 = vpop.xlane.xlu0 %3300
  %v3302 = vsel %vm3265, %v3261, -inf
  %3303 = vmax.xlane.f32.xlu0 %v3302
  %v3304 = vpop.xlane.xlu0 %3303
  %v3305 = vsel %vm3265, %v3262, -inf
  %3306 = vmax.xlane.f32.xlu0 %v3305
  %v3307 = vpop.xlane.xlu0 %3306
  %v3308 = vsel %vm3265, %v3263, -inf
  %3309 = vmax.xlane.f32.xlu0 %v3308
  %v3310 = vpop.xlane.xlu0 %3309
  %v3311 = vsel %vm3265, %v3264, -inf
  %3312 = vmax.xlane.f32.xlu0 %v3311
  %v3313 = vpop.xlane.xlu0 %3312
  %v3314 = vsub.f32 %v3249, %v3268
  %v3315 = vsub.f32 %v3250, %v3271
  %v3316 = vsub.f32 %v3251, %v3274
  %v3317 = vsub.f32 %v3252, %v3277
  %v3318 = vsub.f32 %v3253, %v3280
  %v3319 = vsub.f32 %v3254, %v3283
  %v3320 = vsub.f32 %v3255, %v3286
  %v3321 = vsub.f32 %v3256, %v3289
  %v3322 = vsub.f32 %v3257, %v3292
  %v3323 = vsub.f32 %v3258, %v3295
  %v3324 = vsub.f32 %v3259, %v3298
  %v3325 = vsub.f32 %v3260, %v3301
  %v3326 = vsub.f32 %v3261, %v3304
  %v3327 = vsub.f32 %v3262, %v3307
  %v3328 = vsub.f32 %v3263, %v3310
  %v3329 = vsub.f32 %v3264, %v3313
  %v3330 = vmul.f32 %v3314, 1.442695
  %v3331 = vpow.pop %v3330
  %v3332 = vmul.f32 %v3315, 1.442695
  %v3333 = vpow.pop %v3332
  %v3334 = vmul.f32 %v3316, 1.442695
  %v3335 = vpow.pop %v3334
  %v3336 = vmul.f32 %v3317, 1.442695
  %v3337 = vpow.pop %v3336
  %v3338 = vmul.f32 %v3318, 1.442695
  %v3339 = vpow.pop %v3338
  %v3340 = vmul.f32 %v3319, 1.442695
  %v3341 = vpow.pop %v3340
  %v3342 = vmul.f32 %v3320, 1.442695
  %v3343 = vpow.pop %v3342
  %v3344 = vmul.f32 %v3321, 1.442695
  %v3345 = vpow.pop %v3344
  %v3346 = vmul.f32 %v3322, 1.442695
  %v3347 = vpow.pop %v3346
  %v3348 = vmul.f32 %v3323, 1.442695
  %v3349 = vpow.pop %v3348
  %v3350 = vmul.f32 %v3324, 1.442695
  %v3351 = vpow.pop %v3350
  %v3352 = vmul.f32 %v3325, 1.442695
  %v3353 = vpow.pop %v3352
  %v3354 = vmul.f32 %v3326, 1.442695
  %v3355 = vpow.pop %v3354
  %v3356 = vmul.f32 %v3327, 1.442695
  %v3357 = vpow.pop %v3356
  %v3358 = vmul.f32 %v3328, 1.442695
  %v3359 = vpow.pop %v3358
  %v3360 = vmul.f32 %v3329, 1.442695
  %v3361 = vpow.pop %v3360
  %v3362 = vsel %vm3265, %v3331, 0.0
  %3363 = vadd.xlane.f32.xlu0 %v3362
  %v3364 = vpop.xlane.xlu0 %3363
  %v3365 = vsel %vm3265, %v3333, 0.0
  %3366 = vadd.xlane.f32.xlu0 %v3365
  %v3367 = vpop.xlane.xlu0 %3366
  %v3368 = vsel %vm3265, %v3335, 0.0
  %3369 = vadd.xlane.f32.xlu0 %v3368
  %v3370 = vpop.xlane.xlu0 %3369
  %v3371 = vsel %vm3265, %v3337, 0.0
  %3372 = vadd.xlane.f32.xlu0 %v3371
  %v3373 = vpop.xlane.xlu0 %3372
  %v3374 = vsel %vm3265, %v3339, 0.0
  %3375 = vadd.xlane.f32.xlu0 %v3374
  %v3376 = vpop.xlane.xlu0 %3375
  %v3377 = vsel %vm3265, %v3341, 0.0
  %3378 = vadd.xlane.f32.xlu0 %v3377
  %v3379 = vpop.xlane.xlu0 %3378
  %v3380 = vsel %vm3265, %v3343, 0.0
  %3381 = vadd.xlane.f32.xlu0 %v3380
  %v3382 = vpop.xlane.xlu0 %3381
  %v3383 = vsel %vm3265, %v3345, 0.0
  %3384 = vadd.xlane.f32.xlu0 %v3383
  %v3385 = vpop.xlane.xlu0 %3384
  %v3386 = vsel %vm3265, %v3347, 0.0
  %3387 = vadd.xlane.f32.xlu0 %v3386
  %v3388 = vpop.xlane.xlu0 %3387
  %v3389 = vsel %vm3265, %v3349, 0.0
  %3390 = vadd.xlane.f32.xlu0 %v3389
  %v3391 = vpop.xlane.xlu0 %3390
  %v3392 = vsel %vm3265, %v3351, 0.0
  %3393 = vadd.xlane.f32.xlu0 %v3392
  %v3394 = vpop.xlane.xlu0 %3393
  %v3395 = vsel %vm3265, %v3353, 0.0
  %3396 = vadd.xlane.f32.xlu0 %v3395
  %v3397 = vpop.xlane.xlu0 %3396
  %v3398 = vsel %vm3265, %v3355, 0.0
  %3399 = vadd.xlane.f32.xlu0 %v3398
  %v3400 = vpop.xlane.xlu0 %3399
  %v3401 = vsel %vm3265, %v3357, 0.0
  %3402 = vadd.xlane.f32.xlu0 %v3401
  %v3403 = vpop.xlane.xlu0 %3402
  %v3404 = vsel %vm3265, %v3359, 0.0
  %3405 = vadd.xlane.f32.xlu0 %v3404
  %v3406 = vpop.xlane.xlu0 %3405
  %v3407 = vsel %vm3265, %v3361, 0.0
  %3408 = vadd.xlane.f32.xlu0 %v3407
  %v3409 = vpop.xlane.xlu0 %3408
  %v3410 = vrcp.pop %v3364
  %v3411 = vrcp.pop %v3367
  %v3412 = vrcp.pop %v3370
  %v3413 = vrcp.pop %v3373
  %v3414 = vrcp.pop %v3376
  %v3415 = vrcp.pop %v3379
  %v3416 = vrcp.pop %v3382
  %v3417 = vrcp.pop %v3385
  %v3418 = vrcp.pop %v3388
  %v3419 = vrcp.pop %v3391
  %v3420 = vrcp.pop %v3394
  %v3421 = vrcp.pop %v3397
  %v3422 = vrcp.pop %v3400
  %v3423 = vrcp.pop %v3403
  %v3424 = vrcp.pop %v3406
  %v3425 = vrcp.pop %v3409
  %v3427 = vsel %vm3265, %v512, 0
  %v3430 = vsel %vm3265, %v3331, 0
  %v3433 = vsel %vm3265, %v3333, 0
  %3435 = vmatprep.subr.mxu0 0.0
  %3436 = vmatpush1.xpose.msra.mxu0 %v3430
  %3437 = vmatprep.subr.mxu0 0.0
  %3438 = vmatpush1.xpose.msra.mxu0 %v3433
  %3439 = vmatprep.subr.mxu0 0.0
  %3440 = vmatpush1.xpose.msra.mxu0 0.0
  %3441 = vmatprep.subr.mxu0 0.0
  %3442 = vmatpush1.xpose.msra.mxu0 0.0
  %3443 = vmatprep.subr.mxu0 0.0
  %3444 = vmatpush1.xpose.msra.mxu0 0.0
  %3445 = vmatprep.subr.mxu0 0.0
  %3446 = vmatpush1.xpose.msra.mxu0 0.0
  %3447 = vmatprep.subr.mxu0 0.0
  %3448 = vmatpush1.xpose.msra.mxu0 0.0
  %3449 = vmatprep.subr.mxu0 0.0
  %3450 = vmatpush1.xpose.msra.mxu0 0.0
  %3451 = vmatprep.subr.mxu0 0.0
  %3452 = vmatpush1.xpose.msra.mxu0 0.0
  %3453 = vmatprep.subr.mxu0 0.0
  %3454 = vmatpush1.xpose.msra.mxu0 0.0
  %3455 = vmatprep.subr.mxu0 0.0
  %3456 = vmatpush1.xpose.msra.mxu0 0.0
  %3457 = vmatprep.subr.mxu0 0.0
  %3458 = vmatpush1.xpose.msra.mxu0 0.0
  %3459 = vmatprep.subr.mxu0 0.0
  %3460 = vmatpush1.xpose.msra.mxu0 0.0
  %3461 = vmatprep.subr.mxu0 0.0
  %3462 = vmatpush1.xpose.msra.mxu0 0.0
  %3463 = vmatprep.subr.mxu0 0.0
  %3464 = vmatpush1.xpose.msra.mxu0 0.0
  %3465 = vmatprep.subr.mxu0 0.0
  %3466 = vmatpush1.xpose.msra.mxu0 0.0
  %3467 = vmatprep.subr.mxu0 0.0
  %3468 = vmatpush1.xpose.msra.mxu0 0.0
  %3469 = vmatprep.subr.mxu0 0.0
  %3470 = vmatpush1.xpose.msra.mxu0 0.0
  %3471 = vmatprep.subr.mxu0 0.0
  %3472 = vmatpush1.xpose.msra.mxu0 0.0
  %3473 = vmatprep.subr.mxu0 0.0
  %3474 = vmatpush1.xpose.msra.mxu0 0.0
  %3475 = vmatprep.subr.mxu0 0.0
  %3476 = vmatpush1.xpose.msra.mxu0 0.0
  %3477 = vmatprep.subr.mxu0 0.0
  %3478 = vmatpush1.xpose.msra.mxu0 0.0
  %3479 = vmatprep.subr.mxu0 0.0
  %3480 = vmatpush1.xpose.msra.mxu0 0.0
  %3481 = vmatprep.subr.mxu0 0.0
  %3482 = vmatpush1.xpose.msra.mxu0 0.0
  %3483 = vmatprep.subr.mxu0 0.0
  %3484 = vmatpush1.xpose.msra.mxu0 0.0
  %3485 = vmatprep.subr.mxu0 0.0
  %3486 = vmatpush1.xpose.msra.mxu0 0.0
  %3487 = vmatprep.subr.mxu0 0.0
  %3488 = vmatpush1.xpose.msra.mxu0 0.0
  %3489 = vmatprep.subr.mxu0 0.0
  %3490 = vmatpush1.xpose.msra.mxu0 0.0
  %3491 = vmatprep.subr.mxu0 0.0
  %3492 = vmatpush1.xpose.msra.mxu0 0.0
  %3493 = vmatprep.subr.mxu0 0.0
  %3494 = vmatpush1.xpose.msra.mxu0 0.0
  %3495 = vmatprep.subr.mxu0 0.0
  %3496 = vmatpush1.xpose.msra.mxu0 0.0
  %3497 = vmatprep.subr.mxu0 0.0
  %3498 = vmatpush1.xpose.msra.mxu0 0.0
  %3499 = vmatprep.mubr.f32.mxu0 0.0
  %3500 = vmatmul.mubr.f32.gmra.mrb[0].mxu0 %v3427
  %v3501 = vpop.f32.mrb[0].mxu0
  %v3502 = vadd.f32 0.0, %v3501
  %v3503 = vpop.f32.mrb[0].mxu0
  %3504 = vdwg.mxu0
  %v3506 = vsel %vm3265, %v517, 0
  %v3509 = vsel %vm3265, %v3335, 0
  %v3512 = vsel %vm3265, %v3337, 0
  %3514 = vmatprep.subr.mxu0 0.0
  %3515 = vmatpush1.xpose.msra.mxu0 %v3509
  %3516 = vmatprep.subr.mxu0 0.0
  %3517 = vmatpush1.xpose.msra.mxu0 %v3512
  %3518 = vmatprep.subr.mxu0 0.0
  %3519 = vmatpush1.xpose.msra.mxu0 0.0
  %3520 = vmatprep.subr.mxu0 0.0
  %3521 = vmatpush1.xpose.msra.mxu0 0.0
  %3522 = vmatprep.subr.mxu0 0.0
  %3523 = vmatpush1.xpose.msra.mxu0 0.0
  %3524 = vmatprep.subr.mxu0 0.0
  %3525 = vmatpush1.xpose.msra.mxu0 0.0
  %3526 = vmatprep.subr.mxu0 0.0
  %3527 = vmatpush1.xpose.msra.mxu0 0.0
  %3528 = vmatprep.subr.mxu0 0.0
  %3529 = vmatpush1.xpose.msra.mxu0 0.0
  %3530 = vmatprep.subr.mxu0 0.0
  %3531 = vmatpush1.xpose.msra.mxu0 0.0
  %3532 = vmatprep.subr.mxu0 0.0
  %3533 = vmatpush1.xpose.msra.mxu0 0.0
  %3534 = vmatprep.subr.mxu0 0.0
  %3535 = vmatpush1.xpose.msra.mxu0 0.0
  %3536 = vmatprep.subr.mxu0 0.0
  %3537 = vmatpush1.xpose.msra.mxu0 0.0
  %3538 = vmatprep.subr.mxu0 0.0
  %3539 = vmatpush1.xpose.msra.mxu0 0.0
  %3540 = vmatprep.subr.mxu0 0.0
  %3541 = vmatpush1.xpose.msra.mxu0 0.0
  %3542 = vmatprep.subr.mxu0 0.0
  %3543 = vmatpush1.xpose.msra.mxu0 0.0
  %3544 = vmatprep.subr.mxu0 0.0
  %3545 = vmatpush1.xpose.msra.mxu0 0.0
  %3546 = vmatprep.subr.mxu0 0.0
  %3547 = vmatpush1.xpose.msra.mxu0 0.0
  %3548 = vmatprep.subr.mxu0 0.0
  %3549 = vmatpush1.xpose.msra.mxu0 0.0
  %3550 = vmatprep.subr.mxu0 0.0
  %3551 = vmatpush1.xpose.msra.mxu0 0.0
  %3552 = vmatprep.subr.mxu0 0.0
  %3553 = vmatpush1.xpose.msra.mxu0 0.0
  %3554 = vmatprep.subr.mxu0 0.0
  %3555 = vmatpush1.xpose.msra.mxu0 0.0
  %3556 = vmatprep.subr.mxu0 0.0
  %3557 = vmatpush1.xpose.msra.mxu0 0.0
  %3558 = vmatprep.subr.mxu0 0.0
  %3559 = vmatpush1.xpose.msra.mxu0 0.0
  %3560 = vmatprep.subr.mxu0 0.0
  %3561 = vmatpush1.xpose.msra.mxu0 0.0
  %3562 = vmatprep.subr.mxu0 0.0
  %3563 = vmatpush1.xpose.msra.mxu0 0.0
  %3564 = vmatprep.subr.mxu0 0.0
  %3565 = vmatpush1.xpose.msra.mxu0 0.0
  %3566 = vmatprep.subr.mxu0 0.0
  %3567 = vmatpush1.xpose.msra.mxu0 0.0
  %3568 = vmatprep.subr.mxu0 0.0
  %3569 = vmatpush1.xpose.msra.mxu0 0.0
  %3570 = vmatprep.subr.mxu0 0.0
  %3571 = vmatpush1.xpose.msra.mxu0 0.0
  %3572 = vmatprep.subr.mxu0 0.0
  %3573 = vmatpush1.xpose.msra.mxu0 0.0
  %3574 = vmatprep.subr.mxu0 0.0
  %3575 = vmatpush1.xpose.msra.mxu0 0.0
  %3576 = vmatprep.subr.mxu0 0.0
  %3577 = vmatpush1.xpose.msra.mxu0 0.0
  %3578 = vmatprep.mubr.f32.mxu0 0.0
  %3579 = vmatmul.mubr.f32.gmra.mrb[0].mxu0 %v3506
  %v3580 = vpop.f32.mrb[0].mxu0
  %v3581 = vadd.f32 0.0, %v3580
  %v3582 = vpop.f32.mrb[0].mxu0
  %3583 = vdwg.mxu0
  %v3585 = vsel %vm3265, %v522, 0
  %v3588 = vsel %vm3265, %v3339, 0
  %v3591 = vsel %vm3265, %v3341, 0
  %3593 = vmatprep.subr.mxu0 0.0
  %3594 = vmatpush1.xpose.msra.mxu0 %v3588
  %3595 = vmatprep.subr.mxu0 0.0
  %3596 = vmatpush1.xpose.msra.mxu0 %v3591
  %3597 = vmatprep.subr.mxu0 0.0
  %3598 = vmatpush1.xpose.msra.mxu0 0.0
  %3599 = vmatprep.subr.mxu0 0.0
  %3600 = vmatpush1.xpose.msra.mxu0 0.0
  %3601 = vmatprep.subr.mxu0 0.0
  %3602 = vmatpush1.xpose.msra.mxu0 0.0
  %3603 = vmatprep.subr.mxu0 0.0
  %3604 = vmatpush1.xpose.msra.mxu0 0.0
  %3605 = vmatprep.subr.mxu0 0.0
  %3606 = vmatpush1.xpose.msra.mxu0 0.0
  %3607 = vmatprep.subr.mxu0 0.0
  %3608 = vmatpush1.xpose.msra.mxu0 0.0
  %3609 = vmatprep.subr.mxu0 0.0
  %3610 = vmatpush1.xpose.msra.mxu0 0.0
  %3611 = vmatprep.subr.mxu0 0.0
  %3612 = vmatpush1.xpose.msra.mxu0 0.0
  %3613 = vmatprep.subr.mxu0 0.0
  %3614 = vmatpush1.xpose.msra.mxu0 0.0
  %3615 = vmatprep.subr.mxu0 0.0
  %3616 = vmatpush1.xpose.msra.mxu0 0.0
  %3617 = vmatprep.subr.mxu0 0.0
  %3618 = vmatpush1.xpose.msra.mxu0 0.0
  %3619 = vmatprep.subr.mxu0 0.0
  %3620 = vmatpush1.xpose.msra.mxu0 0.0
  %3621 = vmatprep.subr.mxu0 0.0
  %3622 = vmatpush1.xpose.msra.mxu0 0.0
  %3623 = vmatprep.subr.mxu0 0.0
  %3624 = vmatpush1.xpose.msra.mxu0 0.0
  %3625 = vmatprep.subr.mxu0 0.0
  %3626 = vmatpush1.xpose.msra.mxu0 0.0
  %3627 = vmatprep.subr.mxu0 0.0
  %3628 = vmatpush1.xpose.msra.mxu0 0.0
  %3629 = vmatprep.subr.mxu0 0.0
  %3630 = vmatpush1.xpose.msra.mxu0 0.0
  %3631 = vmatprep.subr.mxu0 0.0
  %3632 = vmatpush1.xpose.msra.mxu0 0.0
  %3633 = vmatprep.subr.mxu0 0.0
  %3634 = vmatpush1.xpose.msra.mxu0 0.0
  %3635 = vmatprep.subr.mxu0 0.0
  %3636 = vmatpush1.xpose.msra.mxu0 0.0
  %3637 = vmatprep.subr.mxu0 0.0
  %3638 = vmatpush1.xpose.msra.mxu0 0.0
  %3639 = vmatprep.subr.mxu0 0.0
  %3640 = vmatpush1.xpose.msra.mxu0 0.0
  %3641 = vmatprep.subr.mxu0 0.0
  %3642 = vmatpush1.xpose.msra.mxu0 0.0
  %3643 = vmatprep.subr.mxu0 0.0
  %3644 = vmatpush1.xpose.msra.mxu0 0.0
  %3645 = vmatprep.subr.mxu0 0.0
  %3646 = vmatpush1.xpose.msra.mxu0 0.0
  %3647 = vmatprep.subr.mxu0 0.0
  %3648 = vmatpush1.xpose.msra.mxu0 0.0
  %3649 = vmatprep.subr.mxu0 0.0
  %3650 = vmatpush1.xpose.msra.mxu0 0.0
  %3651 = vmatprep.subr.mxu0 0.0
  %3652 = vmatpush1.xpose.msra.mxu0 0.0
  %3653 = vmatprep.subr.mxu0 0.0
  %3654 = vmatpush1.xpose.msra.mxu0 0.0
  %3655 = vmatprep.subr.mxu0 0.0
  %3656 = vmatpush1.xpose.msra.mxu0 0.0
  %3657 = vmatprep.mubr.f32.mxu0 0.0
  %3658 = vmatmul.mubr.f32.gmra.mrb[0].mxu0 %v3585
  %v3659 = vpop.f32.mrb[0].mxu0
  %v3660 = vadd.f32 0.0, %v3659
  %v3661 = vpop.f32.mrb[0].mxu0
  %3662 = vdwg.mxu0
  %v3664 = vsel %vm3265, %v527, 0
  %v3667 = vsel %vm3265, %v3343, 0
  %v3670 = vsel %vm3265, %v3345, 0
  %3672 = vmatprep.subr.mxu0 0.0
  %3673 = vmatpush1.xpose.msra.mxu0 %v3667
  %3674 = vmatprep.subr.mxu0 0.0
  %3675 = vmatpush1.xpose.msra.mxu0 %v3670
  %3676 = vmatprep.subr.mxu0 0.0
  %3677 = vmatpush1.xpose.msra.mxu0 0.0
  %3678 = vmatprep.subr.mxu0 0.0
  %3679 = vmatpush1.xpose.msra.mxu0 0.0
  %3680 = vmatprep.subr.mxu0 0.0
  %3681 = vmatpush1.xpose.msra.mxu0 0.0
  %3682 = vmatprep.subr.mxu0 0.0
  %3683 = vmatpush1.xpose.msra.mxu0 0.0
  %3684 = vmatprep.subr.mxu0 0.0
  %3685 = vmatpush1.xpose.msra.mxu0 0.0
  %3686 = vmatprep.subr.mxu0 0.0
  %3687 = vmatpush1.xpose.msra.mxu0 0.0
  %3688 = vmatprep.subr.mxu0 0.0
  %3689 = vmatpush1.xpose.msra.mxu0 0.0
  %3690 = vmatprep.subr.mxu0 0.0
  %3691 = vmatpush1.xpose.msra.mxu0 0.0
  %3692 = vmatprep.subr.mxu0 0.0
  %3693 = vmatpush1.xpose.msra.mxu0 0.0
  %3694 = vmatprep.subr.mxu0 0.0
  %3695 = vmatpush1.xpose.msra.mxu0 0.0
  %3696 = vmatprep.subr.mxu0 0.0
  %3697 = vmatpush1.xpose.msra.mxu0 0.0
  %3698 = vmatprep.subr.mxu0 0.0
  %3699 = vmatpush1.xpose.msra.mxu0 0.0
  %3700 = vmatprep.subr.mxu0 0.0
  %3701 = vmatpush1.xpose.msra.mxu0 0.0
  %3702 = vmatprep.subr.mxu0 0.0
  %3703 = vmatpush1.xpose.msra.mxu0 0.0
  %3704 = vmatprep.subr.mxu0 0.0
  %3705 = vmatpush1.xpose.msra.mxu0 0.0
  %3706 = vmatprep.subr.mxu0 0.0
  %3707 = vmatpush1.xpose.msra.mxu0 0.0
  %3708 = vmatprep.subr.mxu0 0.0
  %3709 = vmatpush1.xpose.msra.mxu0 0.0
  %3710 = vmatprep.subr.mxu0 0.0
  %3711 = vmatpush1.xpose.msra.mxu0 0.0
  %3712 = vmatprep.subr.mxu0 0.0
  %3713 = vmatpush1.xpose.msra.mxu0 0.0
  %3714 = vmatprep.subr.mxu0 0.0
  %3715 = vmatpush1.xpose.msra.mxu0 0.0
  %3716 = vmatprep.subr.mxu0 0.0
  %3717 = vmatpush1.xpose.msra.mxu0 0.0
  %3718 = vmatprep.subr.mxu0 0.0
  %3719 = vmatpush1.xpose.msra.mxu0 0.0
  %3720 = vmatprep.subr.mxu0 0.0
  %3721 = vmatpush1.xpose.msra.mxu0 0.0
  %3722 = vmatprep.subr.mxu0 0.0
  %3723 = vmatpush1.xpose.msra.mxu0 0.0
  %3724 = vmatprep.subr.mxu0 0.0
  %3725 = vmatpush1.xpose.msra.mxu0 0.0
  %3726 = vmatprep.subr.mxu0 0.0
  %3727 = vmatpush1.xpose.msra.mxu0 0.0
  %3728 = vmatprep.subr.mxu0 0.0
  %3729 = vmatpush1.xpose.msra.mxu0 0.0
  %3730 = vmatprep.subr.mxu0 0.0
  %3731 = vmatpush1.xpose.msra.mxu0 0.0
  %3732 = vmatprep.subr.mxu0 0.0
  %3733 = vmatpush1.xpose.msra.mxu0 0.0
  %3734 = vmatprep.subr.mxu0 0.0
  %3735 = vmatpush1.xpose.msra.mxu0 0.0
  %3736 = vmatprep.mubr.f32.mxu0 0.0
  %3737 = vmatmul.mubr.f32.gmra.mrb[0].mxu0 %v3664
  %v3738 = vpop.f32.mrb[0].mxu0
  %v3739 = vadd.f32 0.0, %v3738
  %v3740 = vpop.f32.mrb[0].mxu0
  %3741 = vdwg.mxu0
  %v3743 = vsel %vm3265, %v532, 0
  %v3746 = vsel %vm3265, %v3347, 0
  %v3749 = vsel %vm3265, %v3349, 0
  %3751 = vmatprep.subr.mxu0 0.0
  %3752 = vmatpush1.xpose.msra.mxu0 %v3746
  %3753 = vmatprep.subr.mxu0 0.0
  %3754 = vmatpush1.xpose.msra.mxu0 %v3749
  %3755 = vmatprep.subr.mxu0 0.0
  %3756 = vmatpush1.xpose.msra.mxu0 0.0
  %3757 = vmatprep.subr.mxu0 0.0
  %3758 = vmatpush1.xpose.msra.mxu0 0.0
  %3759 = vmatprep.subr.mxu0 0.0
  %3760 = vmatpush1.xpose.msra.mxu0 0.0
  %3761 = vmatprep.subr.mxu0 0.0
  %3762 = vmatpush1.xpose.msra.mxu0 0.0
  %3763 = vmatprep.subr.mxu0 0.0
  %3764 = vmatpush1.xpose.msra.mxu0 0.0
  %3765 = vmatprep.subr.mxu0 0.0
  %3766 = vmatpush1.xpose.msra.mxu0 0.0
  %3767 = vmatprep.subr.mxu0 0.0
  %3768 = vmatpush1.xpose.msra.mxu0 0.0
  %3769 = vmatprep.subr.mxu0 0.0
  %3770 = vmatpush1.xpose.msra.mxu0 0.0
  %3771 = vmatprep.subr.mxu0 0.0
  %3772 = vmatpush1.xpose.msra.mxu0 0.0
  %3773 = vmatprep.subr.mxu0 0.0
  %3774 = vmatpush1.xpose.msra.mxu0 0.0
  %3775 = vmatprep.subr.mxu0 0.0
  %3776 = vmatpush1.xpose.msra.mxu0 0.0
  %3777 = vmatprep.subr.mxu0 0.0
  %3778 = vmatpush1.xpose.msra.mxu0 0.0
  %3779 = vmatprep.subr.mxu0 0.0
  %3780 = vmatpush1.xpose.msra.mxu0 0.0
  %3781 = vmatprep.subr.mxu0 0.0
  %3782 = vmatpush1.xpose.msra.mxu0 0.0
  %3783 = vmatprep.subr.mxu0 0.0
  %3784 = vmatpush1.xpose.msra.mxu0 0.0
  %3785 = vmatprep.subr.mxu0 0.0
  %3786 = vmatpush1.xpose.msra.mxu0 0.0
  %3787 = vmatprep.subr.mxu0 0.0
  %3788 = vmatpush1.xpose.msra.mxu0 0.0
  %3789 = vmatprep.subr.mxu0 0.0
  %3790 = vmatpush1.xpose.msra.mxu0 0.0
  %3791 = vmatprep.subr.mxu0 0.0
  %3792 = vmatpush1.xpose.msra.mxu0 0.0
  %3793 = vmatprep.subr.mxu0 0.0
  %3794 = vmatpush1.xpose.msra.mxu0 0.0
  %3795 = vmatprep.subr.mxu0 0.0
  %3796 = vmatpush1.xpose.msra.mxu0 0.0
  %3797 = vmatprep.subr.mxu0 0.0
  %3798 = vmatpush1.xpose.msra.mxu0 0.0
  %3799 = vmatprep.subr.mxu0 0.0
  %3800 = vmatpush1.xpose.msra.mxu0 0.0
  %3801 = vmatprep.subr.mxu0 0.0
  %3802 = vmatpush1.xpose.msra.mxu0 0.0
  %3803 = vmatprep.subr.mxu0 0.0
  %3804 = vmatpush1.xpose.msra.mxu0 0.0
  %3805 = vmatprep.subr.mxu0 0.0
  %3806 = vmatpush1.xpose.msra.mxu0 0.0
  %3807 = vmatprep.subr.mxu0 0.0
  %3808 = vmatpush1.xpose.msra.mxu0 0.0
  %3809 = vmatprep.subr.mxu0 0.0
  %3810 = vmatpush1.xpose.msra.mxu0 0.0
  %3811 = vmatprep.subr.mxu0 0.0
  %3812 = vmatpush1.xpose.msra.mxu0 0.0
  %3813 = vmatprep.subr.mxu0 0.0
  %3814 = vmatpush1.xpose.msra.mxu0 0.0
  %3815 = vmatprep.mubr.f32.mxu0 0.0
  %3816 = vmatmul.mubr.f32.gmra.mrb[0].mxu0 %v3743
  %v3817 = vpop.f32.mrb[0].mxu0
  %v3818 = vadd.f32 0.0, %v3817
  %v3819 = vpop.f32.mrb[0].mxu0
  %3820 = vdwg.mxu0
  %v3822 = vsel %vm3265, %v537, 0
  %v3825 = vsel %vm3265, %v3351, 0
  %v3828 = vsel %vm3265, %v3353, 0
  %3830 = vmatprep.subr.mxu0 0.0
  %3831 = vmatpush1.xpose.msra.mxu0 %v3825
  %3832 = vmatprep.subr.mxu0 0.0
  %3833 = vmatpush1.xpose.msra.mxu0 %v3828
  %3834 = vmatprep.subr.mxu0 0.0
  %3835 = vmatpush1.xpose.msra.mxu0 0.0
  %3836 = vmatprep.subr.mxu0 0.0
  %3837 = vmatpush1.xpose.msra.mxu0 0.0
  %3838 = vmatprep.subr.mxu0 0.0
  %3839 = vmatpush1.xpose.msra.mxu0 0.0
  %3840 = vmatprep.subr.mxu0 0.0
  %3841 = vmatpush1.xpose.msra.mxu0 0.0
  %3842 = vmatprep.subr.mxu0 0.0
  %3843 = vmatpush1.xpose.msra.mxu0 0.0
  %3844 = vmatprep.subr.mxu0 0.0
  %3845 = vmatpush1.xpose.msra.mxu0 0.0
  %3846 = vmatprep.subr.mxu0 0.0
  %3847 = vmatpush1.xpose.msra.mxu0 0.0
  %3848 = vmatprep.subr.mxu0 0.0
  %3849 = vmatpush1.xpose.msra.mxu0 0.0
  %3850 = vmatprep.subr.mxu0 0.0
  %3851 = vmatpush1.xpose.msra.mxu0 0.0
  %3852 = vmatprep.subr.mxu0 0.0
  %3853 = vmatpush1.xpose.msra.mxu0 0.0
  %3854 = vmatprep.subr.mxu0 0.0
  %3855 = vmatpush1.xpose.msra.mxu0 0.0
  %3856 = vmatprep.subr.mxu0 0.0
  %3857 = vmatpush1.xpose.msra.mxu0 0.0
  %3858 = vmatprep.subr.mxu0 0.0
  %3859 = vmatpush1.xpose.msra.mxu0 0.0
  %3860 = vmatprep.subr.mxu0 0.0
  %3861 = vmatpush1.xpose.msra.mxu0 0.0
  %3862 = vmatprep.subr.mxu0 0.0
  %3863 = vmatpush1.xpose.msra.mxu0 0.0
  %3864 = vmatprep.subr.mxu0 0.0
  %3865 = vmatpush1.xpose.msra.mxu0 0.0
  %3866 = vmatprep.subr.mxu0 0.0
  %3867 = vmatpush1.xpose.msra.mxu0 0.0
  %3868 = vmatprep.subr.mxu0 0.0
  %3869 = vmatpush1.xpose.msra.mxu0 0.0
  %3870 = vmatprep.subr.mxu0 0.0
  %3871 = vmatpush1.xpose.msra.mxu0 0.0
  %3872 = vmatprep.subr.mxu0 0.0
  %3873 = vmatpush1.xpose.msra.mxu0 0.0
  %3874 = vmatprep.subr.mxu0 0.0
  %3875 = vmatpush1.xpose.msra.mxu0 0.0
  %3876 = vmatprep.subr.mxu0 0.0
  %3877 = vmatpush1.xpose.msra.mxu0 0.0
  %3878 = vmatprep.subr.mxu0 0.0
  %3879 = vmatpush1.xpose.msra.mxu0 0.0
  %3880 = vmatprep.subr.mxu0 0.0
  %3881 = vmatpush1.xpose.msra.mxu0 0.0
  %3882 = vmatprep.subr.mxu0 0.0
  %3883 = vmatpush1.xpose.msra.mxu0 0.0
  %3884 = vmatprep.subr.mxu0 0.0
  %3885 = vmatpush1.xpose.msra.mxu0 0.0
  %3886 = vmatprep.subr.mxu0 0.0
  %3887 = vmatpush1.xpose.msra.mxu0 0.0
  %3888 = vmatprep.subr.mxu0 0.0
  %3889 = vmatpush1.xpose.msra.mxu0 0.0
  %3890 = vmatprep.subr.mxu0 0.0
  %3891 = vmatpush1.xpose.msra.mxu0 0.0
  %3892 = vmatprep.subr.mxu0 0.0
  %3893 = vmatpush1.xpose.msra.mxu0 0.0
  %3894 = vmatprep.mubr.f32.mxu0 0.0
  %3895 = vmatmul.mubr.f32.gmra.mrb[0].mxu0 %v3822
  %v3896 = vpop.f32.mrb[0].mxu0
  %v3897 = vadd.f32 0.0, %v3896
  %v3898 = vpop.f32.mrb[0].mxu0
  %3899 = vdwg.mxu0
  %v3901 = vsel %vm3265, %v542, 0
  %v3904 = vsel %vm3265, %v3355, 0
  %v3907 = vsel %vm3265, %v3357, 0
  %3909 = vmatprep.subr.mxu0 0.0
  %3910 = vmatpush1.xpose.msra.mxu0 %v3904
  %3911 = vmatprep.subr.mxu0 0.0
  %3912 = vmatpush1.xpose.msra.mxu0 %v3907
  %3913 = vmatprep.subr.mxu0 0.0
  %3914 = vmatpush1.xpose.msra.mxu0 0.0
  %3915 = vmatprep.subr.mxu0 0.0
  %3916 = vmatpush1.xpose.msra.mxu0 0.0
  %3917 = vmatprep.subr.mxu0 0.0
  %3918 = vmatpush1.xpose.msra.mxu0 0.0
  %3919 = vmatprep.subr.mxu0 0.0
  %3920 = vmatpush1.xpose.msra.mxu0 0.0
  %3921 = vmatprep.subr.mxu0 0.0
  %3922 = vmatpush1.xpose.msra.mxu0 0.0
  %3923 = vmatprep.subr.mxu0 0.0
  %3924 = vmatpush1.xpose.msra.mxu0 0.0
  %3925 = vmatprep.subr.mxu0 0.0
  %3926 = vmatpush1.xpose.msra.mxu0 0.0
  %3927 = vmatprep.subr.mxu0 0.0
  %3928 = vmatpush1.xpose.msra.mxu0 0.0
  %3929 = vmatprep.subr.mxu0 0.0
  %3930 = vmatpush1.xpose.msra.mxu0 0.0
  %3931 = vmatprep.subr.mxu0 0.0
  %3932 = vmatpush1.xpose.msra.mxu0 0.0
  %3933 = vmatprep.subr.mxu0 0.0
  %3934 = vmatpush1.xpose.msra.mxu0 0.0
  %3935 = vmatprep.subr.mxu0 0.0
  %3936 = vmatpush1.xpose.msra.mxu0 0.0
  %3937 = vmatprep.subr.mxu0 0.0
  %3938 = vmatpush1.xpose.msra.mxu0 0.0
  %3939 = vmatprep.subr.mxu0 0.0
  %3940 = vmatpush1.xpose.msra.mxu0 0.0
  %3941 = vmatprep.subr.mxu0 0.0
  %3942 = vmatpush1.xpose.msra.mxu0 0.0
  %3943 = vmatprep.subr.mxu0 0.0
  %3944 = vmatpush1.xpose.msra.mxu0 0.0
  %3945 = vmatprep.subr.mxu0 0.0
  %3946 = vmatpush1.xpose.msra.mxu0 0.0
  %3947 = vmatprep.subr.mxu0 0.0
  %3948 = vmatpush1.xpose.msra.mxu0 0.0
  %3949 = vmatprep.subr.mxu0 0.0
  %3950 = vmatpush1.xpose.msra.mxu0 0.0
  %3951 = vmatprep.subr.mxu0 0.0
  %3952 = vmatpush1.xpose.msra.mxu0 0.0
  %3953 = vmatprep.subr.mxu0 0.0
  %3954 = vmatpush1.xpose.msra.mxu0 0.0
  %3955 = vmatprep.subr.mxu0 0.0
  %3956 = vmatpush1.xpose.msra.mxu0 0.0
  %3957 = vmatprep.subr.mxu0 0.0
  %3958 = vmatpush1.xpose.msra.mxu0 0.0
  %3959 = vmatprep.subr.mxu0 0.0
  %3960 = vmatpush1.xpose.msra.mxu0 0.0
  %3961 = vmatprep.subr.mxu0 0.0
  %3962 = vmatpush1.xpose.msra.mxu0 0.0
  %3963 = vmatprep.subr.mxu0 0.0
  %3964 = vmatpush1.xpose.msra.mxu0 0.0
  %3965 = vmatprep.subr.mxu0 0.0
  %3966 = vmatpush1.xpose.msra.mxu0 0.0
  %3967 = vmatprep.subr.mxu0 0.0
  %3968 = vmatpush1.xpose.msra.mxu0 0.0
  %3969 = vmatprep.subr.mxu0 0.0
  %3970 = vmatpush1.xpose.msra.mxu0 0.0
  %3971 = vmatprep.subr.mxu0 0.0
  %3972 = vmatpush1.xpose.msra.mxu0 0.0
  %3973 = vmatprep.mubr.f32.mxu0 0.0
  %3974 = vmatmul.mubr.f32.gmra.mrb[0].mxu0 %v3901
  %v3975 = vpop.f32.mrb[0].mxu0
  %v3976 = vadd.f32 0.0, %v3975
  %v3977 = vpop.f32.mrb[0].mxu0
  %3978 = vdwg.mxu0
  %v3980 = vsel %vm3265, %v547, 0
  %v3983 = vsel %vm3265, %v3359, 0
  %v3986 = vsel %vm3265, %v3361, 0
  %3988 = vmatprep.subr.mxu0 0.0
  %3989 = vmatpush1.xpose.msra.mxu0 %v3983
  %3990 = vmatprep.subr.mxu0 0.0
  %3991 = vmatpush1.xpose.msra.mxu0 %v3986
  %3992 = vmatprep.subr.mxu0 0.0
  %3993 = vmatpush1.xpose.msra.mxu0 0.0
  %3994 = vmatprep.subr.mxu0 0.0
  %3995 = vmatpush1.xpose.msra.mxu0 0.0
  %3996 = vmatprep.subr.mxu0 0.0
  %3997 = vmatpush1.xpose.msra.mxu0 0.0
  %3998 = vmatprep.subr.mxu0 0.0
  %3999 = vmatpush1.xpose.msra.mxu0 0.0
  %4000 = vmatprep.subr.mxu0 0.0
  %4001 = vmatpush1.xpose.msra.mxu0 0.0
  %4002 = vmatprep.subr.mxu0 0.0
  %4003 = vmatpush1.xpose.msra.mxu0 0.0
  %4004 = vmatprep.subr.mxu0 0.0
  %4005 = vmatpush1.xpose.msra.mxu0 0.0
  %4006 = vmatprep.subr.mxu0 0.0
  %4007 = vmatpush1.xpose.msra.mxu0 0.0
  %4008 = vmatprep.subr.mxu0 0.0
  %4009 = vmatpush1.xpose.msra.mxu0 0.0
  %4010 = vmatprep.subr.mxu0 0.0
  %4011 = vmatpush1.xpose.msra.mxu0 0.0
  %4012 = vmatprep.subr.mxu0 0.0
  %4013 = vmatpush1.xpose.msra.mxu0 0.0
  %4014 = vmatprep.subr.mxu0 0.0
  %4015 = vmatpush1.xpose.msra.mxu0 0.0
  %4016 = vmatprep.subr.mxu0 0.0
  %4017 = vmatpush1.xpose.msra.mxu0 0.0
  %4018 = vmatprep.subr.mxu0 0.0
  %4019 = vmatpush1.xpose.msra.mxu0 0.0
  %4020 = vmatprep.subr.mxu0 0.0
  %4021 = vmatpush1.xpose.msra.mxu0 0.0
  %4022 = vmatprep.subr.mxu0 0.0
  %4023 = vmatpush1.xpose.msra.mxu0 0.0
  %4024 = vmatprep.subr.mxu0 0.0
  %4025 = vmatpush1.xpose.msra.mxu0 0.0
  %4026 = vmatprep.subr.mxu0 0.0
  %4027 = vmatpush1.xpose.msra.mxu0 0.0
  %4028 = vmatprep.subr.mxu0 0.0
  %4029 = vmatpush1.xpose.msra.mxu0 0.0
  %4030 = vmatprep.subr.mxu0 0.0
  %4031 = vmatpush1.xpose.msra.mxu0 0.0
  %4032 = vmatprep.subr.mxu0 0.0
  %4033 = vmatpush1.xpose.msra.mxu0 0.0
  %4034 = vmatprep.subr.mxu0 0.0
  %4035 = vmatpush1.xpose.msra.mxu0 0.0
  %4036 = vmatprep.subr.mxu0 0.0
  %4037 = vmatpush1.xpose.msra.mxu0 0.0
  %4038 = vmatprep.subr.mxu0 0.0
  %4039 = vmatpush1.xpose.msra.mxu0 0.0
  %4040 = vmatprep.subr.mxu0 0.0
  %4041 = vmatpush1.xpose.msra.mxu0 0.0
  %4042 = vmatprep.subr.mxu0 0.0
  %4043 = vmatpush1.xpose.msra.mxu0 0.0
  %4044 = vmatprep.subr.mxu0 0.0
  %4045 = vmatpush1.xpose.msra.mxu0 0.0
  %4046 = vmatprep.subr.mxu0 0.0
  %4047 = vmatpush1.xpose.msra.mxu0 0.0
  %4048 = vmatprep.subr.mxu0 0.0
  %4049 = vmatpush1.xpose.msra.mxu0 0.0
  %4050 = vmatprep.subr.mxu0 0.0
  %4051 = vmatpush1.xpose.msra.mxu0 0.0
  %4052 = vmatprep.mubr.f32.mxu0 0.0
  %4053 = vmatmul.mubr.f32.gmra.mrb[0].mxu0 %v3980
  %v4054 = vpop.f32.mrb[0].mxu0
  %v4055 = vadd.f32 0.0, %v4054
  %v4056 = vpop.f32.mrb[0].mxu0
  %4057 = vdwg.mxu0
  %v4074 = vlaneseq
  %v4075 = vand.u32 %v4074, 127
  %v4076 = vlaneseq
  %v4077 = vshrl.u32 %v4076, 7
  %v4078 = vsub.s32 %v4075, %v4077
  %v4079 = vrot.slane %v3410, %v4078
  %v4080 = vadd.s32 %v4075, 4294967288
  %v4081 = vlaneseq
  %v4082 = vshrl.u32 %v4081, 7
  %v4083 = vsub.s32 %v4080, %v4082
  %v4084 = vrot.slane %v3411, %v4083
  %vm4085 = vcmask 130112
  %v4086 = vsel %vm4085, %v4084, %v4079
  %v4087 = vlaneseq
  %v4088 = vshrl.u32 %v4087, 7
  %v4089 = vsub.s32 %v4075, %v4088
  %v4090 = vrot.slane %v3412, %v4089
  %v4091 = vlaneseq
  %v4092 = vshrl.u32 %v4091, 7
  %v4093 = vsub.s32 %v4080, %v4092
  %v4094 = vrot.slane %v3413, %v4093
  %v4095 = vsel %vm4085, %v4094, %v4090
  %v4096 = vlaneseq
  %v4097 = vshrl.u32 %v4096, 7
  %v4098 = vsub.s32 %v4075, %v4097
  %v4099 = vrot.slane %v3414, %v4098
  %v4100 = vlaneseq
  %v4101 = vshrl.u32 %v4100, 7
  %v4102 = vsub.s32 %v4080, %v4101
  %v4103 = vrot.slane %v3415, %v4102
  %v4104 = vsel %vm4085, %v4103, %v4099
  %v4105 = vlaneseq
  %v4106 = vshrl.u32 %v4105, 7
  %v4107 = vsub.s32 %v4075, %v4106
  %v4108 = vrot.slane %v3416, %v4107
  %v4109 = vlaneseq
  %v4110 = vshrl.u32 %v4109, 7
  %v4111 = vsub.s32 %v4080, %v4110
  %v4112 = vrot.slane %v3417, %v4111
  %v4113 = vsel %vm4085, %v4112, %v4108
  %v4114 = vlaneseq
  %v4115 = vshrl.u32 %v4114, 7
  %v4116 = vsub.s32 %v4075, %v4115
  %v4117 = vrot.slane %v3418, %v4116
  %v4118 = vlaneseq
  %v4119 = vshrl.u32 %v4118, 7
  %v4120 = vsub.s32 %v4080, %v4119
  %v4121 = vrot.slane %v3419, %v4120
  %v4122 = vsel %vm4085, %v4121, %v4117
  %v4123 = vlaneseq
  %v4124 = vshrl.u32 %v4123, 7
  %v4125 = vsub.s32 %v4075, %v4124
  %v4126 = vrot.slane %v3420, %v4125
  %v4127 = vlaneseq
  %v4128 = vshrl.u32 %v4127, 7
  %v4129 = vsub.s32 %v4080, %v4128
  %v4130 = vrot.slane %v3421, %v4129
  %v4131 = vsel %vm4085, %v4130, %v4126
  %v4132 = vlaneseq
  %v4133 = vshrl.u32 %v4132, 7
  %v4134 = vsub.s32 %v4075, %v4133
  %v4135 = vrot.slane %v3422, %v4134
  %v4136 = vlaneseq
  %v4137 = vshrl.u32 %v4136, 7
  %v4138 = vsub.s32 %v4080, %v4137
  %v4139 = vrot.slane %v3423, %v4138
  %v4140 = vsel %vm4085, %v4139, %v4135
  %v4141 = vlaneseq
  %v4142 = vshrl.u32 %v4141, 7
  %v4143 = vsub.s32 %v4075, %v4142
  %v4144 = vrot.slane %v3424, %v4143
  %v4145 = vlaneseq
  %v4146 = vshrl.u32 %v4145, 7
  %v4147 = vsub.s32 %v4080, %v4146
  %v4148 = vrot.slane %v3425, %v4147
  %v4149 = vsel %vm4085, %v4148, %v4144
  %vm4150 = vcmask 1042434
  %v4151 = vsel %vm4150, %v4086, %v4086
  %vm4152 = vcmask 1043459
  %v4153 = vsel %vm4152, %v4086, %v4151
  %vm4154 = vcmask 1044484
  %v4155 = vsel %vm4154, %v4086, %v4153
  %vm4156 = vcmask 1045509
  %v4157 = vsel %vm4156, %v4086, %v4155
  %vm4158 = vcmask 1046534
  %v4159 = vsel %vm4158, %v4086, %v4157
  %vm4160 = vcmask 1047559
  %v4161 = vsel %vm4160, %v4086, %v4159
  %v4162 = vsel %vm4150, %v4095, %v4095
  %v4163 = vsel %vm4152, %v4095, %v4162
  %v4164 = vsel %vm4154, %v4095, %v4163
  %v4165 = vsel %vm4156, %v4095, %v4164
  %v4166 = vsel %vm4158, %v4095, %v4165
  %v4167 = vsel %vm4160, %v4095, %v4166
  %v4168 = vsel %vm4150, %v4104, %v4104
  %v4169 = vsel %vm4152, %v4104, %v4168
  %v4170 = vsel %vm4154, %v4104, %v4169
  %v4171 = vsel %vm4156, %v4104, %v4170
  %v4172 = vsel %vm4158, %v4104, %v4171
  %v4173 = vsel %vm4160, %v4104, %v4172
  %v4174 = vsel %vm4150, %v4113, %v4113
  %v4175 = vsel %vm4152, %v4113, %v4174
  %v4176 = vsel %vm4154, %v4113, %v4175
  %v4177 = vsel %vm4156, %v4113, %v4176
  %v4178 = vsel %vm4158, %v4113, %v4177
  %v4179 = vsel %vm4160, %v4113, %v4178
  %v4180 = vsel %vm4150, %v4122, %v4122
  %v4181 = vsel %vm4152, %v4122, %v4180
  %v4182 = vsel %vm4154, %v4122, %v4181
  %v4183 = vsel %vm4156, %v4122, %v4182
  %v4184 = vsel %vm4158, %v4122, %v4183
  %v4185 = vsel %vm4160, %v4122, %v4184
  %v4186 = vsel %vm4150, %v4131, %v4131
  %v4187 = vsel %vm4152, %v4131, %v4186
  %v4188 = vsel %vm4154, %v4131, %v4187
  %v4189 = vsel %vm4156, %v4131, %v4188
  %v4190 = vsel %vm4158, %v4131, %v4189
  %v4191 = vsel %vm4160, %v4131, %v4190
  %v4192 = vsel %vm4150, %v4140, %v4140
  %v4193 = vsel %vm4152, %v4140, %v4192
  %v4194 = vsel %vm4154, %v4140, %v4193
  %v4195 = vsel %vm4156, %v4140, %v4194
  %v4196 = vsel %vm4158, %v4140, %v4195
  %v4197 = vsel %vm4160, %v4140, %v4196
  %v4198 = vsel %vm4150, %v4149, %v4149
  %v4199 = vsel %vm4152, %v4149, %v4198
  %v4200 = vsel %vm4154, %v4149, %v4199
  %v4201 = vsel %vm4156, %v4149, %v4200
  %v4202 = vsel %vm4158, %v4149, %v4201
  %v4203 = vsel %vm4160, %v4149, %v4202
  %v4212 = vmul.f32 %v3502, %v4161
  %v4213 = vmul.f32 %v3581, %v4167
  %v4214 = vmul.f32 %v3660, %v4173
  %v4215 = vmul.f32 %v3739, %v4179
  %v4216 = vmul.f32 %v3818, %v4185
  %v4217 = vmul.f32 %v3897, %v4191
  %v4218 = vmul.f32 %v3976, %v4197
  %v4219 = vmul.f32 %v4055, %v4203
  %v4220 = vld [vmem:[%s6] sm:$0xff]
  %v4221 = vld [vmem:[%s6 + $0x8] sm:$0xff]
  %v4222 = vld [vmem:[%s6 + $0x10] sm:$0xff]
  %v4223 = vld [vmem:[%s6 + $0x18] sm:$0xff]
  %v4224 = vld [vmem:[%s6 + $0x20] sm:$0xff]
  %v4225 = vld [vmem:[%s6 + $0x28] sm:$0xff]
  %v4226 = vld [vmem:[%s6 + $0x30] sm:$0xff]
  %v4227 = vld [vmem:[%s6 + $0x38] sm:$0xff]
  %v4228 = vld [vmem:[%s7] sm:$0xff]
  %v4229 = vld [vmem:[%s7 + $0x8] sm:$0xff]
  %v4230 = vld [vmem:[%s7 + $0x10] sm:$0xff]
  %v4231 = vld [vmem:[%s7 + $0x18] sm:$0xff]
  %v4232 = vld [vmem:[%s7 + $0x20] sm:$0xff]
  %v4233 = vld [vmem:[%s7 + $0x28] sm:$0xff]
  %v4234 = vld [vmem:[%s7 + $0x30] sm:$0xff]
  %v4235 = vld [vmem:[%s7 + $0x38] sm:$0xff]
  %4237 = vset.pattern.permute.xlu0 0
  %4238 = vperm.xlu0 %4237, %v4228
  %v4239 = vpop.permute.xlu0 %4238
  %4242 = vset.pattern.permute.xlu0 0
  %4243 = vperm.xlu0 %4242, %v4229
  %v4244 = vpop.permute.xlu0 %4243
  %4247 = vset.pattern.permute.xlu0 0
  %4248 = vperm.xlu0 %4247, %v4230
  %v4249 = vpop.permute.xlu0 %4248
  %4252 = vset.pattern.permute.xlu0 0
  %4253 = vperm.xlu0 %4252, %v4231
  %v4254 = vpop.permute.xlu0 %4253
  %4257 = vset.pattern.permute.xlu0 0
  %4258 = vperm.xlu0 %4257, %v4232
  %v4259 = vpop.permute.xlu0 %4258
  %4262 = vset.pattern.permute.xlu0 0
  %4263 = vperm.xlu0 %4262, %v4233
  %v4264 = vpop.permute.xlu0 %4263
  %4267 = vset.pattern.permute.xlu0 0
  %4268 = vperm.xlu0 %4267, %v4234
  %v4269 = vpop.permute.xlu0 %4268
  %4272 = vset.pattern.permute.xlu0 0
  %4273 = vperm.xlu0 %4272, %v4235
  %v4274 = vpop.permute.xlu0 %4273
  %v4277 = vsel %vm97, %v4220, 0
  %v4280 = vsel %vm97, %v4221, 0
  %v4283 = vsel %vm97, %v4222, 0
  %v4286 = vsel %vm97, %v4223, 0
  %v4289 = vsel %vm97, %v4224, 0
  %v4292 = vsel %vm97, %v4225, 0
  %v4295 = vsel %vm97, %v4226, 0
  %v4298 = vsel %vm97, %v4227, 0
  %4300 = vmatprep.subr.mxu0 0.0
  %4301 = vmatpush1.msra.mxu0 %v4212
  %4302 = vmatprep.subr.mxu0 0.0
  %4303 = vmatpush1.msra.mxu0 %v4213
  %4304 = vmatprep.subr.mxu0 0.0
  %4305 = vmatpush1.msra.mxu0 %v4214
  %4306 = vmatprep.subr.mxu0 0.0
  %4307 = vmatpush1.msra.mxu0 %v4215
  %4308 = vmatprep.subr.mxu0 0.0
  %4309 = vmatpush1.msra.mxu0 %v4216
  %4310 = vmatprep.subr.mxu0 0.0
  %4311 = vmatpush1.msra.mxu0 %v4217
  %4312 = vmatprep.subr.mxu0 0.0
  %4313 = vmatpush1.msra.mxu0 %v4218
  %4314 = vmatprep.subr.mxu0 0.0
  %4315 = vmatpush1.msra.mxu0 %v4219
  %4316 = vmatprep.subr.mxu0 0.0
  %4317 = vmatpush1.msra.mxu0 0.0
  %4318 = vmatprep.subr.mxu0 0.0
  %4319 = vmatpush1.msra.mxu0 0.0
  %4320 = vmatprep.subr.mxu0 0.0
  %4321 = vmatpush1.msra.mxu0 0.0
  %4322 = vmatprep.subr.mxu0 0.0
  %4323 = vmatpush1.msra.mxu0 0.0
  %4324 = vmatprep.subr.mxu0 0.0
  %4325 = vmatpush1.msra.mxu0 0.0
  %4326 = vmatprep.subr.mxu0 0.0
  %4327 = vmatpush1.msra.mxu0 0.0
  %4328 = vmatprep.subr.mxu0 0.0
  %4329 = vmatpush1.msra.mxu0 0.0
  %4330 = vmatprep.subr.mxu0 0.0
  %4331 = vmatpush1.msra.mxu0 0.0
  %4332 = vmatprep.subr.mxu0 0.0
  %4333 = vmatpush1.msra.mxu0 0.0
  %4334 = vmatprep.subr.mxu0 0.0
  %4335 = vmatpush1.msra.mxu0 0.0
  %4336 = vmatprep.subr.mxu0 0.0
  %4337 = vmatpush1.msra.mxu0 0.0
  %4338 = vmatprep.subr.mxu0 0.0
  %4339 = vmatpush1.msra.mxu0 0.0
  %4340 = vmatprep.subr.mxu0 0.0
  %4341 = vmatpush1.msra.mxu0 0.0
  %4342 = vmatprep.subr.mxu0 0.0
  %4343 = vmatpush1.msra.mxu0 0.0
  %4344 = vmatprep.subr.mxu0 0.0
  %4345 = vmatpush1.msra.mxu0 0.0
  %4346 = vmatprep.subr.mxu0 0.0
  %4347 = vmatpush1.msra.mxu0 0.0
  %4348 = vmatprep.subr.mxu0 0.0
  %4349 = vmatpush1.msra.mxu0 0.0
  %4350 = vmatprep.subr.mxu0 0.0
  %4351 = vmatpush1.msra.mxu0 0.0
  %4352 = vmatprep.subr.mxu0 0.0
  %4353 = vmatpush1.msra.mxu0 0.0
  %4354 = vmatprep.subr.mxu0 0.0
  %4355 = vmatpush1.msra.mxu0 0.0
  %4356 = vmatprep.subr.mxu0 0.0
  %4357 = vmatpush1.msra.mxu0 0.0
  %4358 = vmatprep.subr.mxu0 0.0
  %4359 = vmatpush1.msra.mxu0 0.0
  %4360 = vmatprep.subr.mxu0 0.0
  %4361 = vmatpush1.msra.mxu0 0.0
  %4362 = vmatprep.subr.mxu0 0.0
  %4363 = vmatpush1.msra.mxu0 0.0
  %4364 = vmatprep.mubr.f32.mxu0 0.0
  %4365 = vmatmul.mubr.f32.gmra.mrb[0].mxu0 %v4277
  %v4366 = vpop.f32.mrb[0].mxu0
  %v4367 = vadd.f32 %v4239, %v4366
  %v4368 = vpop.f32.mrb[0].mxu0
  %4369 = vmatprep.mubr.f32.mxu0 0.0
  %4370 = vmatmul.mubr.f32.gmra.mrb[0].mxu0 %v4280
  %v4371 = vpop.f32.mrb[0].mxu0
  %v4372 = vadd.f32 %v4244, %v4371
  %v4373 = vpop.f32.mrb[0].mxu0
  %4374 = vmatprep.mubr.f32.mxu0 0.0
  %4375 = vmatmul.mubr.f32.gmra.mrb[0].mxu0 %v4283
  %v4376 = vpop.f32.mrb[0].mxu0
  %v4377 = vadd.f32 %v4249, %v4376
  %v4378 = vpop.f32.mrb[0].mxu0
  %4379 = vmatprep.mubr.f32.mxu0 0.0
  %4380 = vmatmul.mubr.f32.gmra.mrb[0].mxu0 %v4286
  %v4381 = vpop.f32.mrb[0].mxu0
  %v4382 = vadd.f32 %v4254, %v4381
  %v4383 = vpop.f32.mrb[0].mxu0
  %4384 = vmatprep.mubr.f32.mxu0 0.0
  %4385 = vmatmul.mubr.f32.gmra.mrb[0].mxu0 %v4289
  %v4386 = vpop.f32.mrb[0].mxu0
  %v4387 = vadd.f32 %v4259, %v4386
  %v4388 = vpop.f32.mrb[0].mxu0
  %4389 = vmatprep.mubr.f32.mxu0 0.0
  %4390 = vmatmul.mubr.f32.gmra.mrb[0].mxu0 %v4292
  %v4391 = vpop.f32.mrb[0].mxu0
  %v4392 = vadd.f32 %v4264, %v4391
  %v4393 = vpop.f32.mrb[0].mxu0
  %4394 = vmatprep.mubr.f32.mxu0 0.0
  %4395 = vmatmul.mubr.f32.gmra.mrb[0].mxu0 %v4295
  %v4396 = vpop.f32.mrb[0].mxu0
  %v4397 = vadd.f32 %v4269, %v4396
  %v4398 = vpop.f32.mrb[0].mxu0
  %4399 = vmatprep.mubr.f32.mxu0 0.0
  %4400 = vmatmul.mubr.f32.gmra.mrb[0].mxu0 %v4298
  %v4401 = vpop.f32.mrb[0].mxu0
  %v4402 = vadd.f32 %v4274, %v4401
  %v4403 = vpop.f32.mrb[0].mxu0
  %4404 = vdwg.mxu0
  %vm4405 = vcmask 130048
  %4406 = vst.msk [vmem:[%s10] sm:$0xff] %vm4405, %v4367
  %4407 = vst.msk [vmem:[%s10 + $0x8] sm:$0xff] %vm4405, %v4372
  %4408 = vst.msk [vmem:[%s10 + $0x10] sm:$0xff] %vm4405, %v4377
  %4409 = vst.msk [vmem:[%s10 + $0x18] sm:$0xff] %vm4405, %v4382
  %4410 = vst.msk [vmem:[%s10 + $0x20] sm:$0xff] %vm4405, %v4387
  %4411 = vst.msk [vmem:[%s10 + $0x28] sm:$0xff] %vm4405, %v4392
  %4412 = vst.msk [vmem:[%s10 + $0x30] sm:$0xff] %vm4405, %v4397
  %4413 = vst.msk [vmem:[%s10 + $0x38] sm:$0xff] %vm4405, %v4402
  // Predicated region
  $region42: #{tpu_custom_call.1} parent=0 // pred_check
    _
  $region43: #{tpu_custom_call.1} parent=0 // pred_check_branch
    %4415 = sbr.rel (0) target = $region45
  $region44: #{tpu_custom_call.1} parent=0 // pred_region
    _
  $region45: #{tpu_custom_call.1} parent=0 // pred_fallthru
    _
  // Predicated region
  $region46: #{tpu_custom_call.1} parent=0 // pred_check
    _
  $region47: #{tpu_custom_call.1} parent=0 // pred_check_branch
    %4417 = sbr.rel (0) target = $region49
  $region48: #{tpu_custom_call.1} parent=0 // pred_region
    _
  $region49: #{tpu_custom_call.1} parent=0 // pred_fallthru
    _

</llo_original>
